<compile_context>
chip_gen: v6e
topology: v6e:2x2x1
jax: 0.10.0
libtpu: 0.0.40
codegen_flags: <defaults>
</compile_context>

<pallas_src>
import functools

import jax
import jax.numpy as jnp
from jax.experimental import pallas as pl
from jax.experimental.pallas import tpu as pltpu

C_IN, C_MID, C_OUT = 128, 128, 16   # cnv_dim=128, out_dim=16 (fixed by module)
K = 3                               # 3x3x3 kernel, padding=1
_PAD_ROWS = 8                       # extra (zeroed) rows in the kw-shift scratch
_MiB = 1 << 20


def _round_up(x, m):
    return (x + m - 1) // m * m


def _cdiv(a, b):
    return -(-a // b)


def _pick_tiling(H, Wp):
    """Pick the H tile (Ht, even) and a chip-aware scoped-VMEM limit."""
    try:
        vmem_phys = int(pltpu.get_tpu_info().vmem_capacity_bytes)
    except Exception:
        vmem_phys = 64 * _MiB                       # conservative: v7x per-TC VMEM
    # ~48 MiB cap on 64-MiB parts (v7x), ~96 MiB on 128-MiB parts (v5e/v6e).
    budget = 96 * _MiB if vmem_phys >= 128 * _MiB else 48 * _MiB
    budget = min(budget, max(int(0.75 * vmem_phys), 8 * _MiB))

    def est(ht):
        rt = ht * Wp
        b = 0
        b += 2 * (3 * ht + 3 * 2) * Wp * C_IN * 2       # input blocks (bf16, x2 buffers)
        b += 2 * (K * K * C_IN) * (K * C_MID) * 2       # conv1 weights (x2 buffers)
        b += 2 * rt * C_OUT * 4                         # output blocks (f32, x2 buffers)
        b += (rt + _PAD_ROWS) * 2 * C_MID * 4           # kw-shift scratch
        b += rt * K * K * C_IN * 2                      # im2col patch (bf16)
        b += 3 * (ht + 2) * Wp * C_IN * 2               # per-kd halo windows (bf16)
        b += rt * K * C_MID * 4                         # conv1 result (f32)
        b += rt * C_MID * (4 + 2)                       # ReLU f32 + bf16 copy
        b += rt * C_OUT * 4                             # conv2 result
        b += 4 * _MiB                                   # misc / Mosaic internal scratch
        return b

    n = 1
    while True:
        ht = max(2, _round_up(_cdiv(H, n), 2))
        if est(ht) <= budget or ht == 2:
            break
        n += 1
    n_tiles = _cdiv(H, ht)
    vmem_limit = int(min(budget, max(32 * _MiB, est(ht) + 8 * _MiB)))
    return ht, n_tiles, vmem_limit


def _heatmap_kernel(x0_ref, x1_ref, x2_ref, h0_ref, h1_ref, h2_ref,
                    w1_ref, b1_ref, w2_ref, b2_ref, o_ref, yscr_ref, *, Ht, Wp):
    """Grid = (N, D, H-tiles); one (batch, depth plane, H tile) per step.

    x{kd}_ref : (1, 1, Ht, Wp, C_IN)  bf16  padded rows [t*Ht, t*Ht+Ht) of plane d+kd
    h{kd}_ref : (1, 1, 2,  Wp, C_IN)  bf16  halo rows [t*Ht+Ht, t*Ht+Ht+2)
    w1_ref    : (9*C_IN, 3*C_MID)     bf16  rows (kd, kh, ci), cols (kw, co)
    b1_ref    : (1, C_MID)            f32
    w2_ref    : (C_MID, C_OUT)        bf16
    b2_ref    : (1, C_OUT)            f32
    o_ref     : (1, 1, Ht*Wp, C_OUT)  f32
    yscr_ref  : (Ht*Wp+8, 2*C_MID)    f32   scratch for the kw-shifted reads
    """
    Rt = Ht * Wp
    mains = (x0_ref, x1_ref, x2_ref)
    halos = (h0_ref, h1_ref, h2_ref)

    # im2col over (kd, kh): 9 tile-aligned slabs lane-concatenated at 128
    # boundaries (Wp is a multiple of the bf16 sublane tile -> free reshapes).
    slabs = []
    for kd in range(K):
        window = jnp.concatenate([mains[kd][0, 0], halos[kd][0, 0]], axis=0)
        for kh in range(K):
            slabs.append(window[kh:kh + Ht].reshape(Rt, C_IN))
    patch = jnp.concatenate(slabs, axis=1)                    # (Rt, 1152) bf16
    # NOTE(v5e): on the 128-wide MXU the lane concat saves no MXU passes; nine
    # accumulating (Rt,128)x(128,384) dots from the slab views would avoid the
    # patch copy there.  Kept fused for the 256-wide MXUs (v6e/v7x).

    # One deep MXU matmul: K = 1152, N = 384.  Column block kw holds the
    # partial conv for W-tap kw evaluated at input column w.
    y = jnp.dot(patch, w1_ref[...], preferred_element_type=jnp.float32)

    # kw alignment: out[r] = y[r, kw0] + y[r+1, kw1] + y[r+2, kw2].
    # Shifted reads go through an over-allocated scratch (no jnp.roll copies);
    # rows that read past Rt only feed cropped (w >= W) output columns, and
    # the padding rows are zeroed anyway.
    yscr_ref[0:Rt, :] = y[:, C_MID:]
    yscr_ref[Rt:Rt + _PAD_ROWS, :] = jnp.zeros((_PAD_ROWS, 2 * C_MID), jnp.float32)
    acc = (y[:, 0:C_MID]
           + yscr_ref[1:Rt + 1, 0:C_MID]
           + yscr_ref[2:Rt + 2, C_MID:2 * C_MID])

    h = jnp.maximum(acc + b1_ref[...], 0.0)                   # bias + ReLU
    out = jnp.dot(h.astype(jnp.bfloat16), w2_ref[...],
                  preferred_element_type=jnp.float32) + b2_ref[...]
    o_ref[0, 0] = out


def heatmap_head_ndhwc(x_ndhwc, w1, b1, w2, b2):
    """Channels-last entry point (preferred: no NCDHW transpose round-trip).

    x_ndhwc: (N, D, H, W, C_IN); w1: (3,3,3,C_IN,C_MID); b1: (C_MID,);
    w2: (C_MID, C_OUT); b2: (C_OUT,).  Returns (N, D, H, W, C_OUT) float32.
    """
    N, D, H, W, C = x_ndhwc.shape
    assert C == C_IN
    Wp = _round_up(W + 2, 16)            # 1-col halo each side + bf16 sublane tile
    assert Wp >= W + 2                   # shift-wrap rows must be cropped garbage
    Ht, n_tiles, vmem_limit = _pick_tiling(H, Wp)
    Hp = (n_tiles + 1) * Ht              # padded H extent (halo + tile alignment)
    Rt = Ht * Wp
    half = Ht // 2                       # Ht is even

    xb = x_ndhwc.astype(jnp.bfloat16)
    xp = jnp.pad(xb, ((0, 0), (1, 1), (1, Hp - H - 1), (1, Wp - W - 1), (0, 0)))

    # conv1 weights: (kd,kh,kw,ci,co) -> rows (kd,kh,ci), cols (kw,co)
    w1f = jnp.transpose(w1, (0, 1, 3, 2, 4)).reshape(K * K * C_IN, K * C_MID)
    w1f = w1f.astype(jnp.bfloat16)
    w2b = w2.astype(jnp.bfloat16)
    b1r = b1.reshape(1, C_MID).astype(jnp.float32)
    b2r = b2.reshape(1, C_OUT).astype(jnp.float32)

    def main_spec(kd):
        return pl.BlockSpec((1, 1, Ht, Wp, C_IN),
                            lambda n, d, t, _kd=kd: (n, d + _kd, t, 0, 0))

    def halo_spec(kd):
        return pl.BlockSpec((1, 1, 2, Wp, C_IN),
                            lambda n, d, t, _kd=kd: (n, d + _kd, (t + 1) * half, 0, 0))

    # TODO(synk): on v7x, pipeline_mode=pl.Buffered(1) on the constant-index
    # weight specs (~0.9 MB VMEM back) and CORE_PARALLEL on the leading grid
    # axis are worth trying; omitted to stay portable across Pallas versions.
    kernel = functools.partial(_heatmap_kernel, Ht=Ht, Wp=Wp)
    out = pl.pallas_call(
        kernel,
        out_shape=jax.ShapeDtypeStruct((N, D, n_tiles * Rt, C_OUT), jnp.float32),
        grid_spec=pltpu.PrefetchScalarGridSpec(
            num_scalar_prefetch=0,
            grid=(N, D, n_tiles),                    # no reduction axis left
            in_specs=[
                main_spec(0), main_spec(1), main_spec(2),
                halo_spec(0), halo_spec(1), halo_spec(2),
                # weights / biases: constant block index -> fetched once, resident
                pl.BlockSpec((K * K * C_IN, K * C_MID), lambda n, d, t: (0, 0)),
                pl.BlockSpec((1, C_MID), lambda n, d, t: (0, 0)),
                pl.BlockSpec((C_MID, C_OUT), lambda n, d, t: (0, 0)),
                pl.BlockSpec((1, C_OUT), lambda n, d, t: (0, 0)),
            ],
            out_specs=pl.BlockSpec((1, 1, Rt, C_OUT), lambda n, d, t: (n, d, t, 0)),
            scratch_shapes=[pltpu.VMEM((Rt + _PAD_ROWS, 2 * C_MID), jnp.float32)],
        ),
        compiler_params=pltpu.CompilerParams(
            dimension_semantics=("parallel", "parallel", "parallel"),
            vmem_limit_bytes=vmem_limit,
        ),
    )(xp, xp, xp, xp, xp, xp, w1f, b1r, w2b, b2r)

    # (N, D, n_tiles*Ht*Wp, 16) -> crop the H/W padding
    out = out.reshape(N, D, n_tiles * Ht, Wp, C_OUT)[:, :, :H, :W, :]
    return out


def heatmap_head(feat_ncdhw, w1, b1, w2, b2):
    """PyTorch-layout wrapper: feat (N, 128, D, H, W) -> (N, 16, D, H, W).

    NOTE: the NCDHW<->NDHWC transposes are an extra HBM round-trip of the
    feature map; callers that can produce channels-last features should use
    heatmap_head_ndhwc directly.
    """
    x = jnp.transpose(feat_ncdhw, (0, 2, 3, 4, 1))
    out = heatmap_head_ndhwc(x, w1, b1, w2, b2)
    return jnp.transpose(out, (0, 4, 1, 2, 3))


def _reference(feat, w1, b1, w2, b2):
    """Pure-JAX reference (XLA conv, f32 HIGHEST) matching the PyTorch forward."""
    w1_oidhw = jnp.transpose(w1, (4, 3, 0, 1, 2))               # (O, I, kD, kH, kW)
    y = jax.lax.conv_general_dilated(
        feat, w1_oidhw, window_strides=(1, 1, 1),
        padding=((1, 1), (1, 1), (1, 1)),
        dimension_numbers=("NCDHW", "OIDHW", "NCDHW"),
        precision=jax.lax.Precision.HIGHEST)
    y = jnp.maximum(y + b1.reshape(1, C_MID, 1, 1, 1), 0.0)
    w2_oidhw = jnp.transpose(w2, (1, 0)).reshape(C_OUT, C_MID, 1, 1, 1)
    z = jax.lax.conv_general_dilated(
        y, w2_oidhw, window_strides=(1, 1, 1),
        padding=((0, 0), (0, 0), (0, 0)),
        dimension_numbers=("NCDHW", "OIDHW", "NCDHW"),
        precision=jax.lax.Precision.HIGHEST)
    return z + b2.reshape(1, C_OUT, 1, 1, 1)


def _make_params(key):
    k_w1, k_b1, k_w2, k_b2 = jax.random.split(key, 4)
    # Xavier-normal-style init for conv weights (gain=1), small biases.
    fan1 = C_IN * K * K * K
    std1 = (2.0 / (fan1 + C_MID * K * K * K)) ** 0.5
    w1 = std1 * jax.random.normal(k_w1, (K, K, K, C_IN, C_MID), dtype=jnp.float32)
    b1 = 0.01 * jax.random.normal(k_b1, (C_MID,), dtype=jnp.float32)
    std2 = (2.0 / (C_MID + C_OUT)) ** 0.5
    w2 = std2 * jax.random.normal(k_w2, (C_MID, C_OUT), dtype=jnp.float32)
    b2 = 0.01 * jax.random.normal(k_b2, (C_OUT,), dtype=jnp.float32)
    return w1, b1, w2, b2


if __name__ == "__main__":
    key = jax.random.PRNGKey(0)
    k_params, k_feat1, k_feat2 = jax.random.split(key, 3)
    w1, b1, w2, b2 = _make_params(k_params)

    fwd = jax.jit(heatmap_head)

    # Small shape; channel dims (128 -> 128 -> 16) are fixed by the module.
    N, D, H, W = 2, 4, 4, 8
    feat = jax.random.normal(k_feat1, (N, C_IN, D, H, W), dtype=jnp.float32)
    out = jax.block_until_ready(fwd(feat, w1, b1, w2, b2))
    assert out.shape == (N, C_OUT, D, H, W), out.shape
    assert bool(jnp.all(jnp.isfinite(out)))
    ref = _reference(feat, w1, b1, w2, b2)
    # Intentional accuracy change: bf16 multiplies with f32 accumulation vs the
    # f32-HIGHEST reference; tolerance reflects that.
    assert bool(jnp.allclose(out, ref, rtol=2e-2, atol=2e-2)), (
        float(jnp.max(jnp.abs(out - ref))))

    # Non-aligned shape: exercises the W/H padding, halo blocks and cropping.
    N2, D2, H2, W2 = 1, 5, 19, 21
    feat2 = jax.random.normal(k_feat2, (N2, C_IN, D2, H2, W2), dtype=jnp.float32)
    out2 = jax.block_until_ready(fwd(feat2, w1, b1, w2, b2))
    assert out2.shape == (N2, C_OUT, D2, H2, W2), out2.shape
    assert bool(jnp.all(jnp.isfinite(out2)))
    ref2 = _reference(feat2, w1, b1, w2, b2)
    assert bool(jnp.allclose(out2, ref2, rtol=2e-2, atol=2e-2)), (
        float(jnp.max(jnp.abs(out2 - ref2))))

    print("KERNEL_OK")
</pallas_src>

<mosaic_0001>
module attributes {stable_mosaic.version = 11 : i64} {
  func.func @_heatmap_kernel(%arg0: i32, %arg1: i32, %arg2: i32, %arg3: memref<1x1x4x16x128xbf16, #tpu.memory_space<vmem>>, %arg4: memref<1x1x4x16x128xbf16, #tpu.memory_space<vmem>>, %arg5: memref<1x1x4x16x128xbf16, #tpu.memory_space<vmem>>, %arg6: memref<1x1x2x16x128xbf16, #tpu.memory_space<vmem>>, %arg7: memref<1x1x2x16x128xbf16, #tpu.memory_space<vmem>>, %arg8: memref<1x1x2x16x128xbf16, #tpu.memory_space<vmem>>, %arg9: memref<1152x384xbf16, #tpu.memory_space<vmem>>, %arg10: memref<1x128xf32, #tpu.memory_space<vmem>>, %arg11: memref<128x16xbf16, #tpu.memory_space<vmem>>, %arg12: memref<1x16xf32, #tpu.memory_space<vmem>>, %arg13: memref<1x1x64x16xf32, #tpu.memory_space<vmem>>, %arg14: memref<72x256xf32, #tpu.memory_space<vmem>>) attributes {dimension_semantics = [#tpu.dimension_semantics<parallel>, #tpu.dimension_semantics<parallel>, #tpu.dimension_semantics<parallel>], iteration_bounds = array<i64: 2, 4, 1>, scalar_prefetch = 0 : i64, scratch_operands = 1 : i64, tpu.core_type = #tpu.core_type<tc>, window_params = [{transform_indices = @transform_0, window_bounds = array<i64: 1, 1, 4, 16, 128>}, {transform_indices = @transform_1, window_bounds = array<i64: 1, 1, 4, 16, 128>}, {transform_indices = @transform_2, window_bounds = array<i64: 1, 1, 4, 16, 128>}, {transform_indices = @transform_3, window_bounds = array<i64: 1, 1, 2, 16, 128>}, {transform_indices = @transform_4, window_bounds = array<i64: 1, 1, 2, 16, 128>}, {transform_indices = @transform_5, window_bounds = array<i64: 1, 1, 2, 16, 128>}, {pipeline_mode = #tpu.pipeline_mode<synchronous>, transform_indices = @transform_6, window_bounds = array<i64: 1152, 384>}, {pipeline_mode = #tpu.pipeline_mode<synchronous>, transform_indices = @transform_7, window_bounds = array<i64: 1, 128>}, {pipeline_mode = #tpu.pipeline_mode<synchronous>, transform_indices = @transform_8, window_bounds = array<i64: 128, 16>}, {pipeline_mode = #tpu.pipeline_mode<synchronous>, transform_indices = @transform_9, window_bounds = array<i64: 1, 16>}, {transform_indices = @transform_10, window_bounds = array<i64: 1, 1, 64, 16>}]} {
    %c0 = arith.constant 0 : index
    %c0_0 = arith.constant 0 : index
    %c0_1 = arith.constant 0 : index
    %c0_2 = arith.constant 0 : index
    %c0_3 = arith.constant 0 : index
    %0 = vector.load %arg3[%c0, %c0_0, %c0_1, %c0_2, %c0_3] : memref<1x1x4x16x128xbf16, #tpu.memory_space<vmem>>, vector<1x1x4x16x128xbf16>
    %1 = vector.shape_cast %0 : vector<1x1x4x16x128xbf16> to vector<4x16x128xbf16>
    %c0_4 = arith.constant 0 : index
    %c0_5 = arith.constant 0 : index
    %c0_6 = arith.constant 0 : index
    %c0_7 = arith.constant 0 : index
    %c0_8 = arith.constant 0 : index
    %2 = vector.load %arg6[%c0_4, %c0_5, %c0_6, %c0_7, %c0_8] : memref<1x1x2x16x128xbf16, #tpu.memory_space<vmem>>, vector<1x1x2x16x128xbf16>
    %3 = vector.shape_cast %2 : vector<1x1x2x16x128xbf16> to vector<2x16x128xbf16>
    %4 = tpu.concatenate %1, %3 in 0 : vector<4x16x128xbf16>, vector<2x16x128xbf16> -> vector<6x16x128xbf16>
    %5 = vector.extract_strided_slice %4 {offsets = [0, 0, 0], sizes = [4, 16, 128], strides = [1, 1, 1]} : vector<6x16x128xbf16> to vector<4x16x128xbf16>
    %6 = vector.shape_cast %5 : vector<4x16x128xbf16> to vector<64x128xbf16>
    %7 = vector.extract_strided_slice %4 {offsets = [1, 0, 0], sizes = [4, 16, 128], strides = [1, 1, 1]} : vector<6x16x128xbf16> to vector<4x16x128xbf16>
    %8 = vector.shape_cast %7 : vector<4x16x128xbf16> to vector<64x128xbf16>
    %9 = vector.extract_strided_slice %4 {offsets = [2, 0, 0], sizes = [4, 16, 128], strides = [1, 1, 1]} : vector<6x16x128xbf16> to vector<4x16x128xbf16>
    %10 = vector.shape_cast %9 : vector<4x16x128xbf16> to vector<64x128xbf16>
    %c0_9 = arith.constant 0 : index
    %c0_10 = arith.constant 0 : index
    %c0_11 = arith.constant 0 : index
    %c0_12 = arith.constant 0 : index
    %c0_13 = arith.constant 0 : index
    %11 = vector.load %arg4[%c0_9, %c0_10, %c0_11, %c0_12, %c0_13] : memref<1x1x4x16x128xbf16, #tpu.memory_space<vmem>>, vector<1x1x4x16x128xbf16>
    %12 = vector.shape_cast %11 : vector<1x1x4x16x128xbf16> to vector<4x16x128xbf16>
    %c0_14 = arith.constant 0 : index
    %c0_15 = arith.constant 0 : index
    %c0_16 = arith.constant 0 : index
    %c0_17 = arith.constant 0 : index
    %c0_18 = arith.constant 0 : index
    %13 = vector.load %arg7[%c0_14, %c0_15, %c0_16, %c0_17, %c0_18] : memref<1x1x2x16x128xbf16, #tpu.memory_space<vmem>>, vector<1x1x2x16x128xbf16>
    %14 = vector.shape_cast %13 : vector<1x1x2x16x128xbf16> to vector<2x16x128xbf16>
    %15 = tpu.concatenate %12, %14 in 0 : vector<4x16x128xbf16>, vector<2x16x128xbf16> -> vector<6x16x128xbf16>
    %16 = vector.extract_strided_slice %15 {offsets = [0, 0, 0], sizes = [4, 16, 128], strides = [1, 1, 1]} : vector<6x16x128xbf16> to vector<4x16x128xbf16>
    %17 = vector.shape_cast %16 : vector<4x16x128xbf16> to vector<64x128xbf16>
    %18 = vector.extract_strided_slice %15 {offsets = [1, 0, 0], sizes = [4, 16, 128], strides = [1, 1, 1]} : vector<6x16x128xbf16> to vector<4x16x128xbf16>
    %19 = vector.shape_cast %18 : vector<4x16x128xbf16> to vector<64x128xbf16>
    %20 = vector.extract_strided_slice %15 {offsets = [2, 0, 0], sizes = [4, 16, 128], strides = [1, 1, 1]} : vector<6x16x128xbf16> to vector<4x16x128xbf16>
    %21 = vector.shape_cast %20 : vector<4x16x128xbf16> to vector<64x128xbf16>
    %c0_19 = arith.constant 0 : index
    %c0_20 = arith.constant 0 : index
    %c0_21 = arith.constant 0 : index
    %c0_22 = arith.constant 0 : index
    %c0_23 = arith.constant 0 : index
    %22 = vector.load %arg5[%c0_19, %c0_20, %c0_21, %c0_22, %c0_23] : memref<1x1x4x16x128xbf16, #tpu.memory_space<vmem>>, vector<1x1x4x16x128xbf16>
    %23 = vector.shape_cast %22 : vector<1x1x4x16x128xbf16> to vector<4x16x128xbf16>
    %c0_24 = arith.constant 0 : index
    %c0_25 = arith.constant 0 : index
    %c0_26 = arith.constant 0 : index
    %c0_27 = arith.constant 0 : index
    %c0_28 = arith.constant 0 : index
    %24 = vector.load %arg8[%c0_24, %c0_25, %c0_26, %c0_27, %c0_28] : memref<1x1x2x16x128xbf16, #tpu.memory_space<vmem>>, vector<1x1x2x16x128xbf16>
    %25 = vector.shape_cast %24 : vector<1x1x2x16x128xbf16> to vector<2x16x128xbf16>
    %26 = tpu.concatenate %23, %25 in 0 : vector<4x16x128xbf16>, vector<2x16x128xbf16> -> vector<6x16x128xbf16>
    %27 = vector.extract_strided_slice %26 {offsets = [0, 0, 0], sizes = [4, 16, 128], strides = [1, 1, 1]} : vector<6x16x128xbf16> to vector<4x16x128xbf16>
    %28 = vector.shape_cast %27 : vector<4x16x128xbf16> to vector<64x128xbf16>
    %29 = vector.extract_strided_slice %26 {offsets = [1, 0, 0], sizes = [4, 16, 128], strides = [1, 1, 1]} : vector<6x16x128xbf16> to vector<4x16x128xbf16>
    %30 = vector.shape_cast %29 : vector<4x16x128xbf16> to vector<64x128xbf16>
    %31 = vector.extract_strided_slice %26 {offsets = [2, 0, 0], sizes = [4, 16, 128], strides = [1, 1, 1]} : vector<6x16x128xbf16> to vector<4x16x128xbf16>
    %32 = vector.shape_cast %31 : vector<4x16x128xbf16> to vector<64x128xbf16>
    %33 = tpu.concatenate %6, %8, %10, %17, %19, %21, %28, %30, %32 in 1 : vector<64x128xbf16>, vector<64x128xbf16>, vector<64x128xbf16>, vector<64x128xbf16>, vector<64x128xbf16>, vector<64x128xbf16>, vector<64x128xbf16>, vector<64x128xbf16>, vector<64x128xbf16> -> vector<64x1152xbf16>
    %c0_29 = arith.constant 0 : index
    %c0_30 = arith.constant 0 : index
    %34 = vector.load %arg9[%c0_29, %c0_30] : memref<1152x384xbf16, #tpu.memory_space<vmem>>, vector<1152x384xbf16>
    %cst = arith.constant dense<0.000000e+00> : vector<64x384xf32>
    %35 = tpu.matmul %33, %34, %cst {dimension_numbers = #tpu.dot_dimension_numbers<[1], [0], [0], [1], [0, 0, 1, 1], [], []>} : vector<64x1152xbf16>, vector<1152x384xbf16>, vector<64x384xf32> -> vector<64x384xf32>
    %36 = vector.extract_strided_slice %35 {offsets = [0, 128], sizes = [64, 256], strides = [1, 1]} : vector<64x384xf32> to vector<64x256xf32>
    %c0_31 = arith.constant 0 : index
    %c0_32 = arith.constant 0 : index
    %37 = vector.load %arg14[%c0_31, %c0_32] : memref<72x256xf32, #tpu.memory_space<vmem>>, vector<64x256xf32>
    tpu.vector_store %arg14[%c0_31, %c0_32], %36 {strides = array<i32>} : memref<72x256xf32, #tpu.memory_space<vmem>>, vector<64x256xf32>,
    %cst_33 = arith.constant 0.000000e+00 : f32
    %38 = vector.broadcast %cst_33 : f32 to vector<8x256xf32>
    %c64 = arith.constant 64 : index
    %c0_34 = arith.constant 0 : index
    %39 = vector.load %arg14[%c64, %c0_34] : memref<72x256xf32, #tpu.memory_space<vmem>>, vector<8x256xf32>
    tpu.vector_store %arg14[%c64, %c0_34], %38 {strides = array<i32>} : memref<72x256xf32, #tpu.memory_space<vmem>>, vector<8x256xf32>,
    %40 = vector.extract_strided_slice %35 {offsets = [0, 0], sizes = [64, 128], strides = [1, 1]} : vector<64x384xf32> to vector<64x128xf32>
    %c1 = arith.constant 1 : index
    %c0_35 = arith.constant 0 : index
    %41 = vector.load %arg14[%c1, %c0_35] : memref<72x256xf32, #tpu.memory_space<vmem>>, vector<64x128xf32>
    %42 = arith.addf %40, %41 : vector<64x128xf32>
    %c2 = arith.constant 2 : index
    %c128 = arith.constant 128 : index
    %43 = vector.load %arg14[%c2, %c128] : memref<72x256xf32, #tpu.memory_space<vmem>>, vector<64x128xf32>
    %44 = arith.addf %42, %43 : vector<64x128xf32>
    %c0_36 = arith.constant 0 : index
    %c0_37 = arith.constant 0 : index
    %45 = vector.load %arg10[%c0_36, %c0_37] : memref<1x128xf32, #tpu.memory_space<vmem>>, vector<1x128xf32>
    %46 = vector.broadcast %45 : vector<1x128xf32> to vector<64x128xf32>
    %47 = arith.addf %44, %46 : vector<64x128xf32>
    %cst_38 = arith.constant 0.000000e+00 : f32
    %48 = vector.broadcast %cst_38 : f32 to vector<64x128xf32>
    %49 = arith.maximumf %47, %48 : vector<64x128xf32>
    %50 = arith.truncf %49 : vector<64x128xf32> to vector<64x128xbf16>
    %c0_39 = arith.constant 0 : index
    %c0_40 = arith.constant 0 : index
    %51 = vector.load %arg11[%c0_39, %c0_40] : memref<128x16xbf16, #tpu.memory_space<vmem>>, vector<128x16xbf16>
    %cst_41 = arith.constant dense<0.000000e+00> : vector<64x16xf32>
    %52 = tpu.matmul %50, %51, %cst_41 {dimension_numbers = #tpu.dot_dimension_numbers<[1], [0], [0], [1], [0, 0, 1, 1], [], []>} : vector<64x128xbf16>, vector<128x16xbf16>, vector<64x16xf32> -> vector<64x16xf32>
    %c0_42 = arith.constant 0 : index
    %c0_43 = arith.constant 0 : index
    %53 = vector.load %arg12[%c0_42, %c0_43] : memref<1x16xf32, #tpu.memory_space<vmem>>, vector<1x16xf32>
    %54 = vector.broadcast %53 : vector<1x16xf32> to vector<64x16xf32>
    %55 = arith.addf %52, %54 : vector<64x16xf32>
    %c0_44 = arith.constant 0 : index
    %c0_45 = arith.constant 0 : index
    %c0_46 = arith.constant 0 : index
    %c0_47 = arith.constant 0 : index
    %56 = vector.load %arg13[%c0_44, %c0_45, %c0_46, %c0_47] : memref<1x1x64x16xf32, #tpu.memory_space<vmem>>, vector<1x1x64x16xf32>
    %57 = vector.shape_cast %56 : vector<1x1x64x16xf32> to vector<64x16xf32>
    %58 = vector.shape_cast %55 : vector<64x16xf32> to vector<1x1x64x16xf32>
    tpu.vector_store %arg13[%c0_44, %c0_45, %c0_46, %c0_47], %58 {strides = array<i32>} : memref<1x1x64x16xf32, #tpu.memory_space<vmem>>, vector<1x1x64x16xf32>,
    return
  }
  func.func @transform_0(%arg0: i32, %arg1: i32, %arg2: i32) -> (i32, i32, i32, i32, i32) {
    %c0_i32 = arith.constant 0 : i32
    %0 = arith.addi %arg1, %c0_i32 : i32
    %c0_i32_0 = arith.constant 0 : i32
    %c0_i32_1 = arith.constant 0 : i32
    %c0_i32_2 = arith.constant 0 : i32
    return %arg0, %0, %arg2, %c0_i32_0, %c0_i32_1 : i32, i32, i32, i32, i32
  }
  func.func @transform_1(%arg0: i32, %arg1: i32, %arg2: i32) -> (i32, i32, i32, i32, i32) {
    %c1_i32 = arith.constant 1 : i32
    %0 = arith.addi %arg1, %c1_i32 : i32
    %c0_i32 = arith.constant 0 : i32
    %c0_i32_0 = arith.constant 0 : i32
    %c0_i32_1 = arith.constant 0 : i32
    return %arg0, %0, %arg2, %c0_i32, %c0_i32_0 : i32, i32, i32, i32, i32
  }
  func.func @transform_2(%arg0: i32, %arg1: i32, %arg2: i32) -> (i32, i32, i32, i32, i32) {
    %c2_i32 = arith.constant 2 : i32
    %0 = arith.addi %arg1, %c2_i32 : i32
    %c0_i32 = arith.constant 0 : i32
    %c0_i32_0 = arith.constant 0 : i32
    %c0_i32_1 = arith.constant 0 : i32
    return %arg0, %0, %arg2, %c0_i32, %c0_i32_0 : i32, i32, i32, i32, i32
  }
  func.func @transform_3(%arg0: i32, %arg1: i32, %arg2: i32) -> (i32, i32, i32, i32, i32) {
    %c0_i32 = arith.constant 0 : i32
    %0 = arith.addi %arg1, %c0_i32 : i32
    %c1_i32 = arith.constant 1 : i32
    %1 = arith.addi %arg2, %c1_i32 : i32
    %c2_i32 = arith.constant 2 : i32
    %2 = arith.muli %1, %c2_i32 : i32
    %c0_i32_0 = arith.constant 0 : i32
    %c0_i32_1 = arith.constant 0 : i32
    %c0_i32_2 = arith.constant 0 : i32
    return %arg0, %0, %2, %c0_i32_0, %c0_i32_1 : i32, i32, i32, i32, i32
  }
  func.func @transform_4(%arg0: i32, %arg1: i32, %arg2: i32) -> (i32, i32, i32, i32, i32) {
    %c1_i32 = arith.constant 1 : i32
    %0 = arith.addi %arg1, %c1_i32 : i32
    %c1_i32_0 = arith.constant 1 : i32
    %1 = arith.addi %arg2, %c1_i32_0 : i32
    %c2_i32 = arith.constant 2 : i32
    %2 = arith.muli %1, %c2_i32 : i32
    %c0_i32 = arith.constant 0 : i32
    %c0_i32_1 = arith.constant 0 : i32
    %c0_i32_2 = arith.constant 0 : i32
    return %arg0, %0, %2, %c0_i32, %c0_i32_1 : i32, i32, i32, i32, i32
  }
  func.func @transform_5(%arg0: i32, %arg1: i32, %arg2: i32) -> (i32, i32, i32, i32, i32) {
    %c2_i32 = arith.constant 2 : i32
    %0 = arith.addi %arg1, %c2_i32 : i32
    %c1_i32 = arith.constant 1 : i32
    %1 = arith.addi %arg2, %c1_i32 : i32
    %c2_i32_0 = arith.constant 2 : i32
    %2 = arith.muli %1, %c2_i32_0 : i32
    %c0_i32 = arith.constant 0 : i32
    %c0_i32_1 = arith.constant 0 : i32
    %c0_i32_2 = arith.constant 0 : i32
    return %arg0, %0, %2, %c0_i32, %c0_i32_1 : i32, i32, i32, i32, i32
  }
  func.func @transform_6(%arg0: i32, %arg1: i32, %arg2: i32) -> (i32, i32) {
    %c0_i32 = arith.constant 0 : i32
    %c0_i32_0 = arith.constant 0 : i32
    %c0_i32_1 = arith.constant 0 : i32
    return %c0_i32, %c0_i32_0 : i32, i32
  }
  func.func @transform_7(%arg0: i32, %arg1: i32, %arg2: i32) -> (i32, i32) {
    %c0_i32 = arith.constant 0 : i32
    %c0_i32_0 = arith.constant 0 : i32
    %c0_i32_1 = arith.constant 0 : i32
    return %c0_i32, %c0_i32_0 : i32, i32
  }
  func.func @transform_8(%arg0: i32, %arg1: i32, %arg2: i32) -> (i32, i32) {
    %c0_i32 = arith.constant 0 : i32
    %c0_i32_0 = arith.constant 0 : i32
    %c0_i32_1 = arith.constant 0 : i32
    return %c0_i32, %c0_i32_0 : i32, i32
  }
  func.func @transform_9(%arg0: i32, %arg1: i32, %arg2: i32) -> (i32, i32) {
    %c0_i32 = arith.constant 0 : i32
    %c0_i32_0 = arith.constant 0 : i32
    %c0_i32_1 = arith.constant 0 : i32
    return %c0_i32, %c0_i32_0 : i32, i32
  }
  func.func @transform_10(%arg0: i32, %arg1: i32, %arg2: i32) -> (i32, i32, i32, i32) {
    %c0_i32 = arith.constant 0 : i32
    %c0_i32_0 = arith.constant 0 : i32
    return %arg0, %arg1, %arg2, %c0_i32 : i32, i32, i32, i32
  }
}

</mosaic_0001>

<llo_original>
// kernel: heatmap_head.1
$region0: #{heatmap_head.1}
  #allocation0 [shape = 'u32[]', space=smem, size = 0x4, offset = 0x4, fixed_abs, tag = 'smem constant byte address 0x4 - core index']
  #allocation1 [shape = 'u32[144,128]{1,0:T(1,128)}', space=vmem, size = 0x12000, scoped, tag = 'internal scratch']
  #allocation2 [shape = 'f32[72,256]{1,0:T(8,128)}', space=vmem, size = 0x12000, scoped, tag = 'scratch operand']
  %s0 = inlined_call_operand.vmem [shape: bf16[2,6,8,16,128], index: 0, kind: input, shape index: {}, may-alias: {0,1,2,3,4,5}]
  %s1 = inlined_call_operand.vmem [shape: bf16[2,6,8,16,128], index: 1, kind: input, shape index: {}, may-alias: {0,1,2,3,4,5}]
  %s2 = inlined_call_operand.vmem [shape: bf16[2,6,8,16,128], index: 2, kind: input, shape index: {}, may-alias: {0,1,2,3,4,5}]
  %s3 = inlined_call_operand.vmem [shape: bf16[2,6,8,16,128], index: 3, kind: input, shape index: {}, may-alias: {0,1,2,3,4,5}]
  %s4 = inlined_call_operand.vmem [shape: bf16[2,6,8,16,128], index: 4, kind: input, shape index: {}, may-alias: {0,1,2,3,4,5}]
  %s5 = inlined_call_operand.vmem [shape: bf16[2,6,8,16,128], index: 5, kind: input, shape index: {}, may-alias: {0,1,2,3,4,5}]
  %s6 = inlined_call_operand.vmem [shape: bf16[1152,384], index: 6, kind: input, shape index: {}]
  %s7 = inlined_call_operand.vmem [shape: f32[1,128], index: 7, kind: input, shape index: {}]
  %s8 = inlined_call_operand.vmem [shape: bf16[128,16], index: 8, kind: input, shape index: {}]
  %s9 = inlined_call_operand.vmem [shape: f32[1,16], index: 9, kind: input, shape index: {}]
  %s10 = inlined_call_operand.vmem [shape: f32[2,4,64,16], index: 10, kind: output, shape index: {}]
  %s11 = sld [smem:[#allocation0]]
  $region73: #{heatmap_head.1} parent=0
    _
  %s13 = ssub.s32 1, %s11
  %s14 = scalar_select 0, %s13, %s11
  loop: start=0, step=1, limit=10
  $region2: #{heatmap_head.1} parent=0 // loop_pre_header
    _
  $region3: #{heatmap_head.1} parent=0 // loop_header
    %s16 = sphi 0, %s20
    %p17 = scmp.ge.s32.totalorder %s16, 10
    %s23 = sphi 0, %s42
    %s24 = sphi 0, %s38
    %s25 = sphi 0, %s34
    %s26 = sphi 0, %s23
    %s27 = sphi 0, %s24
    %s28 = sphi 0, %s25
    %s29 = sphi 0, %s26
    %s30 = sphi 0, %s27
    %s31 = sphi 0, %s28
    %s49 = sphi 0, %s51
    %s52 = sphi 0, %s49
    %s53 = sphi 0, %s52
    %s69 = sphi 0, %s53
    %s81 = sphi 0, %s83
    %s84 = sphi 0, %s81
    %s85 = sphi 0, %s84
    %s101 = sphi 0, %s85
    %s113 = sphi 0, %s115
    %s116 = sphi 0, %s113
    %s117 = sphi 0, %s116
    %s133 = sphi 0, %s117
    %s147 = sphi 0, %s149
    %s150 = sphi 0, %s147
    %s151 = sphi 0, %s150
    %s167 = sphi 0, %s151
    %s183 = sphi 0, %s185
    %s186 = sphi 0, %s183
    %s187 = sphi 0, %s186
    %s203 = sphi 0, %s187
    %s219 = sphi 0, %s221
    %s222 = sphi 0, %s219
    %s223 = sphi 0, %s222
    %s239 = sphi 0, %s223
    %s243 = sphi 0, %s243
    %s245 = sphi 0, %s243
    %s246 = sphi 0, %s245
    %s260 = sphi 0, %s246
    %s264 = sphi 0, %s264
    %s266 = sphi 0, %s264
    %s267 = sphi 0, %s266
    %s281 = sphi 0, %s267
    %s285 = sphi 0, %s285
    %s287 = sphi 0, %s285
    %s288 = sphi 0, %s287
    %s302 = sphi 0, %s288
    %s306 = sphi 0, %s306
    %s308 = sphi 0, %s306
    %s309 = sphi 0, %s308
    %s323 = sphi 0, %s309
    %s333 = sphi 0, %s335
    %s336 = sphi 0, %s333
    %s337 = sphi 0, %s336
    %s353 = sphi 0, %s337
  $region4: #{heatmap_head.1} parent=0 // loop_header_branch
    %19 = sbr.rel (%p17) target = $region8
  $region5: #{heatmap_head.1} parent=0 // loop_body
    %s21 = ssub.s32 %s16, 1
    %s22 = ssub.s32 %s16, 2
    %s32 = sadd.s32 1, %s25
    %p33 = scmp.ge.s32.totalorder %s32, 1
    %s34 = scalar_select %p33, 0, %s32
    %s35 = sadd.s32 1, %s24
    %s36 = scalar_select %p33, %s35, %s24
    %p37 = scmp.ge.s32.totalorder %s36, 4
    %s38 = scalar_select %p37, 0, %s36
    %s39 = sadd.s32 1, %s23
    %s40 = scalar_select %p37, %s39, %s23
    %p41 = scmp.ge.s32.totalorder %s40, 2
    %s42 = scalar_select %p41, 0, %s40
    %s43 = ssub.s32 %s23, %s42
    %s44 = ssub.s32 %s24, %s38
    %s45 = sor.u32 %s43, %s44
    %s46 = ssub.s32 %s25, %s34
    %s47 = sor.u32 %s45, %s46
    %p48 = scmp.eq.s32.totalorder %s47, 0
    %s50 = sadd.s32 %s49, 1
    %s51 = scalar_select %p48, %s49, %s50
    %p54 = pneg %p48
    %p55 = scmp.eq.s32.totalorder %s16, 7
    %p56 = por %p54, %p55
    %p57 = scmp.ne.s32.totalorder %s49, %s52
    %p58 = scmp.eq.s32.totalorder %s16, 0
    %p59 = por %p57, %p58
    %p60 = scmp.ne.s32.totalorder %s49, %s52
    %p61 = scmp.eq.s32.totalorder %s21, 7
    %p62 = por %p60, %p61
    %p63 = scmp.ne.s32.totalorder %s52, %s53
    %p64 = scmp.eq.s32.totalorder %s21, 0
    %p65 = por %p63, %p64
    %p66 = scmp.ne.s32.totalorder %s52, %s53
    %p67 = scmp.eq.s32.totalorder %s22, 7
    %p68 = por %p66, %p67
    %p70 = scmp.ne.s32.totalorder %s53, %s69
    %p71 = scmp.eq.s32.totalorder %s22, 0
    %p72 = por %p70, %p71
    %s73 = sadd.s32 %s24, 1
    %s74 = sadd.s32 %s38, 1
    %s75 = ssub.s32 %s23, %s42
    %s76 = ssub.s32 %s73, %s74
    %s77 = sor.u32 %s75, %s76
    %s78 = ssub.s32 %s25, %s34
    %s79 = sor.u32 %s77, %s78
    %p80 = scmp.eq.s32.totalorder %s79, 0
    %s82 = sadd.s32 %s81, 1
    %s83 = scalar_select %p80, %s81, %s82
    %p86 = pneg %p80
    %p87 = scmp.eq.s32.totalorder %s16, 7
    %p88 = por %p86, %p87
    %p89 = scmp.ne.s32.totalorder %s81, %s84
    %p90 = scmp.eq.s32.totalorder %s16, 0
    %p91 = por %p89, %p90
    %p92 = scmp.ne.s32.totalorder %s81, %s84
    %p93 = scmp.eq.s32.totalorder %s21, 7
    %p94 = por %p92, %p93
    %p95 = scmp.ne.s32.totalorder %s84, %s85
    %p96 = scmp.eq.s32.totalorder %s21, 0
    %p97 = por %p95, %p96
    %p98 = scmp.ne.s32.totalorder %s84, %s85
    %p99 = scmp.eq.s32.totalorder %s22, 7
    %p100 = por %p98, %p99
    %p102 = scmp.ne.s32.totalorder %s85, %s101
    %p103 = scmp.eq.s32.totalorder %s22, 0
    %p104 = por %p102, %p103
    %s105 = sadd.s32 %s24, 2
    %s106 = sadd.s32 %s38, 2
    %s107 = ssub.s32 %s23, %s42
    %s108 = ssub.s32 %s105, %s106
    %s109 = sor.u32 %s107, %s108
    %s110 = ssub.s32 %s25, %s34
    %s111 = sor.u32 %s109, %s110
    %p112 = scmp.eq.s32.totalorder %s111, 0
    %s114 = sadd.s32 %s113, 1
    %s115 = scalar_select %p112, %s113, %s114
    %p118 = pneg %p112
    %p119 = scmp.eq.s32.totalorder %s16, 7
    %p120 = por %p118, %p119
    %p121 = scmp.ne.s32.totalorder %s113, %s116
    %p122 = scmp.eq.s32.totalorder %s16, 0
    %p123 = por %p121, %p122
    %p124 = scmp.ne.s32.totalorder %s113, %s116
    %p125 = scmp.eq.s32.totalorder %s21, 7
    %p126 = por %p124, %p125
    %p127 = scmp.ne.s32.totalorder %s116, %s117
    %p128 = scmp.eq.s32.totalorder %s21, 0
    %p129 = por %p127, %p128
    %p130 = scmp.ne.s32.totalorder %s116, %s117
    %p131 = scmp.eq.s32.totalorder %s22, 7
    %p132 = por %p130, %p131
    %p134 = scmp.ne.s32.totalorder %s117, %s133
    %p135 = scmp.eq.s32.totalorder %s22, 0
    %p136 = por %p134, %p135
    %s137 = sadd.s32 %s25, 1
    %s138 = smul.u32 %s137, 2
    %s139 = sadd.s32 %s34, 1
    %s140 = smul.u32 %s139, 2
    %s141 = ssub.s32 %s23, %s42
    %s142 = ssub.s32 %s24, %s38
    %s143 = sor.u32 %s141, %s142
    %s144 = ssub.s32 %s138, %s140
    %s145 = sor.u32 %s143, %s144
    %p146 = scmp.eq.s32.totalorder %s145, 0
    %s148 = sadd.s32 %s147, 1
    %s149 = scalar_select %p146, %s147, %s148
    %p152 = pneg %p146
    %p153 = scmp.eq.s32.totalorder %s16, 7
    %p154 = por %p152, %p153
    %p155 = scmp.ne.s32.totalorder %s147, %s150
    %p156 = scmp.eq.s32.totalorder %s16, 0
    %p157 = por %p155, %p156
    %p158 = scmp.ne.s32.totalorder %s147, %s150
    %p159 = scmp.eq.s32.totalorder %s21, 7
    %p160 = por %p158, %p159
    %p161 = scmp.ne.s32.totalorder %s150, %s151
    %p162 = scmp.eq.s32.totalorder %s21, 0
    %p163 = por %p161, %p162
    %p164 = scmp.ne.s32.totalorder %s150, %s151
    %p165 = scmp.eq.s32.totalorder %s22, 7
    %p166 = por %p164, %p165
    %p168 = scmp.ne.s32.totalorder %s151, %s167
    %p169 = scmp.eq.s32.totalorder %s22, 0
    %p170 = por %p168, %p169
    %s171 = sadd.s32 %s24, 1
    %s172 = sadd.s32 %s25, 1
    %s173 = smul.u32 %s172, 2
    %s174 = sadd.s32 %s38, 1
    %s175 = sadd.s32 %s34, 1
    %s176 = smul.u32 %s175, 2
    %s177 = ssub.s32 %s23, %s42
    %s178 = ssub.s32 %s171, %s174
    %s179 = sor.u32 %s177, %s178
    %s180 = ssub.s32 %s173, %s176
    %s181 = sor.u32 %s179, %s180
    %p182 = scmp.eq.s32.totalorder %s181, 0
    %s184 = sadd.s32 %s183, 1
    %s185 = scalar_select %p182, %s183, %s184
    %p188 = pneg %p182
    %p189 = scmp.eq.s32.totalorder %s16, 7
    %p190 = por %p188, %p189
    %p191 = scmp.ne.s32.totalorder %s183, %s186
    %p192 = scmp.eq.s32.totalorder %s16, 0
    %p193 = por %p191, %p192
    %p194 = scmp.ne.s32.totalorder %s183, %s186
    %p195 = scmp.eq.s32.totalorder %s21, 7
    %p196 = por %p194, %p195
    %p197 = scmp.ne.s32.totalorder %s186, %s187
    %p198 = scmp.eq.s32.totalorder %s21, 0
    %p199 = por %p197, %p198
    %p200 = scmp.ne.s32.totalorder %s186, %s187
    %p201 = scmp.eq.s32.totalorder %s22, 7
    %p202 = por %p200, %p201
    %p204 = scmp.ne.s32.totalorder %s187, %s203
    %p205 = scmp.eq.s32.totalorder %s22, 0
    %p206 = por %p204, %p205
    %s207 = sadd.s32 %s24, 2
    %s208 = sadd.s32 %s25, 1
    %s209 = smul.u32 %s208, 2
    %s210 = sadd.s32 %s38, 2
    %s211 = sadd.s32 %s34, 1
    %s212 = smul.u32 %s211, 2
    %s213 = ssub.s32 %s23, %s42
    %s214 = ssub.s32 %s207, %s210
    %s215 = sor.u32 %s213, %s214
    %s216 = ssub.s32 %s209, %s212
    %s217 = sor.u32 %s215, %s216
    %p218 = scmp.eq.s32.totalorder %s217, 0
    %s220 = sadd.s32 %s219, 1
    %s221 = scalar_select %p218, %s219, %s220
    %p224 = pneg %p218
    %p225 = scmp.eq.s32.totalorder %s16, 7
    %p226 = por %p224, %p225
    %p227 = scmp.ne.s32.totalorder %s219, %s222
    %p228 = scmp.eq.s32.totalorder %s16, 0
    %p229 = por %p227, %p228
    %p230 = scmp.ne.s32.totalorder %s219, %s222
    %p231 = scmp.eq.s32.totalorder %s21, 7
    %p232 = por %p230, %p231
    %p233 = scmp.ne.s32.totalorder %s222, %s223
    %p234 = scmp.eq.s32.totalorder %s21, 0
    %p235 = por %p233, %p234
    %p236 = scmp.ne.s32.totalorder %s222, %s223
    %p237 = scmp.eq.s32.totalorder %s22, 7
    %p238 = por %p236, %p237
    %p240 = scmp.ne.s32.totalorder %s223, %s239
    %p241 = scmp.eq.s32.totalorder %s22, 0
    %p242 = por %p240, %p241
    %s244 = sadd.s32 %s243, 1
    %p247 = scmp.eq.s32.totalorder %s16, 7
    %p248 = scmp.ne.s32.totalorder %s243, %s245
    %p249 = scmp.eq.s32.totalorder %s16, 0
    %p250 = por %p248, %p249
    %p251 = scmp.ne.s32.totalorder %s243, %s245
    %p252 = scmp.eq.s32.totalorder %s21, 7
    %p253 = por %p251, %p252
    %p254 = scmp.ne.s32.totalorder %s245, %s246
    %p255 = scmp.eq.s32.totalorder %s21, 0
    %p256 = por %p254, %p255
    %p257 = scmp.ne.s32.totalorder %s245, %s246
    %p258 = scmp.eq.s32.totalorder %s22, 7
    %p259 = por %p257, %p258
    %p261 = scmp.ne.s32.totalorder %s246, %s260
    %p262 = scmp.eq.s32.totalorder %s22, 0
    %p263 = por %p261, %p262
    %s265 = sadd.s32 %s264, 1
    %p268 = scmp.eq.s32.totalorder %s16, 7
    %p269 = scmp.ne.s32.totalorder %s264, %s266
    %p270 = scmp.eq.s32.totalorder %s16, 0
    %p271 = por %p269, %p270
    %p272 = scmp.ne.s32.totalorder %s264, %s266
    %p273 = scmp.eq.s32.totalorder %s21, 7
    %p274 = por %p272, %p273
    %p275 = scmp.ne.s32.totalorder %s266, %s267
    %p276 = scmp.eq.s32.totalorder %s21, 0
    %p277 = por %p275, %p276
    %p278 = scmp.ne.s32.totalorder %s266, %s267
    %p279 = scmp.eq.s32.totalorder %s22, 7
    %p280 = por %p278, %p279
    %p282 = scmp.ne.s32.totalorder %s267, %s281
    %p283 = scmp.eq.s32.totalorder %s22, 0
    %p284 = por %p282, %p283
    %s286 = sadd.s32 %s285, 1
    %p289 = scmp.eq.s32.totalorder %s16, 7
    %p290 = scmp.ne.s32.totalorder %s285, %s287
    %p291 = scmp.eq.s32.totalorder %s16, 0
    %p292 = por %p290, %p291
    %p293 = scmp.ne.s32.totalorder %s285, %s287
    %p294 = scmp.eq.s32.totalorder %s21, 7
    %p295 = por %p293, %p294
    %p296 = scmp.ne.s32.totalorder %s287, %s288
    %p297 = scmp.eq.s32.totalorder %s21, 0
    %p298 = por %p296, %p297
    %p299 = scmp.ne.s32.totalorder %s287, %s288
    %p300 = scmp.eq.s32.totalorder %s22, 7
    %p301 = por %p299, %p300
    %p303 = scmp.ne.s32.totalorder %s288, %s302
    %p304 = scmp.eq.s32.totalorder %s22, 0
    %p305 = por %p303, %p304
    %s307 = sadd.s32 %s306, 1
    %p310 = scmp.eq.s32.totalorder %s16, 7
    %p311 = scmp.ne.s32.totalorder %s306, %s308
    %p312 = scmp.eq.s32.totalorder %s16, 0
    %p313 = por %p311, %p312
    %p314 = scmp.ne.s32.totalorder %s306, %s308
    %p315 = scmp.eq.s32.totalorder %s21, 7
    %p316 = por %p314, %p315
    %p317 = scmp.ne.s32.totalorder %s308, %s309
    %p318 = scmp.eq.s32.totalorder %s21, 0
    %p319 = por %p317, %p318
    %p320 = scmp.ne.s32.totalorder %s308, %s309
    %p321 = scmp.eq.s32.totalorder %s22, 7
    %p322 = por %p320, %p321
    %p324 = scmp.ne.s32.totalorder %s309, %s323
    %p325 = scmp.eq.s32.totalorder %s22, 0
    %p326 = por %p324, %p325
    %s327 = ssub.s32 %s23, %s42
    %s328 = ssub.s32 %s24, %s38
    %s329 = sor.u32 %s327, %s328
    %s330 = ssub.s32 %s25, %s34
    %s331 = sor.u32 %s329, %s330
    %p332 = scmp.eq.s32.totalorder %s331, 0
    %s334 = sadd.s32 %s333, 1
    %s335 = scalar_select %p332, %s333, %s334
    %p338 = pneg %p332
    %p339 = scmp.eq.s32.totalorder %s16, 7
    %p340 = por %p338, %p339
    %p341 = scmp.ne.s32.totalorder %s333, %s336
    %p342 = scmp.eq.s32.totalorder %s16, 0
    %p343 = por %p341, %p342
    %p344 = scmp.ne.s32.totalorder %s333, %s336
    %p345 = scmp.eq.s32.totalorder %s21, 7
    %p346 = por %p344, %p345
    %p347 = scmp.ne.s32.totalorder %s336, %s337
    %p348 = scmp.eq.s32.totalorder %s21, 0
    %p349 = por %p347, %p348
    %p350 = scmp.ne.s32.totalorder %s336, %s337
    %p351 = scmp.eq.s32.totalorder %s22, 7
    %p352 = por %p350, %p351
    %p354 = scmp.ne.s32.totalorder %s337, %s353
    %p355 = scmp.eq.s32.totalorder %s22, 0
    %p356 = por %p354, %p355
    %p357 = scmp.le.s32.totalorder 1, %s16
    %p358 = scmp.lt.s32.totalorder %s16, 9
    %p359 = pnand %p357, %p358
    %p360 = pneg %p359
    // Predicated region
    $region9: #{heatmap_head.1} parent=5 // pred_check
      _
    $region10: #{heatmap_head.1} parent=5 // pred_check_branch
      %362 = sbr.rel (%p359) target = $region12
    $region11: #{heatmap_head.1} parent=5 // pred_region
      %s363 = ssub.s32 %s16, 1
      // Predicated region
      $region13: #{heatmap_head.1} parent=11 // pred_check
        %p364 = pneg %p256
      $region14: #{heatmap_head.1} parent=11 // pred_check_branch
        %366 = sbr.rel (%p364) target = $region16
      $region15: #{heatmap_head.1} parent=11 // pred_region
        _
      $region16: #{heatmap_head.1} parent=11 // pred_fallthru
        _
      // Predicated region
      $region17: #{heatmap_head.1} parent=11 // pred_check
        %p367 = pneg %p277
      $region18: #{heatmap_head.1} parent=11 // pred_check_branch
        %369 = sbr.rel (%p367) target = $region20
      $region19: #{heatmap_head.1} parent=11 // pred_region
        _
      $region20: #{heatmap_head.1} parent=11 // pred_fallthru
        _
      // Predicated region
      $region21: #{heatmap_head.1} parent=11 // pred_check
        %p370 = pneg %p298
      $region22: #{heatmap_head.1} parent=11 // pred_check_branch
        %372 = sbr.rel (%p370) target = $region24
      $region23: #{heatmap_head.1} parent=11 // pred_region
        _
      $region24: #{heatmap_head.1} parent=11 // pred_fallthru
        _
      // Predicated region
      $region25: #{heatmap_head.1} parent=11 // pred_check
        %p373 = pneg %p319
      $region26: #{heatmap_head.1} parent=11 // pred_check_branch
        %375 = sbr.rel (%p373) target = $region28
      $region27: #{heatmap_head.1} parent=11 // pred_region
        _
      $region28: #{heatmap_head.1} parent=11 // pred_fallthru
        _
    $region12: #{heatmap_head.1} parent=5 // pred_fallthru
      _
    %p376 = scmp.lt.s32.totalorder %s16, 8
    // Predicated region
    $region29: #{heatmap_head.1} parent=5 // pred_check
      %p377 = pneg %p376
    $region30: #{heatmap_head.1} parent=5 // pred_check_branch
      %379 = sbr.rel (%p377) target = $region32
    $region31: #{heatmap_head.1} parent=5 // pred_region
      // Predicated region
      $region33: #{heatmap_head.1} parent=31 // pred_check
        %p380 = pneg %p59
      $region34: #{heatmap_head.1} parent=31 // pred_check_branch
        %382 = sbr.rel (%p380) target = $region36
      $region35: #{heatmap_head.1} parent=31 // pred_region
        %s383 = smul.u32 4, %s25
        %p384 = scmp.lt.s32.totalorder %s23, 1
        %s385 = scalar_select %p384, %s23, 1
        %p386 = scmp.lt.s32.totalorder %s24, 5
        %s387 = scalar_select %p386, %s24, 5
        %p388 = scmp.lt.s32.totalorder %s383, 7
        %s389 = scalar_select %p388, %s383, 7
        %s390 = smul.addr %s389, 2
        %s391 = smul.addr %s387, 16
        %s392 = sadd.s32 %s390, %s391
        %s393 = smul.addr %s385, 96
        %s394 = sadd.s32 %s392, %s393
        %s395 = smul.addr %s394, 4
        %s396 = scalar_lea.vmem %s0, %s395
        %s397 = smul.u32 4, %s25
      $region36: #{heatmap_head.1} parent=31 // pred_fallthru
        _
      // Predicated region
      $region37: #{heatmap_head.1} parent=31 // pred_check
        %p398 = pneg %p91
      $region38: #{heatmap_head.1} parent=31 // pred_check_branch
        %400 = sbr.rel (%p398) target = $region40
      $region39: #{heatmap_head.1} parent=31 // pred_region
        %s401 = sadd.s32 %s24, 1
        %s402 = smul.u32 4, %s25
        %p403 = scmp.lt.s32.totalorder %s23, 1
        %s404 = scalar_select %p403, %s23, 1
        %p405 = scmp.lt.s32.totalorder %s401, 5
        %s406 = scalar_select %p405, %s401, 5
        %p407 = scmp.lt.s32.totalorder %s402, 7
        %s408 = scalar_select %p407, %s402, 7
        %s409 = smul.addr %s408, 2
        %s410 = smul.addr %s406, 16
        %s411 = sadd.s32 %s409, %s410
        %s412 = smul.addr %s404, 96
        %s413 = sadd.s32 %s411, %s412
        %s414 = smul.addr %s413, 4
        %s415 = scalar_lea.vmem %s1, %s414
        %s416 = sadd.s32 %s24, 1
        %s417 = smul.u32 4, %s25
      $region40: #{heatmap_head.1} parent=31 // pred_fallthru
        _
      // Predicated region
      $region41: #{heatmap_head.1} parent=31 // pred_check
        %p418 = pneg %p123
      $region42: #{heatmap_head.1} parent=31 // pred_check_branch
        %420 = sbr.rel (%p418) target = $region44
      $region43: #{heatmap_head.1} parent=31 // pred_region
        %s421 = sadd.s32 %s24, 2
        %s422 = smul.u32 4, %s25
        %p423 = scmp.lt.s32.totalorder %s23, 1
        %s424 = scalar_select %p423, %s23, 1
        %p425 = scmp.lt.s32.totalorder %s421, 5
        %s426 = scalar_select %p425, %s421, 5
        %p427 = scmp.lt.s32.totalorder %s422, 7
        %s428 = scalar_select %p427, %s422, 7
        %s429 = smul.addr %s428, 2
        %s430 = smul.addr %s426, 16
        %s431 = sadd.s32 %s429, %s430
        %s432 = smul.addr %s424, 96
        %s433 = sadd.s32 %s431, %s432
        %s434 = smul.addr %s433, 4
        %s435 = scalar_lea.vmem %s2, %s434
        %s436 = sadd.s32 %s24, 2
        %s437 = smul.u32 4, %s25
      $region44: #{heatmap_head.1} parent=31 // pred_fallthru
        _
      // Predicated region
      $region45: #{heatmap_head.1} parent=31 // pred_check
        %p438 = pneg %p157
      $region46: #{heatmap_head.1} parent=31 // pred_check_branch
        %440 = sbr.rel (%p438) target = $region48
      $region47: #{heatmap_head.1} parent=31 // pred_region
        %s441 = sadd.s32 %s25, 1
        %s442 = smul.u32 %s441, 2
        %s443 = smul.u32 2, %s442
        %p444 = scmp.lt.s32.totalorder %s23, 1
        %s445 = scalar_select %p444, %s23, 1
        %p446 = scmp.lt.s32.totalorder %s24, 5
        %s447 = scalar_select %p446, %s24, 5
        %p448 = scmp.lt.s32.totalorder %s443, 7
        %s449 = scalar_select %p448, %s443, 7
        %s450 = smul.addr %s449, 2
        %s451 = smul.addr %s447, 16
        %s452 = sadd.s32 %s450, %s451
        %s453 = smul.addr %s445, 96
        %s454 = sadd.s32 %s452, %s453
        %s455 = smul.addr %s454, 4
        %s456 = scalar_lea.vmem %s3, %s455
        %s457 = sadd.s32 %s25, 1
        %s458 = smul.u32 %s457, 2
        %s459 = smul.u32 2, %s458
      $region48: #{heatmap_head.1} parent=31 // pred_fallthru
        _
      // Predicated region
      $region49: #{heatmap_head.1} parent=31 // pred_check
        %p460 = pneg %p193
      $region50: #{heatmap_head.1} parent=31 // pred_check_branch
        %462 = sbr.rel (%p460) target = $region52
      $region51: #{heatmap_head.1} parent=31 // pred_region
        %s463 = sadd.s32 %s24, 1
        %s464 = sadd.s32 %s25, 1
        %s465 = smul.u32 %s464, 2
        %s466 = smul.u32 2, %s465
        %p467 = scmp.lt.s32.totalorder %s23, 1
        %s468 = scalar_select %p467, %s23, 1
        %p469 = scmp.lt.s32.totalorder %s463, 5
        %s470 = scalar_select %p469, %s463, 5
        %p471 = scmp.lt.s32.totalorder %s466, 7
        %s472 = scalar_select %p471, %s466, 7
        %s473 = smul.addr %s472, 2
        %s474 = smul.addr %s470, 16
        %s475 = sadd.s32 %s473, %s474
        %s476 = smul.addr %s468, 96
        %s477 = sadd.s32 %s475, %s476
        %s478 = smul.addr %s477, 4
        %s479 = scalar_lea.vmem %s4, %s478
        %s480 = sadd.s32 %s24, 1
        %s481 = sadd.s32 %s25, 1
        %s482 = smul.u32 %s481, 2
        %s483 = smul.u32 2, %s482
      $region52: #{heatmap_head.1} parent=31 // pred_fallthru
        _
      // Predicated region
      $region53: #{heatmap_head.1} parent=31 // pred_check
        %p484 = pneg %p229
      $region54: #{heatmap_head.1} parent=31 // pred_check_branch
        %486 = sbr.rel (%p484) target = $region56
      $region55: #{heatmap_head.1} parent=31 // pred_region
        %s487 = sadd.s32 %s24, 2
        %s488 = sadd.s32 %s25, 1
        %s489 = smul.u32 %s488, 2
        %s490 = smul.u32 2, %s489
        %p491 = scmp.lt.s32.totalorder %s23, 1
        %s492 = scalar_select %p491, %s23, 1
        %p493 = scmp.lt.s32.totalorder %s487, 5
        %s494 = scalar_select %p493, %s487, 5
        %p495 = scmp.lt.s32.totalorder %s490, 7
        %s496 = scalar_select %p495, %s490, 7
        %s497 = smul.addr %s496, 2
        %s498 = smul.addr %s494, 16
        %s499 = sadd.s32 %s497, %s498
        %s500 = smul.addr %s492, 96
        %s501 = sadd.s32 %s499, %s500
        %s502 = smul.addr %s501, 4
        %s503 = scalar_lea.vmem %s5, %s502
        %s504 = sadd.s32 %s24, 2
        %s505 = sadd.s32 %s25, 1
        %s506 = smul.u32 %s505, 2
        %s507 = smul.u32 2, %s506
      $region56: #{heatmap_head.1} parent=31 // pred_fallthru
        _
    $region32: #{heatmap_head.1} parent=5 // pred_fallthru
      _
    %p508 = scmp.le.s32.totalorder 1, %s16
    %p509 = scmp.lt.s32.totalorder %s16, 9
    %p510 = pnand %p508, %p509
    %p511 = pneg %p510
    // Predicated region
    $region57: #{heatmap_head.1} parent=5 // pred_check
      _
    $region58: #{heatmap_head.1} parent=5 // pred_check_branch
      %513 = sbr.rel (%p510) target = $region60
    $region59: #{heatmap_head.1} parent=5 // pred_region
      %s514 = ssub.s32 %s16, 1
      %s515 = smul.u32 4, %s28
      %p516 = scmp.lt.s32.totalorder %s26, 1
      %s517 = scalar_select %p516, %s26, 1
      %p518 = scmp.lt.s32.totalorder %s27, 5
      %s519 = scalar_select %p518, %s27, 5
      %p520 = scmp.lt.s32.totalorder %s515, 7
      %s521 = scalar_select %p520, %s515, 7
      %s522 = smul.addr %s521, 2
      %s523 = smul.addr %s519, 16
      %s524 = sadd.s32 %s522, %s523
      %s525 = smul.addr %s517, 96
      %s526 = sadd.s32 %s524, %s525
      %s527 = smul.addr %s526, 4
      %s528 = scalar_lea.vmem %s0, %s527
      %p529 = pneg %p65
      %p530 = pneg %p62
      %s531 = sadd.s32 %s27, 1
      %s532 = smul.u32 4, %s28
      %p533 = scmp.lt.s32.totalorder %s26, 1
      %s534 = scalar_select %p533, %s26, 1
      %p535 = scmp.lt.s32.totalorder %s531, 5
      %s536 = scalar_select %p535, %s531, 5
      %p537 = scmp.lt.s32.totalorder %s532, 7
      %s538 = scalar_select %p537, %s532, 7
      %s539 = smul.addr %s538, 2
      %s540 = smul.addr %s536, 16
      %s541 = sadd.s32 %s539, %s540
      %s542 = smul.addr %s534, 96
      %s543 = sadd.s32 %s541, %s542
      %s544 = smul.addr %s543, 4
      %s545 = scalar_lea.vmem %s1, %s544
      %p546 = pneg %p97
      %p547 = pneg %p94
      %s548 = sadd.s32 %s27, 2
      %s549 = smul.u32 4, %s28
      %p550 = scmp.lt.s32.totalorder %s26, 1
      %s551 = scalar_select %p550, %s26, 1
      %p552 = scmp.lt.s32.totalorder %s548, 5
      %s553 = scalar_select %p552, %s548, 5
      %p554 = scmp.lt.s32.totalorder %s549, 7
      %s555 = scalar_select %p554, %s549, 7
      %s556 = smul.addr %s555, 2
      %s557 = smul.addr %s553, 16
      %s558 = sadd.s32 %s556, %s557
      %s559 = smul.addr %s551, 96
      %s560 = sadd.s32 %s558, %s559
      %s561 = smul.addr %s560, 4
      %s562 = scalar_lea.vmem %s2, %s561
      %p563 = pneg %p129
      %p564 = pneg %p126
      %s565 = sadd.s32 %s28, 1
      %s566 = smul.u32 %s565, 2
      %s567 = smul.u32 2, %s566
      %p568 = scmp.lt.s32.totalorder %s26, 1
      %s569 = scalar_select %p568, %s26, 1
      %p570 = scmp.lt.s32.totalorder %s27, 5
      %s571 = scalar_select %p570, %s27, 5
      %p572 = scmp.lt.s32.totalorder %s567, 7
      %s573 = scalar_select %p572, %s567, 7
      %s574 = smul.addr %s573, 2
      %s575 = smul.addr %s571, 16
      %s576 = sadd.s32 %s574, %s575
      %s577 = smul.addr %s569, 96
      %s578 = sadd.s32 %s576, %s577
      %s579 = smul.addr %s578, 4
      %s580 = scalar_lea.vmem %s3, %s579
      %p581 = pneg %p163
      %p582 = pneg %p160
      %s583 = sadd.s32 %s27, 1
      %s584 = sadd.s32 %s28, 1
      %s585 = smul.u32 %s584, 2
      %s586 = smul.u32 2, %s585
      %p587 = scmp.lt.s32.totalorder %s26, 1
      %s588 = scalar_select %p587, %s26, 1
      %p589 = scmp.lt.s32.totalorder %s583, 5
      %s590 = scalar_select %p589, %s583, 5
      %p591 = scmp.lt.s32.totalorder %s586, 7
      %s592 = scalar_select %p591, %s586, 7
      %s593 = smul.addr %s592, 2
      %s594 = smul.addr %s590, 16
      %s595 = sadd.s32 %s593, %s594
      %s596 = smul.addr %s588, 96
      %s597 = sadd.s32 %s595, %s596
      %s598 = smul.addr %s597, 4
      %s599 = scalar_lea.vmem %s4, %s598
      %p600 = pneg %p199
      %p601 = pneg %p196
      %s602 = sadd.s32 %s27, 2
      %s603 = sadd.s32 %s28, 1
      %s604 = smul.u32 %s603, 2
      %s605 = smul.u32 2, %s604
      %p606 = scmp.lt.s32.totalorder %s26, 1
      %s607 = scalar_select %p606, %s26, 1
      %p608 = scmp.lt.s32.totalorder %s602, 5
      %s609 = scalar_select %p608, %s602, 5
      %p610 = scmp.lt.s32.totalorder %s605, 7
      %s611 = scalar_select %p610, %s605, 7
      %s612 = smul.addr %s611, 2
      %s613 = smul.addr %s609, 16
      %s614 = sadd.s32 %s612, %s613
      %s615 = smul.addr %s607, 96
      %s616 = sadd.s32 %s614, %s615
      %s617 = smul.addr %s616, 4
      %s618 = scalar_lea.vmem %s5, %s617
      %p619 = pneg %p235
      %p620 = pneg %p232
      %p621 = pneg %p256
      %p622 = pneg %p253
      %p623 = pneg %p277
      %p624 = pneg %p274
      %p625 = pneg %p298
      %p626 = pneg %p295
      %p627 = pneg %p319
      %p628 = pneg %p316
      %p629 = pneg %p349
      %p630 = pneg %p346
      %s631 = smul.u32 8, %s28
      %p632 = scmp.lt.s32.totalorder %s26, 1
      %s633 = scalar_select %p632, %s26, 1
      %p634 = scmp.lt.s32.totalorder %s27, 3
      %s635 = scalar_select %p634, %s27, 3
      %p636 = scmp.lt.s32.totalorder %s631, 7
      %s637 = scalar_select %p636, %s631, 7
      %s638 = smul.addr %s635, 8
      %s639 = sadd.s32 %s637, %s638
      %s640 = smul.addr %s633, 32
      %s641 = sadd.s32 %s639, %s640
      %s642 = smul.addr %s641, 8
      %s643 = scalar_lea.vmem %s10, %s642
      %s644 = smul.u32 4, %s28
      %p645 = scmp.lt.s32.totalorder %s26, 1
      %s646 = scalar_select %p645, %s26, 1
      %p647 = scmp.lt.s32.totalorder %s27, 5
      %s648 = scalar_select %p647, %s27, 5
      %p649 = scmp.lt.s32.totalorder %s644, 7
      %s650 = scalar_select %p649, %s644, 7
      %s651 = smul.addr %s650, 2
      %s652 = smul.addr %s648, 16
      %s653 = sadd.s32 %s651, %s652
      %s654 = smul.addr %s646, 96
      %s655 = sadd.s32 %s653, %s654
      %s656 = smul.addr %s655, 4
      %s657 = scalar_lea.vmem %s0, %s656
      %s658 = smul.u32 4, %s28
      %s659 = sadd.s32 %s27, 1
      %s660 = smul.u32 4, %s28
      %p661 = scmp.lt.s32.totalorder %s26, 1
      %s662 = scalar_select %p661, %s26, 1
      %p663 = scmp.lt.s32.totalorder %s659, 5
      %s664 = scalar_select %p663, %s659, 5
      %p665 = scmp.lt.s32.totalorder %s660, 7
      %s666 = scalar_select %p665, %s660, 7
      %s667 = smul.addr %s666, 2
      %s668 = smul.addr %s664, 16
      %s669 = sadd.s32 %s667, %s668
      %s670 = smul.addr %s662, 96
      %s671 = sadd.s32 %s669, %s670
      %s672 = smul.addr %s671, 4
      %s673 = scalar_lea.vmem %s1, %s672
      %s674 = sadd.s32 %s27, 1
      %s675 = smul.u32 4, %s28
      %s676 = sadd.s32 %s27, 2
      %s677 = smul.u32 4, %s28
      %p678 = scmp.lt.s32.totalorder %s26, 1
      %s679 = scalar_select %p678, %s26, 1
      %p680 = scmp.lt.s32.totalorder %s676, 5
      %s681 = scalar_select %p680, %s676, 5
      %p682 = scmp.lt.s32.totalorder %s677, 7
      %s683 = scalar_select %p682, %s677, 7
      %s684 = smul.addr %s683, 2
      %s685 = smul.addr %s681, 16
      %s686 = sadd.s32 %s684, %s685
      %s687 = smul.addr %s679, 96
      %s688 = sadd.s32 %s686, %s687
      %s689 = smul.addr %s688, 4
      %s690 = scalar_lea.vmem %s2, %s689
      %s691 = sadd.s32 %s27, 2
      %s692 = smul.u32 4, %s28
      %s693 = sadd.s32 %s28, 1
      %s694 = smul.u32 %s693, 2
      %s695 = smul.u32 2, %s694
      %p696 = scmp.lt.s32.totalorder %s26, 1
      %s697 = scalar_select %p696, %s26, 1
      %p698 = scmp.lt.s32.totalorder %s27, 5
      %s699 = scalar_select %p698, %s27, 5
      %p700 = scmp.lt.s32.totalorder %s695, 7
      %s701 = scalar_select %p700, %s695, 7
      %s702 = smul.addr %s701, 2
      %s703 = smul.addr %s699, 16
      %s704 = sadd.s32 %s702, %s703
      %s705 = smul.addr %s697, 96
      %s706 = sadd.s32 %s704, %s705
      %s707 = smul.addr %s706, 4
      %s708 = scalar_lea.vmem %s3, %s707
      %s709 = sadd.s32 %s28, 1
      %s710 = smul.u32 %s709, 2
      %s711 = smul.u32 2, %s710
      %s712 = sadd.s32 %s27, 1
      %s713 = sadd.s32 %s28, 1
      %s714 = smul.u32 %s713, 2
      %s715 = smul.u32 2, %s714
      %p716 = scmp.lt.s32.totalorder %s26, 1
      %s717 = scalar_select %p716, %s26, 1
      %p718 = scmp.lt.s32.totalorder %s712, 5
      %s719 = scalar_select %p718, %s712, 5
      %p720 = scmp.lt.s32.totalorder %s715, 7
      %s721 = scalar_select %p720, %s715, 7
      %s722 = smul.addr %s721, 2
      %s723 = smul.addr %s719, 16
      %s724 = sadd.s32 %s722, %s723
      %s725 = smul.addr %s717, 96
      %s726 = sadd.s32 %s724, %s725
      %s727 = smul.addr %s726, 4
      %s728 = scalar_lea.vmem %s4, %s727
      %s729 = sadd.s32 %s27, 1
      %s730 = sadd.s32 %s28, 1
      %s731 = smul.u32 %s730, 2
      %s732 = smul.u32 2, %s731
      %s733 = sadd.s32 %s27, 2
      %s734 = sadd.s32 %s28, 1
      %s735 = smul.u32 %s734, 2
      %s736 = smul.u32 2, %s735
      %p737 = scmp.lt.s32.totalorder %s26, 1
      %s738 = scalar_select %p737, %s26, 1
      %p739 = scmp.lt.s32.totalorder %s733, 5
      %s740 = scalar_select %p739, %s733, 5
      %p741 = scmp.lt.s32.totalorder %s736, 7
      %s742 = scalar_select %p741, %s736, 7
      %s743 = smul.addr %s742, 2
      %s744 = smul.addr %s740, 16
      %s745 = sadd.s32 %s743, %s744
      %s746 = smul.addr %s738, 96
      %s747 = sadd.s32 %s745, %s746
      %s748 = smul.addr %s747, 4
      %s749 = scalar_lea.vmem %s5, %s748
      %s750 = sadd.s32 %s27, 2
      %s751 = sadd.s32 %s28, 1
      %s752 = smul.u32 %s751, 2
      %s753 = smul.u32 2, %s752
      %s754 = smul.u32 8, %s28
      %p755 = scmp.lt.s32.totalorder %s26, 1
      %s756 = scalar_select %p755, %s26, 1
      %p757 = scmp.lt.s32.totalorder %s27, 3
      %s758 = scalar_select %p757, %s27, 3
      %p759 = scmp.lt.s32.totalorder %s754, 7
      %s760 = scalar_select %p759, %s754, 7
      %s761 = smul.addr %s758, 8
      %s762 = sadd.s32 %s760, %s761
      %s763 = smul.addr %s756, 32
      %s764 = sadd.s32 %s762, %s763
      %s765 = smul.addr %s764, 8
      %s766 = scalar_lea.vmem %s10, %s765
      %s767 = smul.u32 8, %s28
      %v769 = vld [vmem:[%s657] sm:$0xf]
      %v770 = vld [vmem:[%s657 + $0x4] sm:$0xf]
      %v771 = vld [vmem:[%s657 + $0x8] sm:$0xf]
      %v772 = vld [vmem:[%s657 + $0xc] sm:$0xf]
      %v773 = vld [vmem:[%s657 + $0x10] sm:$0xf]
      %v774 = vld [vmem:[%s657 + $0x14] sm:$0xf]
      %v775 = vld [vmem:[%s657 + $0x18] sm:$0xf]
      %v776 = vld [vmem:[%s657 + $0x1c] sm:$0xf]
      %v777 = vld [vmem:[%s708] sm:$0xf]
      %v778 = vld [vmem:[%s708 + $0x4] sm:$0xf]
      %v779 = vld [vmem:[%s708 + $0x8] sm:$0xf]
      %v780 = vld [vmem:[%s708 + $0xc] sm:$0xf]
      %v781 = vld [vmem:[%s673] sm:$0xf]
      %v782 = vld [vmem:[%s673 + $0x4] sm:$0xf]
      %v783 = vld [vmem:[%s673 + $0x8] sm:$0xf]
      %v784 = vld [vmem:[%s673 + $0xc] sm:$0xf]
      %v785 = vld [vmem:[%s673 + $0x10] sm:$0xf]
      %v786 = vld [vmem:[%s673 + $0x14] sm:$0xf]
      %v787 = vld [vmem:[%s673 + $0x18] sm:$0xf]
      %v788 = vld [vmem:[%s673 + $0x1c] sm:$0xf]
      %v789 = vld [vmem:[%s728] sm:$0xf]
      %v790 = vld [vmem:[%s728 + $0x4] sm:$0xf]
      %v791 = vld [vmem:[%s728 + $0x8] sm:$0xf]
      %v792 = vld [vmem:[%s728 + $0xc] sm:$0xf]
      %v793 = vld [vmem:[%s690] sm:$0xf]
      %v794 = vld [vmem:[%s690 + $0x4] sm:$0xf]
      %v795 = vld [vmem:[%s690 + $0x8] sm:$0xf]
      %v796 = vld [vmem:[%s690 + $0xc] sm:$0xf]
      %v797 = vld [vmem:[%s690 + $0x10] sm:$0xf]
      %v798 = vld [vmem:[%s690 + $0x14] sm:$0xf]
      %v799 = vld [vmem:[%s690 + $0x18] sm:$0xf]
      %v800 = vld [vmem:[%s690 + $0x1c] sm:$0xf]
      %v801 = vld [vmem:[%s749] sm:$0xf]
      %v802 = vld [vmem:[%s749 + $0x4] sm:$0xf]
      %v803 = vld [vmem:[%s749 + $0x8] sm:$0xf]
      %v804 = vld [vmem:[%s749 + $0xc] sm:$0xf]
      %v813 = vunpack.c.l.b16 %v769
      %v814 = vunpack.c.l.b16 %v770
      %v815 = vunpack.c.l.b16 %v771
      %v816 = vunpack.c.l.b16 %v772
      %v817 = vunpack.c.l.b16 %v773
      %v818 = vunpack.c.l.b16 %v774
      %v819 = vunpack.c.l.b16 %v775
      %v820 = vunpack.c.l.b16 %v776
      %v821 = vpack.c.b16 %v814, %v813
      %v822 = vpack.c.b16 %v816, %v815
      %v823 = vpack.c.b16 %v818, %v817
      %v824 = vpack.c.b16 %v820, %v819
      %v831 = vunpack.c.l.b16 %v777
      %v832 = vunpack.c.l.b16 %v778
      %v833 = vpack.c.b16 %v832, %v831
      %v837 = vunpack.c.l.b16 %v779
      %v838 = vunpack.c.l.b16 %v780
      %v839 = vpack.c.b16 %v838, %v837
      %v849 = vunpack.c.l.b16 %v781
      %v850 = vunpack.c.l.b16 %v782
      %v851 = vunpack.c.l.b16 %v783
      %v852 = vunpack.c.l.b16 %v784
      %v853 = vunpack.c.l.b16 %v785
      %v854 = vunpack.c.l.b16 %v786
      %v855 = vunpack.c.l.b16 %v787
      %v856 = vunpack.c.l.b16 %v788
      %v857 = vpack.c.b16 %v850, %v849
      %v858 = vpack.c.b16 %v852, %v851
      %v859 = vpack.c.b16 %v854, %v853
      %v860 = vpack.c.b16 %v856, %v855
      %v867 = vunpack.c.l.b16 %v789
      %v868 = vunpack.c.l.b16 %v790
      %v869 = vpack.c.b16 %v868, %v867
      %v873 = vunpack.c.l.b16 %v791
      %v874 = vunpack.c.l.b16 %v792
      %v875 = vpack.c.b16 %v874, %v873
      %v885 = vunpack.c.l.b16 %v793
      %v886 = vunpack.c.l.b16 %v794
      %v887 = vunpack.c.l.b16 %v795
      %v888 = vunpack.c.l.b16 %v796
      %v889 = vunpack.c.l.b16 %v797
      %v890 = vunpack.c.l.b16 %v798
      %v891 = vunpack.c.l.b16 %v799
      %v892 = vunpack.c.l.b16 %v800
      %v893 = vpack.c.b16 %v886, %v885
      %v894 = vpack.c.b16 %v888, %v887
      %v895 = vpack.c.b16 %v890, %v889
      %v896 = vpack.c.b16 %v892, %v891
      %v903 = vunpack.c.l.b16 %v801
      %v904 = vunpack.c.l.b16 %v802
      %v905 = vpack.c.b16 %v904, %v903
      %v909 = vunpack.c.l.b16 %v803
      %v910 = vunpack.c.l.b16 %v804
      %v911 = vpack.c.b16 %v910, %v909
      %v913 = vld [vmem:[%s6] sm:$0xff]
      %v914 = vld [vmem:[%s6 + $0x8] sm:$0xf]
      %v915 = vld [vmem:[%s6 + $0xc] sm:$0xff]
      %v916 = vld [vmem:[%s6 + $0x14] sm:$0xf]
      %v917 = vld [vmem:[%s6 + $0x18] sm:$0xff]
      %v918 = vld [vmem:[%s6 + $0x20] sm:$0xf]
      %v919 = vld [vmem:[%s6 + $0x24] sm:$0xff]
      %v920 = vld [vmem:[%s6 + $0x2c] sm:$0xf]
      %v921 = vld [vmem:[%s6 + $0x30] sm:$0xff]
      %v922 = vld [vmem:[%s6 + $0x38] sm:$0xf]
      %v923 = vld [vmem:[%s6 + $0x3c] sm:$0xff]
      %v924 = vld [vmem:[%s6 + $0x44] sm:$0xf]
      %v925 = vld [vmem:[%s6 + $0x48] sm:$0xff]
      %v926 = vld [vmem:[%s6 + $0x50] sm:$0xf]
      %v927 = vld [vmem:[%s6 + $0x54] sm:$0xff]
      %v928 = vld [vmem:[%s6 + $0x5c] sm:$0xf]
      %v929 = vld [vmem:[%s6 + $0x60] sm:$0xff]
      %v930 = vld [vmem:[%s6 + $0x68] sm:$0xf]
      %v931 = vld [vmem:[%s6 + $0x6c] sm:$0xff]
      %v932 = vld [vmem:[%s6 + $0x74] sm:$0xf]
      %v933 = vld [vmem:[%s6 + $0x78] sm:$0xff]
      %v934 = vld [vmem:[%s6 + $0x80] sm:$0xf]
      %v935 = vld [vmem:[%s6 + $0x84] sm:$0xff]
      %v936 = vld [vmem:[%s6 + $0x8c] sm:$0xf]
      %v937 = vld [vmem:[%s6 + $0x90] sm:$0xff]
      %v938 = vld [vmem:[%s6 + $0x98] sm:$0xf]
      %v939 = vld [vmem:[%s6 + $0x9c] sm:$0xff]
      %v940 = vld [vmem:[%s6 + $0xa4] sm:$0xf]
      %v941 = vld [vmem:[%s6 + $0xa8] sm:$0xff]
      %v942 = vld [vmem:[%s6 + $0xb0] sm:$0xf]
      %v943 = vld [vmem:[%s6 + $0xb4] sm:$0xff]
      %v944 = vld [vmem:[%s6 + $0xbc] sm:$0xf]
      %v945 = vld [vmem:[%s6 + $0xc0] sm:$0xff]
      %v946 = vld [vmem:[%s6 + $0xc8] sm:$0xf]
      %v947 = vld [vmem:[%s6 + $0xcc] sm:$0xff]
      %v948 = vld [vmem:[%s6 + $0xd4] sm:$0xf]
      %v949 = vld [vmem:[%s6 + $0xd8] sm:$0xff]
      %v950 = vld [vmem:[%s6 + $0xe0] sm:$0xf]
      %v951 = vld [vmem:[%s6 + $0xe4] sm:$0xff]
      %v952 = vld [vmem:[%s6 + $0xec] sm:$0xf]
      %v953 = vld [vmem:[%s6 + $0xf0] sm:$0xff]
      %v954 = vld [vmem:[%s6 + $0xf8] sm:$0xf]
      %v955 = vld [vmem:[%s6 + $0xfc] sm:$0xff]
      %v956 = vld [vmem:[%s6 + $0x104] sm:$0xf]
      %v957 = vld [vmem:[%s6 + $0x108] sm:$0xff]
      %v958 = vld [vmem:[%s6 + $0x110] sm:$0xf]
      %v959 = vld [vmem:[%s6 + $0x114] sm:$0xff]
      %v960 = vld [vmem:[%s6 + $0x11c] sm:$0xf]
      %v961 = vld [vmem:[%s6 + $0x120] sm:$0xff]
      %v962 = vld [vmem:[%s6 + $0x128] sm:$0xf]
      %v963 = vld [vmem:[%s6 + $0x12c] sm:$0xff]
      %v964 = vld [vmem:[%s6 + $0x134] sm:$0xf]
      %v965 = vld [vmem:[%s6 + $0x138] sm:$0xff]
      %v966 = vld [vmem:[%s6 + $0x140] sm:$0xf]
      %v967 = vld [vmem:[%s6 + $0x144] sm:$0xff]
      %v968 = vld [vmem:[%s6 + $0x14c] sm:$0xf]
      %v969 = vld [vmem:[%s6 + $0x150] sm:$0xff]
      %v970 = vld [vmem:[%s6 + $0x158] sm:$0xf]
      %v971 = vld [vmem:[%s6 + $0x15c] sm:$0xff]
      %v972 = vld [vmem:[%s6 + $0x164] sm:$0xf]
      %v973 = vld [vmem:[%s6 + $0x168] sm:$0xff]
      %v974 = vld [vmem:[%s6 + $0x170] sm:$0xf]
      %v975 = vld [vmem:[%s6 + $0x174] sm:$0xff]
      %v976 = vld [vmem:[%s6 + $0x17c] sm:$0xf]
      %v977 = vld [vmem:[%s6 + $0x180] sm:$0xff]
      %v978 = vld [vmem:[%s6 + $0x188] sm:$0xf]
      %v979 = vld [vmem:[%s6 + $0x18c] sm:$0xff]
      %v980 = vld [vmem:[%s6 + $0x194] sm:$0xf]
      %v981 = vld [vmem:[%s6 + $0x198] sm:$0xff]
      %v982 = vld [vmem:[%s6 + $0x1a0] sm:$0xf]
      %v983 = vld [vmem:[%s6 + $0x1a4] sm:$0xff]
      %v984 = vld [vmem:[%s6 + $0x1ac] sm:$0xf]
      %v985 = vld [vmem:[%s6 + $0x1b0] sm:$0xff]
      %v986 = vld [vmem:[%s6 + $0x1b8] sm:$0xf]
      %v987 = vld [vmem:[%s6 + $0x1bc] sm:$0xff]
      %v988 = vld [vmem:[%s6 + $0x1c4] sm:$0xf]
      %v989 = vld [vmem:[%s6 + $0x1c8] sm:$0xff]
      %v990 = vld [vmem:[%s6 + $0x1d0] sm:$0xf]
      %v991 = vld [vmem:[%s6 + $0x1d4] sm:$0xff]
      %v992 = vld [vmem:[%s6 + $0x1dc] sm:$0xf]
      %v993 = vld [vmem:[%s6 + $0x1e0] sm:$0xff]
      %v994 = vld [vmem:[%s6 + $0x1e8] sm:$0xf]
      %v995 = vld [vmem:[%s6 + $0x1ec] sm:$0xff]
      %v996 = vld [vmem:[%s6 + $0x1f4] sm:$0xf]
      %v997 = vld [vmem:[%s6 + $0x1f8] sm:$0xff]
      %v998 = vld [vmem:[%s6 + $0x200] sm:$0xf]
      %v999 = vld [vmem:[%s6 + $0x204] sm:$0xff]
      %v1000 = vld [vmem:[%s6 + $0x20c] sm:$0xf]
      %v1001 = vld [vmem:[%s6 + $0x210] sm:$0xff]
      %v1002 = vld [vmem:[%s6 + $0x218] sm:$0xf]
      %v1003 = vld [vmem:[%s6 + $0x21c] sm:$0xff]
      %v1004 = vld [vmem:[%s6 + $0x224] sm:$0xf]
      %v1005 = vld [vmem:[%s6 + $0x228] sm:$0xff]
      %v1006 = vld [vmem:[%s6 + $0x230] sm:$0xf]
      %v1007 = vld [vmem:[%s6 + $0x234] sm:$0xff]
      %v1008 = vld [vmem:[%s6 + $0x23c] sm:$0xf]
      %v1009 = vld [vmem:[%s6 + $0x240] sm:$0xff]
      %v1010 = vld [vmem:[%s6 + $0x248] sm:$0xf]
      %v1011 = vld [vmem:[%s6 + $0x24c] sm:$0xff]
      %v1012 = vld [vmem:[%s6 + $0x254] sm:$0xf]
      %v1013 = vld [vmem:[%s6 + $0x258] sm:$0xff]
      %v1014 = vld [vmem:[%s6 + $0x260] sm:$0xf]
      %v1015 = vld [vmem:[%s6 + $0x264] sm:$0xff]
      %v1016 = vld [vmem:[%s6 + $0x26c] sm:$0xf]
      %v1017 = vld [vmem:[%s6 + $0x270] sm:$0xff]
      %v1018 = vld [vmem:[%s6 + $0x278] sm:$0xf]
      %v1019 = vld [vmem:[%s6 + $0x27c] sm:$0xff]
      %v1020 = vld [vmem:[%s6 + $0x284] sm:$0xf]
      %v1021 = vld [vmem:[%s6 + $0x288] sm:$0xff]
      %v1022 = vld [vmem:[%s6 + $0x290] sm:$0xf]
      %v1023 = vld [vmem:[%s6 + $0x294] sm:$0xff]
      %v1024 = vld [vmem:[%s6 + $0x29c] sm:$0xf]
      %v1025 = vld [vmem:[%s6 + $0x2a0] sm:$0xff]
      %v1026 = vld [vmem:[%s6 + $0x2a8] sm:$0xf]
      %v1027 = vld [vmem:[%s6 + $0x2ac] sm:$0xff]
      %v1028 = vld [vmem:[%s6 + $0x2b4] sm:$0xf]
      %v1029 = vld [vmem:[%s6 + $0x2b8] sm:$0xff]
      %v1030 = vld [vmem:[%s6 + $0x2c0] sm:$0xf]
      %v1031 = vld [vmem:[%s6 + $0x2c4] sm:$0xff]
      %v1032 = vld [vmem:[%s6 + $0x2cc] sm:$0xf]
      %v1033 = vld [vmem:[%s6 + $0x2d0] sm:$0xff]
      %v1034 = vld [vmem:[%s6 + $0x2d8] sm:$0xf]
      %v1035 = vld [vmem:[%s6 + $0x2dc] sm:$0xff]
      %v1036 = vld [vmem:[%s6 + $0x2e4] sm:$0xf]
      %v1037 = vld [vmem:[%s6 + $0x2e8] sm:$0xff]
      %v1038 = vld [vmem:[%s6 + $0x2f0] sm:$0xf]
      %v1039 = vld [vmem:[%s6 + $0x2f4] sm:$0xff]
      %v1040 = vld [vmem:[%s6 + $0x2fc] sm:$0xf]
      %v1041 = vld [vmem:[%s6 + $0x300] sm:$0xff]
      %v1042 = vld [vmem:[%s6 + $0x308] sm:$0xf]
      %v1043 = vld [vmem:[%s6 + $0x30c] sm:$0xff]
      %v1044 = vld [vmem:[%s6 + $0x314] sm:$0xf]
      %v1045 = vld [vmem:[%s6 + $0x318] sm:$0xff]
      %v1046 = vld [vmem:[%s6 + $0x320] sm:$0xf]
      %v1047 = vld [vmem:[%s6 + $0x324] sm:$0xff]
      %v1048 = vld [vmem:[%s6 + $0x32c] sm:$0xf]
      %v1049 = vld [vmem:[%s6 + $0x330] sm:$0xff]
      %v1050 = vld [vmem:[%s6 + $0x338] sm:$0xf]
      %v1051 = vld [vmem:[%s6 + $0x33c] sm:$0xff]
      %v1052 = vld [vmem:[%s6 + $0x344] sm:$0xf]
      %v1053 = vld [vmem:[%s6 + $0x348] sm:$0xff]
      %v1054 = vld [vmem:[%s6 + $0x350] sm:$0xf]
      %v1055 = vld [vmem:[%s6 + $0x354] sm:$0xff]
      %v1056 = vld [vmem:[%s6 + $0x35c] sm:$0xf]
      %v1057 = vld [vmem:[%s6 + $0x360] sm:$0xff]
      %v1058 = vld [vmem:[%s6 + $0x368] sm:$0xf]
      %v1059 = vld [vmem:[%s6 + $0x36c] sm:$0xff]
      %v1060 = vld [vmem:[%s6 + $0x374] sm:$0xf]
      %v1061 = vld [vmem:[%s6 + $0x378] sm:$0xff]
      %v1062 = vld [vmem:[%s6 + $0x380] sm:$0xf]
      %v1063 = vld [vmem:[%s6 + $0x384] sm:$0xff]
      %v1064 = vld [vmem:[%s6 + $0x38c] sm:$0xf]
      %v1065 = vld [vmem:[%s6 + $0x390] sm:$0xff]
      %v1066 = vld [vmem:[%s6 + $0x398] sm:$0xf]
      %v1067 = vld [vmem:[%s6 + $0x39c] sm:$0xff]
      %v1068 = vld [vmem:[%s6 + $0x3a4] sm:$0xf]
      %v1069 = vld [vmem:[%s6 + $0x3a8] sm:$0xff]
      %v1070 = vld [vmem:[%s6 + $0x3b0] sm:$0xf]
      %v1071 = vld [vmem:[%s6 + $0x3b4] sm:$0xff]
      %v1072 = vld [vmem:[%s6 + $0x3bc] sm:$0xf]
      %v1073 = vld [vmem:[%s6 + $0x3c0] sm:$0xff]
      %v1074 = vld [vmem:[%s6 + $0x3c8] sm:$0xf]
      %v1075 = vld [vmem:[%s6 + $0x3cc] sm:$0xff]
      %v1076 = vld [vmem:[%s6 + $0x3d4] sm:$0xf]
      %v1077 = vld [vmem:[%s6 + $0x3d8] sm:$0xff]
      %v1078 = vld [vmem:[%s6 + $0x3e0] sm:$0xf]
      %v1079 = vld [vmem:[%s6 + $0x3e4] sm:$0xff]
      %v1080 = vld [vmem:[%s6 + $0x3ec] sm:$0xf]
      %v1081 = vld [vmem:[%s6 + $0x3f0] sm:$0xff]
      %v1082 = vld [vmem:[%s6 + $0x3f8] sm:$0xf]
      %v1083 = vld [vmem:[%s6 + $0x3fc] sm:$0xff]
      %v1084 = vld [vmem:[%s6 + $0x404] sm:$0xf]
      %v1085 = vld [vmem:[%s6 + $0x408] sm:$0xff]
      %v1086 = vld [vmem:[%s6 + $0x410] sm:$0xf]
      %v1087 = vld [vmem:[%s6 + $0x414] sm:$0xff]
      %v1088 = vld [vmem:[%s6 + $0x41c] sm:$0xf]
      %v1089 = vld [vmem:[%s6 + $0x420] sm:$0xff]
      %v1090 = vld [vmem:[%s6 + $0x428] sm:$0xf]
      %v1091 = vld [vmem:[%s6 + $0x42c] sm:$0xff]
      %v1092 = vld [vmem:[%s6 + $0x434] sm:$0xf]
      %v1093 = vld [vmem:[%s6 + $0x438] sm:$0xff]
      %v1094 = vld [vmem:[%s6 + $0x440] sm:$0xf]
      %v1095 = vld [vmem:[%s6 + $0x444] sm:$0xff]
      %v1096 = vld [vmem:[%s6 + $0x44c] sm:$0xf]
      %v1097 = vld [vmem:[%s6 + $0x450] sm:$0xff]
      %v1098 = vld [vmem:[%s6 + $0x458] sm:$0xf]
      %v1099 = vld [vmem:[%s6 + $0x45c] sm:$0xff]
      %v1100 = vld [vmem:[%s6 + $0x464] sm:$0xf]
      %v1101 = vld [vmem:[%s6 + $0x468] sm:$0xff]
      %v1102 = vld [vmem:[%s6 + $0x470] sm:$0xf]
      %v1103 = vld [vmem:[%s6 + $0x474] sm:$0xff]
      %v1104 = vld [vmem:[%s6 + $0x47c] sm:$0xf]
      %v1105 = vld [vmem:[%s6 + $0x480] sm:$0xff]
      %v1106 = vld [vmem:[%s6 + $0x488] sm:$0xf]
      %v1107 = vld [vmem:[%s6 + $0x48c] sm:$0xff]
      %v1108 = vld [vmem:[%s6 + $0x494] sm:$0xf]
      %v1109 = vld [vmem:[%s6 + $0x498] sm:$0xff]
      %v1110 = vld [vmem:[%s6 + $0x4a0] sm:$0xf]
      %v1111 = vld [vmem:[%s6 + $0x4a4] sm:$0xff]
      %v1112 = vld [vmem:[%s6 + $0x4ac] sm:$0xf]
      %v1113 = vld [vmem:[%s6 + $0x4b0] sm:$0xff]
      %v1114 = vld [vmem:[%s6 + $0x4b8] sm:$0xf]
      %v1115 = vld [vmem:[%s6 + $0x4bc] sm:$0xff]
      %v1116 = vld [vmem:[%s6 + $0x4c4] sm:$0xf]
      %v1117 = vld [vmem:[%s6 + $0x4c8] sm:$0xff]
      %v1118 = vld [vmem:[%s6 + $0x4d0] sm:$0xf]
      %v1119 = vld [vmem:[%s6 + $0x4d4] sm:$0xff]
      %v1120 = vld [vmem:[%s6 + $0x4dc] sm:$0xf]
      %v1121 = vld [vmem:[%s6 + $0x4e0] sm:$0xff]
      %v1122 = vld [vmem:[%s6 + $0x4e8] sm:$0xf]
      %v1123 = vld [vmem:[%s6 + $0x4ec] sm:$0xff]
      %v1124 = vld [vmem:[%s6 + $0x4f4] sm:$0xf]
      %v1125 = vld [vmem:[%s6 + $0x4f8] sm:$0xff]
      %v1126 = vld [vmem:[%s6 + $0x500] sm:$0xf]
      %v1127 = vld [vmem:[%s6 + $0x504] sm:$0xff]
      %v1128 = vld [vmem:[%s6 + $0x50c] sm:$0xf]
      %v1129 = vld [vmem:[%s6 + $0x510] sm:$0xff]
      %v1130 = vld [vmem:[%s6 + $0x518] sm:$0xf]
      %v1131 = vld [vmem:[%s6 + $0x51c] sm:$0xff]
      %v1132 = vld [vmem:[%s6 + $0x524] sm:$0xf]
      %v1133 = vld [vmem:[%s6 + $0x528] sm:$0xff]
      %v1134 = vld [vmem:[%s6 + $0x530] sm:$0xf]
      %v1135 = vld [vmem:[%s6 + $0x534] sm:$0xff]
      %v1136 = vld [vmem:[%s6 + $0x53c] sm:$0xf]
      %v1137 = vld [vmem:[%s6 + $0x540] sm:$0xff]
      %v1138 = vld [vmem:[%s6 + $0x548] sm:$0xf]
      %v1139 = vld [vmem:[%s6 + $0x54c] sm:$0xff]
      %v1140 = vld [vmem:[%s6 + $0x554] sm:$0xf]
      %v1141 = vld [vmem:[%s6 + $0x558] sm:$0xff]
      %v1142 = vld [vmem:[%s6 + $0x560] sm:$0xf]
      %v1143 = vld [vmem:[%s6 + $0x564] sm:$0xff]
      %v1144 = vld [vmem:[%s6 + $0x56c] sm:$0xf]
      %v1145 = vld [vmem:[%s6 + $0x570] sm:$0xff]
      %v1146 = vld [vmem:[%s6 + $0x578] sm:$0xf]
      %v1147 = vld [vmem:[%s6 + $0x57c] sm:$0xff]
      %v1148 = vld [vmem:[%s6 + $0x584] sm:$0xf]
      %v1149 = vld [vmem:[%s6 + $0x588] sm:$0xff]
      %v1150 = vld [vmem:[%s6 + $0x590] sm:$0xf]
      %v1151 = vld [vmem:[%s6 + $0x594] sm:$0xff]
      %v1152 = vld [vmem:[%s6 + $0x59c] sm:$0xf]
      %v1153 = vld [vmem:[%s6 + $0x5a0] sm:$0xff]
      %v1154 = vld [vmem:[%s6 + $0x5a8] sm:$0xf]
      %v1155 = vld [vmem:[%s6 + $0x5ac] sm:$0xff]
      %v1156 = vld [vmem:[%s6 + $0x5b4] sm:$0xf]
      %v1157 = vld [vmem:[%s6 + $0x5b8] sm:$0xff]
      %v1158 = vld [vmem:[%s6 + $0x5c0] sm:$0xf]
      %v1159 = vld [vmem:[%s6 + $0x5c4] sm:$0xff]
      %v1160 = vld [vmem:[%s6 + $0x5cc] sm:$0xf]
      %v1161 = vld [vmem:[%s6 + $0x5d0] sm:$0xff]
      %v1162 = vld [vmem:[%s6 + $0x5d8] sm:$0xf]
      %v1163 = vld [vmem:[%s6 + $0x5dc] sm:$0xff]
      %v1164 = vld [vmem:[%s6 + $0x5e4] sm:$0xf]
      %v1165 = vld [vmem:[%s6 + $0x5e8] sm:$0xff]
      %v1166 = vld [vmem:[%s6 + $0x5f0] sm:$0xf]
      %v1167 = vld [vmem:[%s6 + $0x5f4] sm:$0xff]
      %v1168 = vld [vmem:[%s6 + $0x5fc] sm:$0xf]
      %v1169 = vld [vmem:[%s6 + $0x600] sm:$0xff]
      %v1170 = vld [vmem:[%s6 + $0x608] sm:$0xf]
      %v1171 = vld [vmem:[%s6 + $0x60c] sm:$0xff]
      %v1172 = vld [vmem:[%s6 + $0x614] sm:$0xf]
      %v1173 = vld [vmem:[%s6 + $0x618] sm:$0xff]
      %v1174 = vld [vmem:[%s6 + $0x620] sm:$0xf]
      %v1175 = vld [vmem:[%s6 + $0x624] sm:$0xff]
      %v1176 = vld [vmem:[%s6 + $0x62c] sm:$0xf]
      %v1177 = vld [vmem:[%s6 + $0x630] sm:$0xff]
      %v1178 = vld [vmem:[%s6 + $0x638] sm:$0xf]
      %v1179 = vld [vmem:[%s6 + $0x63c] sm:$0xff]
      %v1180 = vld [vmem:[%s6 + $0x644] sm:$0xf]
      %v1181 = vld [vmem:[%s6 + $0x648] sm:$0xff]
      %v1182 = vld [vmem:[%s6 + $0x650] sm:$0xf]
      %v1183 = vld [vmem:[%s6 + $0x654] sm:$0xff]
      %v1184 = vld [vmem:[%s6 + $0x65c] sm:$0xf]
      %v1185 = vld [vmem:[%s6 + $0x660] sm:$0xff]
      %v1186 = vld [vmem:[%s6 + $0x668] sm:$0xf]
      %v1187 = vld [vmem:[%s6 + $0x66c] sm:$0xff]
      %v1188 = vld [vmem:[%s6 + $0x674] sm:$0xf]
      %v1189 = vld [vmem:[%s6 + $0x678] sm:$0xff]
      %v1190 = vld [vmem:[%s6 + $0x680] sm:$0xf]
      %v1191 = vld [vmem:[%s6 + $0x684] sm:$0xff]
      %v1192 = vld [vmem:[%s6 + $0x68c] sm:$0xf]
      %v1193 = vld [vmem:[%s6 + $0x690] sm:$0xff]
      %v1194 = vld [vmem:[%s6 + $0x698] sm:$0xf]
      %v1195 = vld [vmem:[%s6 + $0x69c] sm:$0xff]
      %v1196 = vld [vmem:[%s6 + $0x6a4] sm:$0xf]
      %v1197 = vld [vmem:[%s6 + $0x6a8] sm:$0xff]
      %v1198 = vld [vmem:[%s6 + $0x6b0] sm:$0xf]
      %v1199 = vld [vmem:[%s6 + $0x6b4] sm:$0xff]
      %v1200 = vld [vmem:[%s6 + $0x6bc] sm:$0xf]
      %v1489 = vunpack.c.l.b16 %v913
      %v1490 = vunpack.c.h.b16 %v913
      %v1491 = vunpack.c.l.b16 %v914
      %v1492 = vunpack.c.l.b16 %v915
      %v1493 = vunpack.c.h.b16 %v915
      %v1494 = vunpack.c.l.b16 %v916
      %v1495 = vunpack.c.l.b16 %v917
      %v1496 = vunpack.c.h.b16 %v917
      %v1497 = vunpack.c.l.b16 %v918
      %v1498 = vunpack.c.l.b16 %v919
      %v1499 = vunpack.c.h.b16 %v919
      %v1500 = vunpack.c.l.b16 %v920
      %v1501 = vunpack.c.l.b16 %v921
      %v1502 = vunpack.c.h.b16 %v921
      %v1503 = vunpack.c.l.b16 %v922
      %v1504 = vunpack.c.l.b16 %v923
      %v1505 = vunpack.c.h.b16 %v923
      %v1506 = vunpack.c.l.b16 %v924
      %v1507 = vunpack.c.l.b16 %v925
      %v1508 = vunpack.c.h.b16 %v925
      %v1509 = vunpack.c.l.b16 %v926
      %v1510 = vunpack.c.l.b16 %v927
      %v1511 = vunpack.c.h.b16 %v927
      %v1512 = vunpack.c.l.b16 %v928
      %v1513 = vunpack.c.l.b16 %v929
      %v1514 = vunpack.c.h.b16 %v929
      %v1515 = vunpack.c.l.b16 %v930
      %v1516 = vunpack.c.l.b16 %v931
      %v1517 = vunpack.c.h.b16 %v931
      %v1518 = vunpack.c.l.b16 %v932
      %v1519 = vunpack.c.l.b16 %v933
      %v1520 = vunpack.c.h.b16 %v933
      %v1521 = vunpack.c.l.b16 %v934
      %v1522 = vunpack.c.l.b16 %v935
      %v1523 = vunpack.c.h.b16 %v935
      %v1524 = vunpack.c.l.b16 %v936
      %v1525 = vunpack.c.l.b16 %v937
      %v1526 = vunpack.c.h.b16 %v937
      %v1527 = vunpack.c.l.b16 %v938
      %v1528 = vunpack.c.l.b16 %v939
      %v1529 = vunpack.c.h.b16 %v939
      %v1530 = vunpack.c.l.b16 %v940
      %v1531 = vunpack.c.l.b16 %v941
      %v1532 = vunpack.c.h.b16 %v941
      %v1533 = vunpack.c.l.b16 %v942
      %v1534 = vunpack.c.l.b16 %v943
      %v1535 = vunpack.c.h.b16 %v943
      %v1536 = vunpack.c.l.b16 %v944
      %v1537 = vunpack.c.l.b16 %v945
      %v1538 = vunpack.c.h.b16 %v945
      %v1539 = vunpack.c.l.b16 %v946
      %v1540 = vunpack.c.l.b16 %v947
      %v1541 = vunpack.c.h.b16 %v947
      %v1542 = vunpack.c.l.b16 %v948
      %v1543 = vunpack.c.l.b16 %v949
      %v1544 = vunpack.c.h.b16 %v949
      %v1545 = vunpack.c.l.b16 %v950
      %v1546 = vunpack.c.l.b16 %v951
      %v1547 = vunpack.c.h.b16 %v951
      %v1548 = vunpack.c.l.b16 %v952
      %v1549 = vunpack.c.l.b16 %v953
      %v1550 = vunpack.c.h.b16 %v953
      %v1551 = vunpack.c.l.b16 %v954
      %v1552 = vunpack.c.l.b16 %v955
      %v1553 = vunpack.c.h.b16 %v955
      %v1554 = vunpack.c.l.b16 %v956
      %v1555 = vunpack.c.l.b16 %v957
      %v1556 = vunpack.c.h.b16 %v957
      %v1557 = vunpack.c.l.b16 %v958
      %v1558 = vunpack.c.l.b16 %v959
      %v1559 = vunpack.c.h.b16 %v959
      %v1560 = vunpack.c.l.b16 %v960
      %v1561 = vunpack.c.l.b16 %v961
      %v1562 = vunpack.c.h.b16 %v961
      %v1563 = vunpack.c.l.b16 %v962
      %v1564 = vunpack.c.l.b16 %v963
      %v1565 = vunpack.c.h.b16 %v963
      %v1566 = vunpack.c.l.b16 %v964
      %v1567 = vunpack.c.l.b16 %v965
      %v1568 = vunpack.c.h.b16 %v965
      %v1569 = vunpack.c.l.b16 %v966
      %v1570 = vunpack.c.l.b16 %v967
      %v1571 = vunpack.c.h.b16 %v967
      %v1572 = vunpack.c.l.b16 %v968
      %v1573 = vunpack.c.l.b16 %v969
      %v1574 = vunpack.c.h.b16 %v969
      %v1575 = vunpack.c.l.b16 %v970
      %v1576 = vunpack.c.l.b16 %v971
      %v1577 = vunpack.c.h.b16 %v971
      %v1578 = vunpack.c.l.b16 %v972
      %v1579 = vunpack.c.l.b16 %v973
      %v1580 = vunpack.c.h.b16 %v973
      %v1581 = vunpack.c.l.b16 %v974
      %v1582 = vunpack.c.l.b16 %v975
      %v1583 = vunpack.c.h.b16 %v975
      %v1584 = vunpack.c.l.b16 %v976
      %v1585 = vunpack.c.l.b16 %v977
      %v1586 = vunpack.c.h.b16 %v977
      %v1587 = vunpack.c.l.b16 %v978
      %v1588 = vunpack.c.l.b16 %v979
      %v1589 = vunpack.c.h.b16 %v979
      %v1590 = vunpack.c.l.b16 %v980
      %v1591 = vunpack.c.l.b16 %v981
      %v1592 = vunpack.c.h.b16 %v981
      %v1593 = vunpack.c.l.b16 %v982
      %v1594 = vunpack.c.l.b16 %v983
      %v1595 = vunpack.c.h.b16 %v983
      %v1596 = vunpack.c.l.b16 %v984
      %v1597 = vunpack.c.l.b16 %v985
      %v1598 = vunpack.c.h.b16 %v985
      %v1599 = vunpack.c.l.b16 %v986
      %v1600 = vunpack.c.l.b16 %v987
      %v1601 = vunpack.c.h.b16 %v987
      %v1602 = vunpack.c.l.b16 %v988
      %v1603 = vunpack.c.l.b16 %v989
      %v1604 = vunpack.c.h.b16 %v989
      %v1605 = vunpack.c.l.b16 %v990
      %v1606 = vunpack.c.l.b16 %v991
      %v1607 = vunpack.c.h.b16 %v991
      %v1608 = vunpack.c.l.b16 %v992
      %v1609 = vunpack.c.l.b16 %v993
      %v1610 = vunpack.c.h.b16 %v993
      %v1611 = vunpack.c.l.b16 %v994
      %v1612 = vunpack.c.l.b16 %v995
      %v1613 = vunpack.c.h.b16 %v995
      %v1614 = vunpack.c.l.b16 %v996
      %v1615 = vunpack.c.l.b16 %v997
      %v1616 = vunpack.c.h.b16 %v997
      %v1617 = vunpack.c.l.b16 %v998
      %v1618 = vunpack.c.l.b16 %v999
      %v1619 = vunpack.c.h.b16 %v999
      %v1620 = vunpack.c.l.b16 %v1000
      %v1621 = vunpack.c.l.b16 %v1001
      %v1622 = vunpack.c.h.b16 %v1001
      %v1623 = vunpack.c.l.b16 %v1002
      %v1624 = vunpack.c.l.b16 %v1003
      %v1625 = vunpack.c.h.b16 %v1003
      %v1626 = vunpack.c.l.b16 %v1004
      %v1627 = vunpack.c.l.b16 %v1005
      %v1628 = vunpack.c.h.b16 %v1005
      %v1629 = vunpack.c.l.b16 %v1006
      %v1630 = vunpack.c.l.b16 %v1007
      %v1631 = vunpack.c.h.b16 %v1007
      %v1632 = vunpack.c.l.b16 %v1008
      %v1633 = vunpack.c.l.b16 %v1009
      %v1634 = vunpack.c.h.b16 %v1009
      %v1635 = vunpack.c.l.b16 %v1010
      %v1636 = vunpack.c.l.b16 %v1011
      %v1637 = vunpack.c.h.b16 %v1011
      %v1638 = vunpack.c.l.b16 %v1012
      %v1639 = vunpack.c.l.b16 %v1013
      %v1640 = vunpack.c.h.b16 %v1013
      %v1641 = vunpack.c.l.b16 %v1014
      %v1642 = vunpack.c.l.b16 %v1015
      %v1643 = vunpack.c.h.b16 %v1015
      %v1644 = vunpack.c.l.b16 %v1016
      %v1645 = vunpack.c.l.b16 %v1017
      %v1646 = vunpack.c.h.b16 %v1017
      %v1647 = vunpack.c.l.b16 %v1018
      %v1648 = vunpack.c.l.b16 %v1019
      %v1649 = vunpack.c.h.b16 %v1019
      %v1650 = vunpack.c.l.b16 %v1020
      %v1651 = vunpack.c.l.b16 %v1021
      %v1652 = vunpack.c.h.b16 %v1021
      %v1653 = vunpack.c.l.b16 %v1022
      %v1654 = vunpack.c.l.b16 %v1023
      %v1655 = vunpack.c.h.b16 %v1023
      %v1656 = vunpack.c.l.b16 %v1024
      %v1657 = vunpack.c.l.b16 %v1025
      %v1658 = vunpack.c.h.b16 %v1025
      %v1659 = vunpack.c.l.b16 %v1026
      %v1660 = vunpack.c.l.b16 %v1027
      %v1661 = vunpack.c.h.b16 %v1027
      %v1662 = vunpack.c.l.b16 %v1028
      %v1663 = vunpack.c.l.b16 %v1029
      %v1664 = vunpack.c.h.b16 %v1029
      %v1665 = vunpack.c.l.b16 %v1030
      %v1666 = vunpack.c.l.b16 %v1031
      %v1667 = vunpack.c.h.b16 %v1031
      %v1668 = vunpack.c.l.b16 %v1032
      %v1669 = vunpack.c.l.b16 %v1033
      %v1670 = vunpack.c.h.b16 %v1033
      %v1671 = vunpack.c.l.b16 %v1034
      %v1672 = vunpack.c.l.b16 %v1035
      %v1673 = vunpack.c.h.b16 %v1035
      %v1674 = vunpack.c.l.b16 %v1036
      %v1675 = vunpack.c.l.b16 %v1037
      %v1676 = vunpack.c.h.b16 %v1037
      %v1677 = vunpack.c.l.b16 %v1038
      %v1678 = vunpack.c.l.b16 %v1039
      %v1679 = vunpack.c.h.b16 %v1039
      %v1680 = vunpack.c.l.b16 %v1040
      %v1681 = vunpack.c.l.b16 %v1041
      %v1682 = vunpack.c.h.b16 %v1041
      %v1683 = vunpack.c.l.b16 %v1042
      %v1684 = vunpack.c.l.b16 %v1043
      %v1685 = vunpack.c.h.b16 %v1043
      %v1686 = vunpack.c.l.b16 %v1044
      %v1687 = vunpack.c.l.b16 %v1045
      %v1688 = vunpack.c.h.b16 %v1045
      %v1689 = vunpack.c.l.b16 %v1046
      %v1690 = vunpack.c.l.b16 %v1047
      %v1691 = vunpack.c.h.b16 %v1047
      %v1692 = vunpack.c.l.b16 %v1048
      %v1693 = vunpack.c.l.b16 %v1049
      %v1694 = vunpack.c.h.b16 %v1049
      %v1695 = vunpack.c.l.b16 %v1050
      %v1696 = vunpack.c.l.b16 %v1051
      %v1697 = vunpack.c.h.b16 %v1051
      %v1698 = vunpack.c.l.b16 %v1052
      %v1699 = vunpack.c.l.b16 %v1053
      %v1700 = vunpack.c.h.b16 %v1053
      %v1701 = vunpack.c.l.b16 %v1054
      %v1702 = vunpack.c.l.b16 %v1055
      %v1703 = vunpack.c.h.b16 %v1055
      %v1704 = vunpack.c.l.b16 %v1056
      %v1705 = vunpack.c.l.b16 %v1057
      %v1706 = vunpack.c.h.b16 %v1057
      %v1707 = vunpack.c.l.b16 %v1058
      %v1708 = vunpack.c.l.b16 %v1059
      %v1709 = vunpack.c.h.b16 %v1059
      %v1710 = vunpack.c.l.b16 %v1060
      %v1711 = vunpack.c.l.b16 %v1061
      %v1712 = vunpack.c.h.b16 %v1061
      %v1713 = vunpack.c.l.b16 %v1062
      %v1714 = vunpack.c.l.b16 %v1063
      %v1715 = vunpack.c.h.b16 %v1063
      %v1716 = vunpack.c.l.b16 %v1064
      %v1717 = vunpack.c.l.b16 %v1065
      %v1718 = vunpack.c.h.b16 %v1065
      %v1719 = vunpack.c.l.b16 %v1066
      %v1720 = vunpack.c.l.b16 %v1067
      %v1721 = vunpack.c.h.b16 %v1067
      %v1722 = vunpack.c.l.b16 %v1068
      %v1723 = vunpack.c.l.b16 %v1069
      %v1724 = vunpack.c.h.b16 %v1069
      %v1725 = vunpack.c.l.b16 %v1070
      %v1726 = vunpack.c.l.b16 %v1071
      %v1727 = vunpack.c.h.b16 %v1071
      %v1728 = vunpack.c.l.b16 %v1072
      %v1729 = vunpack.c.l.b16 %v1073
      %v1730 = vunpack.c.h.b16 %v1073
      %v1731 = vunpack.c.l.b16 %v1074
      %v1732 = vunpack.c.l.b16 %v1075
      %v1733 = vunpack.c.h.b16 %v1075
      %v1734 = vunpack.c.l.b16 %v1076
      %v1735 = vunpack.c.l.b16 %v1077
      %v1736 = vunpack.c.h.b16 %v1077
      %v1737 = vunpack.c.l.b16 %v1078
      %v1738 = vunpack.c.l.b16 %v1079
      %v1739 = vunpack.c.h.b16 %v1079
      %v1740 = vunpack.c.l.b16 %v1080
      %v1741 = vunpack.c.l.b16 %v1081
      %v1742 = vunpack.c.h.b16 %v1081
      %v1743 = vunpack.c.l.b16 %v1082
      %v1744 = vunpack.c.l.b16 %v1083
      %v1745 = vunpack.c.h.b16 %v1083
      %v1746 = vunpack.c.l.b16 %v1084
      %v1747 = vunpack.c.l.b16 %v1085
      %v1748 = vunpack.c.h.b16 %v1085
      %v1749 = vunpack.c.l.b16 %v1086
      %v1750 = vunpack.c.l.b16 %v1087
      %v1751 = vunpack.c.h.b16 %v1087
      %v1752 = vunpack.c.l.b16 %v1088
      %v1753 = vunpack.c.l.b16 %v1089
      %v1754 = vunpack.c.h.b16 %v1089
      %v1755 = vunpack.c.l.b16 %v1090
      %v1756 = vunpack.c.l.b16 %v1091
      %v1757 = vunpack.c.h.b16 %v1091
      %v1758 = vunpack.c.l.b16 %v1092
      %v1759 = vunpack.c.l.b16 %v1093
      %v1760 = vunpack.c.h.b16 %v1093
      %v1761 = vunpack.c.l.b16 %v1094
      %v1762 = vunpack.c.l.b16 %v1095
      %v1763 = vunpack.c.h.b16 %v1095
      %v1764 = vunpack.c.l.b16 %v1096
      %v1765 = vunpack.c.l.b16 %v1097
      %v1766 = vunpack.c.h.b16 %v1097
      %v1767 = vunpack.c.l.b16 %v1098
      %v1768 = vunpack.c.l.b16 %v1099
      %v1769 = vunpack.c.h.b16 %v1099
      %v1770 = vunpack.c.l.b16 %v1100
      %v1771 = vunpack.c.l.b16 %v1101
      %v1772 = vunpack.c.h.b16 %v1101
      %v1773 = vunpack.c.l.b16 %v1102
      %v1774 = vunpack.c.l.b16 %v1103
      %v1775 = vunpack.c.h.b16 %v1103
      %v1776 = vunpack.c.l.b16 %v1104
      %v1777 = vunpack.c.l.b16 %v1105
      %v1778 = vunpack.c.h.b16 %v1105
      %v1779 = vunpack.c.l.b16 %v1106
      %v1780 = vunpack.c.l.b16 %v1107
      %v1781 = vunpack.c.h.b16 %v1107
      %v1782 = vunpack.c.l.b16 %v1108
      %v1783 = vunpack.c.l.b16 %v1109
      %v1784 = vunpack.c.h.b16 %v1109
      %v1785 = vunpack.c.l.b16 %v1110
      %v1786 = vunpack.c.l.b16 %v1111
      %v1787 = vunpack.c.h.b16 %v1111
      %v1788 = vunpack.c.l.b16 %v1112
      %v1789 = vunpack.c.l.b16 %v1113
      %v1790 = vunpack.c.h.b16 %v1113
      %v1791 = vunpack.c.l.b16 %v1114
      %v1792 = vunpack.c.l.b16 %v1115
      %v1793 = vunpack.c.h.b16 %v1115
      %v1794 = vunpack.c.l.b16 %v1116
      %v1795 = vunpack.c.l.b16 %v1117
      %v1796 = vunpack.c.h.b16 %v1117
      %v1797 = vunpack.c.l.b16 %v1118
      %v1798 = vunpack.c.l.b16 %v1119
      %v1799 = vunpack.c.h.b16 %v1119
      %v1800 = vunpack.c.l.b16 %v1120
      %v1801 = vunpack.c.l.b16 %v1121
      %v1802 = vunpack.c.h.b16 %v1121
      %v1803 = vunpack.c.l.b16 %v1122
      %v1804 = vunpack.c.l.b16 %v1123
      %v1805 = vunpack.c.h.b16 %v1123
      %v1806 = vunpack.c.l.b16 %v1124
      %v1807 = vunpack.c.l.b16 %v1125
      %v1808 = vunpack.c.h.b16 %v1125
      %v1809 = vunpack.c.l.b16 %v1126
      %v1810 = vunpack.c.l.b16 %v1127
      %v1811 = vunpack.c.h.b16 %v1127
      %v1812 = vunpack.c.l.b16 %v1128
      %v1813 = vunpack.c.l.b16 %v1129
      %v1814 = vunpack.c.h.b16 %v1129
      %v1815 = vunpack.c.l.b16 %v1130
      %v1816 = vunpack.c.l.b16 %v1131
      %v1817 = vunpack.c.h.b16 %v1131
      %v1818 = vunpack.c.l.b16 %v1132
      %v1819 = vunpack.c.l.b16 %v1133
      %v1820 = vunpack.c.h.b16 %v1133
      %v1821 = vunpack.c.l.b16 %v1134
      %v1822 = vunpack.c.l.b16 %v1135
      %v1823 = vunpack.c.h.b16 %v1135
      %v1824 = vunpack.c.l.b16 %v1136
      %v1825 = vunpack.c.l.b16 %v1137
      %v1826 = vunpack.c.h.b16 %v1137
      %v1827 = vunpack.c.l.b16 %v1138
      %v1828 = vunpack.c.l.b16 %v1139
      %v1829 = vunpack.c.h.b16 %v1139
      %v1830 = vunpack.c.l.b16 %v1140
      %v1831 = vunpack.c.l.b16 %v1141
      %v1832 = vunpack.c.h.b16 %v1141
      %v1833 = vunpack.c.l.b16 %v1142
      %v1834 = vunpack.c.l.b16 %v1143
      %v1835 = vunpack.c.h.b16 %v1143
      %v1836 = vunpack.c.l.b16 %v1144
      %v1837 = vunpack.c.l.b16 %v1145
      %v1838 = vunpack.c.h.b16 %v1145
      %v1839 = vunpack.c.l.b16 %v1146
      %v1840 = vunpack.c.l.b16 %v1147
      %v1841 = vunpack.c.h.b16 %v1147
      %v1842 = vunpack.c.l.b16 %v1148
      %v1843 = vunpack.c.l.b16 %v1149
      %v1844 = vunpack.c.h.b16 %v1149
      %v1845 = vunpack.c.l.b16 %v1150
      %v1846 = vunpack.c.l.b16 %v1151
      %v1847 = vunpack.c.h.b16 %v1151
      %v1848 = vunpack.c.l.b16 %v1152
      %v1849 = vunpack.c.l.b16 %v1153
      %v1850 = vunpack.c.h.b16 %v1153
      %v1851 = vunpack.c.l.b16 %v1154
      %v1852 = vunpack.c.l.b16 %v1155
      %v1853 = vunpack.c.h.b16 %v1155
      %v1854 = vunpack.c.l.b16 %v1156
      %v1855 = vunpack.c.l.b16 %v1157
      %v1856 = vunpack.c.h.b16 %v1157
      %v1857 = vunpack.c.l.b16 %v1158
      %v1858 = vunpack.c.l.b16 %v1159
      %v1859 = vunpack.c.h.b16 %v1159
      %v1860 = vunpack.c.l.b16 %v1160
      %v1861 = vunpack.c.l.b16 %v1161
      %v1862 = vunpack.c.h.b16 %v1161
      %v1863 = vunpack.c.l.b16 %v1162
      %v1864 = vunpack.c.l.b16 %v1163
      %v1865 = vunpack.c.h.b16 %v1163
      %v1866 = vunpack.c.l.b16 %v1164
      %v1867 = vunpack.c.l.b16 %v1165
      %v1868 = vunpack.c.h.b16 %v1165
      %v1869 = vunpack.c.l.b16 %v1166
      %v1870 = vunpack.c.l.b16 %v1167
      %v1871 = vunpack.c.h.b16 %v1167
      %v1872 = vunpack.c.l.b16 %v1168
      %v1873 = vunpack.c.l.b16 %v1169
      %v1874 = vunpack.c.h.b16 %v1169
      %v1875 = vunpack.c.l.b16 %v1170
      %v1876 = vunpack.c.l.b16 %v1171
      %v1877 = vunpack.c.h.b16 %v1171
      %v1878 = vunpack.c.l.b16 %v1172
      %v1879 = vunpack.c.l.b16 %v1173
      %v1880 = vunpack.c.h.b16 %v1173
      %v1881 = vunpack.c.l.b16 %v1174
      %v1882 = vunpack.c.l.b16 %v1175
      %v1883 = vunpack.c.h.b16 %v1175
      %v1884 = vunpack.c.l.b16 %v1176
      %v1885 = vunpack.c.l.b16 %v1177
      %v1886 = vunpack.c.h.b16 %v1177
      %v1887 = vunpack.c.l.b16 %v1178
      %v1888 = vunpack.c.l.b16 %v1179
      %v1889 = vunpack.c.h.b16 %v1179
      %v1890 = vunpack.c.l.b16 %v1180
      %v1891 = vunpack.c.l.b16 %v1181
      %v1892 = vunpack.c.h.b16 %v1181
      %v1893 = vunpack.c.l.b16 %v1182
      %v1894 = vunpack.c.l.b16 %v1183
      %v1895 = vunpack.c.h.b16 %v1183
      %v1896 = vunpack.c.l.b16 %v1184
      %v1897 = vunpack.c.l.b16 %v1185
      %v1898 = vunpack.c.h.b16 %v1185
      %v1899 = vunpack.c.l.b16 %v1186
      %v1900 = vunpack.c.l.b16 %v1187
      %v1901 = vunpack.c.h.b16 %v1187
      %v1902 = vunpack.c.l.b16 %v1188
      %v1903 = vunpack.c.l.b16 %v1189
      %v1904 = vunpack.c.h.b16 %v1189
      %v1905 = vunpack.c.l.b16 %v1190
      %v1906 = vunpack.c.l.b16 %v1191
      %v1907 = vunpack.c.h.b16 %v1191
      %v1908 = vunpack.c.l.b16 %v1192
      %v1909 = vunpack.c.l.b16 %v1193
      %v1910 = vunpack.c.h.b16 %v1193
      %v1911 = vunpack.c.l.b16 %v1194
      %v1912 = vunpack.c.l.b16 %v1195
      %v1913 = vunpack.c.h.b16 %v1195
      %v1914 = vunpack.c.l.b16 %v1196
      %v1915 = vunpack.c.l.b16 %v1197
      %v1916 = vunpack.c.h.b16 %v1197
      %v1917 = vunpack.c.l.b16 %v1198
      %v1918 = vunpack.c.l.b16 %v1199
      %v1919 = vunpack.c.h.b16 %v1199
      %v1920 = vunpack.c.l.b16 %v1200
      %v1921 = vpack.c.b16 %v1492, %v1489
      %v1922 = vpack.c.b16 %v1493, %v1490
      %v1923 = vpack.c.b16 %v1494, %v1491
      %v1924 = vpack.c.b16 %v1498, %v1495
      %v1925 = vpack.c.b16 %v1499, %v1496
      %v1926 = vpack.c.b16 %v1500, %v1497
      %v1927 = vpack.c.b16 %v1504, %v1501
      %v1928 = vpack.c.b16 %v1505, %v1502
      %v1929 = vpack.c.b16 %v1506, %v1503
      %v1930 = vpack.c.b16 %v1510, %v1507
      %v1931 = vpack.c.b16 %v1511, %v1508
      %v1932 = vpack.c.b16 %v1512, %v1509
      %v1933 = vpack.c.b16 %v1516, %v1513
      %v1934 = vpack.c.b16 %v1517, %v1514
      %v1935 = vpack.c.b16 %v1518, %v1515
      %v1936 = vpack.c.b16 %v1522, %v1519
      %v1937 = vpack.c.b16 %v1523, %v1520
      %v1938 = vpack.c.b16 %v1524, %v1521
      %v1939 = vpack.c.b16 %v1528, %v1525
      %v1940 = vpack.c.b16 %v1529, %v1526
      %v1941 = vpack.c.b16 %v1530, %v1527
      %v1942 = vpack.c.b16 %v1534, %v1531
      %v1943 = vpack.c.b16 %v1535, %v1532
      %v1944 = vpack.c.b16 %v1536, %v1533
      %v1945 = vpack.c.b16 %v1540, %v1537
      %v1946 = vpack.c.b16 %v1541, %v1538
      %v1947 = vpack.c.b16 %v1542, %v1539
      %v1948 = vpack.c.b16 %v1546, %v1543
      %v1949 = vpack.c.b16 %v1547, %v1544
      %v1950 = vpack.c.b16 %v1548, %v1545
      %v1951 = vpack.c.b16 %v1552, %v1549
      %v1952 = vpack.c.b16 %v1553, %v1550
      %v1953 = vpack.c.b16 %v1554, %v1551
      %v1954 = vpack.c.b16 %v1558, %v1555
      %v1955 = vpack.c.b16 %v1559, %v1556
      %v1956 = vpack.c.b16 %v1560, %v1557
      %v1957 = vpack.c.b16 %v1564, %v1561
      %v1958 = vpack.c.b16 %v1565, %v1562
      %v1959 = vpack.c.b16 %v1566, %v1563
      %v1960 = vpack.c.b16 %v1570, %v1567
      %v1961 = vpack.c.b16 %v1571, %v1568
      %v1962 = vpack.c.b16 %v1572, %v1569
      %v1963 = vpack.c.b16 %v1576, %v1573
      %v1964 = vpack.c.b16 %v1577, %v1574
      %v1965 = vpack.c.b16 %v1578, %v1575
      %v1966 = vpack.c.b16 %v1582, %v1579
      %v1967 = vpack.c.b16 %v1583, %v1580
      %v1968 = vpack.c.b16 %v1584, %v1581
      %v1969 = vpack.c.b16 %v1588, %v1585
      %v1970 = vpack.c.b16 %v1589, %v1586
      %v1971 = vpack.c.b16 %v1590, %v1587
      %v1972 = vpack.c.b16 %v1594, %v1591
      %v1973 = vpack.c.b16 %v1595, %v1592
      %v1974 = vpack.c.b16 %v1596, %v1593
      %v1975 = vpack.c.b16 %v1600, %v1597
      %v1976 = vpack.c.b16 %v1601, %v1598
      %v1977 = vpack.c.b16 %v1602, %v1599
      %v1978 = vpack.c.b16 %v1606, %v1603
      %v1979 = vpack.c.b16 %v1607, %v1604
      %v1980 = vpack.c.b16 %v1608, %v1605
      %v1981 = vpack.c.b16 %v1612, %v1609
      %v1982 = vpack.c.b16 %v1613, %v1610
      %v1983 = vpack.c.b16 %v1614, %v1611
      %v1984 = vpack.c.b16 %v1618, %v1615
      %v1985 = vpack.c.b16 %v1619, %v1616
      %v1986 = vpack.c.b16 %v1620, %v1617
      %v1987 = vpack.c.b16 %v1624, %v1621
      %v1988 = vpack.c.b16 %v1625, %v1622
      %v1989 = vpack.c.b16 %v1626, %v1623
      %v1990 = vpack.c.b16 %v1630, %v1627
      %v1991 = vpack.c.b16 %v1631, %v1628
      %v1992 = vpack.c.b16 %v1632, %v1629
      %v1993 = vpack.c.b16 %v1636, %v1633
      %v1994 = vpack.c.b16 %v1637, %v1634
      %v1995 = vpack.c.b16 %v1638, %v1635
      %v1996 = vpack.c.b16 %v1642, %v1639
      %v1997 = vpack.c.b16 %v1643, %v1640
      %v1998 = vpack.c.b16 %v1644, %v1641
      %v1999 = vpack.c.b16 %v1648, %v1645
      %v2000 = vpack.c.b16 %v1649, %v1646
      %v2001 = vpack.c.b16 %v1650, %v1647
      %v2002 = vpack.c.b16 %v1654, %v1651
      %v2003 = vpack.c.b16 %v1655, %v1652
      %v2004 = vpack.c.b16 %v1656, %v1653
      %v2005 = vpack.c.b16 %v1660, %v1657
      %v2006 = vpack.c.b16 %v1661, %v1658
      %v2007 = vpack.c.b16 %v1662, %v1659
      %v2008 = vpack.c.b16 %v1666, %v1663
      %v2009 = vpack.c.b16 %v1667, %v1664
      %v2010 = vpack.c.b16 %v1668, %v1665
      %v2011 = vpack.c.b16 %v1672, %v1669
      %v2012 = vpack.c.b16 %v1673, %v1670
      %v2013 = vpack.c.b16 %v1674, %v1671
      %v2014 = vpack.c.b16 %v1678, %v1675
      %v2015 = vpack.c.b16 %v1679, %v1676
      %v2016 = vpack.c.b16 %v1680, %v1677
      %v2017 = vpack.c.b16 %v1684, %v1681
      %v2018 = vpack.c.b16 %v1685, %v1682
      %v2019 = vpack.c.b16 %v1686, %v1683
      %v2020 = vpack.c.b16 %v1690, %v1687
      %v2021 = vpack.c.b16 %v1691, %v1688
      %v2022 = vpack.c.b16 %v1692, %v1689
      %v2023 = vpack.c.b16 %v1696, %v1693
      %v2024 = vpack.c.b16 %v1697, %v1694
      %v2025 = vpack.c.b16 %v1698, %v1695
      %v2026 = vpack.c.b16 %v1702, %v1699
      %v2027 = vpack.c.b16 %v1703, %v1700
      %v2028 = vpack.c.b16 %v1704, %v1701
      %v2029 = vpack.c.b16 %v1708, %v1705
      %v2030 = vpack.c.b16 %v1709, %v1706
      %v2031 = vpack.c.b16 %v1710, %v1707
      %v2032 = vpack.c.b16 %v1714, %v1711
      %v2033 = vpack.c.b16 %v1715, %v1712
      %v2034 = vpack.c.b16 %v1716, %v1713
      %v2035 = vpack.c.b16 %v1720, %v1717
      %v2036 = vpack.c.b16 %v1721, %v1718
      %v2037 = vpack.c.b16 %v1722, %v1719
      %v2038 = vpack.c.b16 %v1726, %v1723
      %v2039 = vpack.c.b16 %v1727, %v1724
      %v2040 = vpack.c.b16 %v1728, %v1725
      %v2041 = vpack.c.b16 %v1732, %v1729
      %v2042 = vpack.c.b16 %v1733, %v1730
      %v2043 = vpack.c.b16 %v1734, %v1731
      %v2044 = vpack.c.b16 %v1738, %v1735
      %v2045 = vpack.c.b16 %v1739, %v1736
      %v2046 = vpack.c.b16 %v1740, %v1737
      %v2047 = vpack.c.b16 %v1744, %v1741
      %v2048 = vpack.c.b16 %v1745, %v1742
      %v2049 = vpack.c.b16 %v1746, %v1743
      %v2050 = vpack.c.b16 %v1750, %v1747
      %v2051 = vpack.c.b16 %v1751, %v1748
      %v2052 = vpack.c.b16 %v1752, %v1749
      %v2053 = vpack.c.b16 %v1756, %v1753
      %v2054 = vpack.c.b16 %v1757, %v1754
      %v2055 = vpack.c.b16 %v1758, %v1755
      %v2056 = vpack.c.b16 %v1762, %v1759
      %v2057 = vpack.c.b16 %v1763, %v1760
      %v2058 = vpack.c.b16 %v1764, %v1761
      %v2059 = vpack.c.b16 %v1768, %v1765
      %v2060 = vpack.c.b16 %v1769, %v1766
      %v2061 = vpack.c.b16 %v1770, %v1767
      %v2062 = vpack.c.b16 %v1774, %v1771
      %v2063 = vpack.c.b16 %v1775, %v1772
      %v2064 = vpack.c.b16 %v1776, %v1773
      %v2065 = vpack.c.b16 %v1780, %v1777
      %v2066 = vpack.c.b16 %v1781, %v1778
      %v2067 = vpack.c.b16 %v1782, %v1779
      %v2068 = vpack.c.b16 %v1786, %v1783
      %v2069 = vpack.c.b16 %v1787, %v1784
      %v2070 = vpack.c.b16 %v1788, %v1785
      %v2071 = vpack.c.b16 %v1792, %v1789
      %v2072 = vpack.c.b16 %v1793, %v1790
      %v2073 = vpack.c.b16 %v1794, %v1791
      %v2074 = vpack.c.b16 %v1798, %v1795
      %v2075 = vpack.c.b16 %v1799, %v1796
      %v2076 = vpack.c.b16 %v1800, %v1797
      %v2077 = vpack.c.b16 %v1804, %v1801
      %v2078 = vpack.c.b16 %v1805, %v1802
      %v2079 = vpack.c.b16 %v1806, %v1803
      %v2080 = vpack.c.b16 %v1810, %v1807
      %v2081 = vpack.c.b16 %v1811, %v1808
      %v2082 = vpack.c.b16 %v1812, %v1809
      %v2083 = vpack.c.b16 %v1816, %v1813
      %v2084 = vpack.c.b16 %v1817, %v1814
      %v2085 = vpack.c.b16 %v1818, %v1815
      %v2086 = vpack.c.b16 %v1822, %v1819
      %v2087 = vpack.c.b16 %v1823, %v1820
      %v2088 = vpack.c.b16 %v1824, %v1821
      %v2089 = vpack.c.b16 %v1828, %v1825
      %v2090 = vpack.c.b16 %v1829, %v1826
      %v2091 = vpack.c.b16 %v1830, %v1827
      %v2092 = vpack.c.b16 %v1834, %v1831
      %v2093 = vpack.c.b16 %v1835, %v1832
      %v2094 = vpack.c.b16 %v1836, %v1833
      %v2095 = vpack.c.b16 %v1840, %v1837
      %v2096 = vpack.c.b16 %v1841, %v1838
      %v2097 = vpack.c.b16 %v1842, %v1839
      %v2098 = vpack.c.b16 %v1846, %v1843
      %v2099 = vpack.c.b16 %v1847, %v1844
      %v2100 = vpack.c.b16 %v1848, %v1845
      %v2101 = vpack.c.b16 %v1852, %v1849
      %v2102 = vpack.c.b16 %v1853, %v1850
      %v2103 = vpack.c.b16 %v1854, %v1851
      %v2104 = vpack.c.b16 %v1858, %v1855
      %v2105 = vpack.c.b16 %v1859, %v1856
      %v2106 = vpack.c.b16 %v1860, %v1857
      %v2107 = vpack.c.b16 %v1864, %v1861
      %v2108 = vpack.c.b16 %v1865, %v1862
      %v2109 = vpack.c.b16 %v1866, %v1863
      %v2110 = vpack.c.b16 %v1870, %v1867
      %v2111 = vpack.c.b16 %v1871, %v1868
      %v2112 = vpack.c.b16 %v1872, %v1869
      %v2113 = vpack.c.b16 %v1876, %v1873
      %v2114 = vpack.c.b16 %v1877, %v1874
      %v2115 = vpack.c.b16 %v1878, %v1875
      %v2116 = vpack.c.b16 %v1882, %v1879
      %v2117 = vpack.c.b16 %v1883, %v1880
      %v2118 = vpack.c.b16 %v1884, %v1881
      %v2119 = vpack.c.b16 %v1888, %v1885
      %v2120 = vpack.c.b16 %v1889, %v1886
      %v2121 = vpack.c.b16 %v1890, %v1887
      %v2122 = vpack.c.b16 %v1894, %v1891
      %v2123 = vpack.c.b16 %v1895, %v1892
      %v2124 = vpack.c.b16 %v1896, %v1893
      %v2125 = vpack.c.b16 %v1900, %v1897
      %v2126 = vpack.c.b16 %v1901, %v1898
      %v2127 = vpack.c.b16 %v1902, %v1899
      %v2128 = vpack.c.b16 %v1906, %v1903
      %v2129 = vpack.c.b16 %v1907, %v1904
      %v2130 = vpack.c.b16 %v1908, %v1905
      %v2131 = vpack.c.b16 %v1912, %v1909
      %v2132 = vpack.c.b16 %v1913, %v1910
      %v2133 = vpack.c.b16 %v1914, %v1911
      %v2134 = vpack.c.b16 %v1918, %v1915
      %v2135 = vpack.c.b16 %v1919, %v1916
      %v2136 = vpack.c.b16 %v1920, %v1917
      %2353 = vmatprep.subr.bf16.mxu0 %v1943
      %2354 = vmatpush1.bf16.msra.mxu0 %v1942
      %2355 = vmatprep.subr.bf16.mxu0 %v1940
      %2356 = vmatpush1.bf16.msra.mxu0 %v1939
      %2357 = vmatprep.subr.bf16.mxu0 %v1937
      %2358 = vmatpush1.bf16.msra.mxu0 %v1936
      %2359 = vmatprep.subr.bf16.mxu0 %v1934
      %2360 = vmatpush1.bf16.msra.mxu0 %v1933
      %2361 = vmatprep.subr.bf16.mxu0 %v1931
      %2362 = vmatpush1.bf16.msra.mxu0 %v1930
      %2363 = vmatprep.subr.bf16.mxu0 %v1928
      %2364 = vmatpush1.bf16.msra.mxu0 %v1927
      %2365 = vmatprep.subr.bf16.mxu0 %v1925
      %2366 = vmatpush1.bf16.msra.mxu0 %v1924
      %2367 = vmatprep.subr.bf16.mxu0 %v1922
      %2368 = vmatpush1.bf16.msra.mxu0 %v1921
      %2369 = vmatprep.subr.bf16.mxu0 %v1967
      %2370 = vmatpush2.bf16.msra.mxu0 %v1966
      %2371 = vmatprep.subr.bf16.mxu0 %v1964
      %2372 = vmatpush2.bf16.msra.mxu0 %v1963
      %2373 = vmatprep.subr.bf16.mxu0 %v1961
      %2374 = vmatpush2.bf16.msra.mxu0 %v1960
      %2375 = vmatprep.subr.bf16.mxu0 %v1958
      %2376 = vmatpush2.bf16.msra.mxu0 %v1957
      %2377 = vmatprep.subr.bf16.mxu0 %v1955
      %2378 = vmatpush2.bf16.msra.mxu0 %v1954
      %2379 = vmatprep.subr.bf16.mxu0 %v1952
      %2380 = vmatpush2.bf16.msra.mxu0 %v1951
      %2381 = vmatprep.subr.bf16.mxu0 %v1949
      %2382 = vmatpush2.bf16.msra.mxu0 %v1948
      %2383 = vmatprep.subr.bf16.mxu0 %v1946
      %2384 = vmatpush2.bf16.msra.mxu0 %v1945
      %2385 = vmatprep.mubr.bf16.mxu0 %v822
      %2386 = vmatmul.mubr.bf16.gmra.mxu0 %v821
      %v2387 = vpop.f32.mrf.mxu0
      %v2388 = vadd.f32 0.0, %v2387
      %v2389 = vpop.f32.mrf.mxu0
      %v2390 = vadd.f32 0.0, %v2389
      %v2391 = vpop.f32.mrf.mxu0
      %v2392 = vadd.f32 0.0, %v2391
      %v2393 = vpop.f32.mrf.mxu0
      %v2394 = vadd.f32 0.0, %v2393
      %2395 = vmatprep.mubr.bf16.mxu0 %v823
      %2396 = vmatmul.mubr.bf16.gmra.mxu0 %v822
      %v2397 = vpop.f32.mrf.mxu0
      %v2398 = vadd.f32 0.0, %v2397
      %v2399 = vpop.f32.mrf.mxu0
      %v2400 = vadd.f32 0.0, %v2399
      %v2401 = vpop.f32.mrf.mxu0
      %v2402 = vadd.f32 0.0, %v2401
      %v2403 = vpop.f32.mrf.mxu0
      %v2404 = vadd.f32 0.0, %v2403
      %2405 = vmatprep.mubr.bf16.mxu0 %v824
      %2406 = vmatmul.mubr.bf16.gmra.mxu0 %v823
      %v2407 = vpop.f32.mrf.mxu0
      %v2408 = vadd.f32 0.0, %v2407
      %v2409 = vpop.f32.mrf.mxu0
      %v2410 = vadd.f32 0.0, %v2409
      %v2411 = vpop.f32.mrf.mxu0
      %v2412 = vadd.f32 0.0, %v2411
      %v2413 = vpop.f32.mrf.mxu0
      %v2414 = vadd.f32 0.0, %v2413
      %2415 = vmatprep.mubr.bf16.mxu0 %v833
      %2416 = vmatmul.mubr.bf16.gmra.mxu0 %v824
      %v2417 = vpop.f32.mrf.mxu0
      %v2418 = vadd.f32 0.0, %v2417
      %v2419 = vpop.f32.mrf.mxu0
      %v2420 = vadd.f32 0.0, %v2419
      %v2421 = vpop.f32.mrf.mxu0
      %v2422 = vadd.f32 0.0, %v2421
      %v2423 = vpop.f32.mrf.mxu0
      %v2424 = vadd.f32 0.0, %v2423
      %2425 = vdwg.mxu0
      %2426 = vmatprep.subr.bf16.mxu0 %v1991
      %2427 = vmatpush1.bf16.msra.mxu0 %v1990
      %2428 = vmatprep.subr.bf16.mxu0 %v1988
      %2429 = vmatpush1.bf16.msra.mxu0 %v1987
      %2430 = vmatprep.subr.bf16.mxu0 %v1985
      %2431 = vmatpush1.bf16.msra.mxu0 %v1984
      %2432 = vmatprep.subr.bf16.mxu0 %v1982
      %2433 = vmatpush1.bf16.msra.mxu0 %v1981
      %2434 = vmatprep.subr.bf16.mxu0 %v1979
      %2435 = vmatpush1.bf16.msra.mxu0 %v1978
      %2436 = vmatprep.subr.bf16.mxu0 %v1976
      %2437 = vmatpush1.bf16.msra.mxu0 %v1975
      %2438 = vmatprep.subr.bf16.mxu0 %v1973
      %2439 = vmatpush1.bf16.msra.mxu0 %v1972
      %2440 = vmatprep.subr.bf16.mxu0 %v1970
      %2441 = vmatpush1.bf16.msra.mxu0 %v1969
      %2442 = vmatprep.subr.bf16.mxu0 %v2015
      %2443 = vmatpush2.bf16.msra.mxu0 %v2014
      %2444 = vmatprep.subr.bf16.mxu0 %v2012
      %2445 = vmatpush2.bf16.msra.mxu0 %v2011
      %2446 = vmatprep.subr.bf16.mxu0 %v2009
      %2447 = vmatpush2.bf16.msra.mxu0 %v2008
      %2448 = vmatprep.subr.bf16.mxu0 %v2006
      %2449 = vmatpush2.bf16.msra.mxu0 %v2005
      %2450 = vmatprep.subr.bf16.mxu0 %v2003
      %2451 = vmatpush2.bf16.msra.mxu0 %v2002
      %2452 = vmatprep.subr.bf16.mxu0 %v2000
      %2453 = vmatpush2.bf16.msra.mxu0 %v1999
      %2454 = vmatprep.subr.bf16.mxu0 %v1997
      %2455 = vmatpush2.bf16.msra.mxu0 %v1996
      %2456 = vmatprep.subr.bf16.mxu0 %v1994
      %2457 = vmatpush2.bf16.msra.mxu0 %v1993
      %2458 = vmatprep.mubr.bf16.mxu0 %v857
      %2459 = vmatmul.mubr.bf16.gmra.mxu0 %v823
      %v2460 = vpop.f32.mrf.mxu0
      %v2461 = vadd.f32 %v2388, %v2460
      %v2462 = vpop.f32.mrf.mxu0
      %v2463 = vadd.f32 %v2390, %v2462
      %v2464 = vpop.f32.mrf.mxu0
      %v2465 = vadd.f32 %v2392, %v2464
      %v2466 = vpop.f32.mrf.mxu0
      %v2467 = vadd.f32 %v2394, %v2466
      %2468 = vmatprep.mubr.bf16.mxu0 %v858
      %2469 = vmatmul.mubr.bf16.gmra.mxu0 %v824
      %v2470 = vpop.f32.mrf.mxu0
      %v2471 = vadd.f32 %v2398, %v2470
      %v2472 = vpop.f32.mrf.mxu0
      %v2473 = vadd.f32 %v2400, %v2472
      %v2474 = vpop.f32.mrf.mxu0
      %v2475 = vadd.f32 %v2402, %v2474
      %v2476 = vpop.f32.mrf.mxu0
      %v2477 = vadd.f32 %v2404, %v2476
      %2478 = vmatprep.mubr.bf16.mxu0 %v859
      %2479 = vmatmul.mubr.bf16.gmra.mxu0 %v833
      %v2480 = vpop.f32.mrf.mxu0
      %v2481 = vadd.f32 %v2408, %v2480
      %v2482 = vpop.f32.mrf.mxu0
      %v2483 = vadd.f32 %v2410, %v2482
      %v2484 = vpop.f32.mrf.mxu0
      %v2485 = vadd.f32 %v2412, %v2484
      %v2486 = vpop.f32.mrf.mxu0
      %v2487 = vadd.f32 %v2414, %v2486
      %2488 = vmatprep.mubr.bf16.mxu0 %v860
      %2489 = vmatmul.mubr.bf16.gmra.mxu0 %v839
      %v2490 = vpop.f32.mrf.mxu0
      %v2491 = vadd.f32 %v2418, %v2490
      %v2492 = vpop.f32.mrf.mxu0
      %v2493 = vadd.f32 %v2420, %v2492
      %v2494 = vpop.f32.mrf.mxu0
      %v2495 = vadd.f32 %v2422, %v2494
      %v2496 = vpop.f32.mrf.mxu0
      %v2497 = vadd.f32 %v2424, %v2496
      %2498 = vdwg.mxu0
      %2499 = vmatprep.subr.bf16.mxu0 %v2039
      %2500 = vmatpush1.bf16.msra.mxu0 %v2038
      %2501 = vmatprep.subr.bf16.mxu0 %v2036
      %2502 = vmatpush1.bf16.msra.mxu0 %v2035
      %2503 = vmatprep.subr.bf16.mxu0 %v2033
      %2504 = vmatpush1.bf16.msra.mxu0 %v2032
      %2505 = vmatprep.subr.bf16.mxu0 %v2030
      %2506 = vmatpush1.bf16.msra.mxu0 %v2029
      %2507 = vmatprep.subr.bf16.mxu0 %v2027
      %2508 = vmatpush1.bf16.msra.mxu0 %v2026
      %2509 = vmatprep.subr.bf16.mxu0 %v2024
      %2510 = vmatpush1.bf16.msra.mxu0 %v2023
      %2511 = vmatprep.subr.bf16.mxu0 %v2021
      %2512 = vmatpush1.bf16.msra.mxu0 %v2020
      %2513 = vmatprep.subr.bf16.mxu0 %v2018
      %2514 = vmatpush1.bf16.msra.mxu0 %v2017
      %2515 = vmatprep.subr.bf16.mxu0 %v2063
      %2516 = vmatpush2.bf16.msra.mxu0 %v2062
      %2517 = vmatprep.subr.bf16.mxu0 %v2060
      %2518 = vmatpush2.bf16.msra.mxu0 %v2059
      %2519 = vmatprep.subr.bf16.mxu0 %v2057
      %2520 = vmatpush2.bf16.msra.mxu0 %v2056
      %2521 = vmatprep.subr.bf16.mxu0 %v2054
      %2522 = vmatpush2.bf16.msra.mxu0 %v2053
      %2523 = vmatprep.subr.bf16.mxu0 %v2051
      %2524 = vmatpush2.bf16.msra.mxu0 %v2050
      %2525 = vmatprep.subr.bf16.mxu0 %v2048
      %2526 = vmatpush2.bf16.msra.mxu0 %v2047
      %2527 = vmatprep.subr.bf16.mxu0 %v2045
      %2528 = vmatpush2.bf16.msra.mxu0 %v2044
      %2529 = vmatprep.subr.bf16.mxu0 %v2042
      %2530 = vmatpush2.bf16.msra.mxu0 %v2041
      %2531 = vmatprep.mubr.bf16.mxu0 %v859
      %2532 = vmatmul.mubr.bf16.gmra.mxu0 %v858
      %v2533 = vpop.f32.mrf.mxu0
      %v2534 = vadd.f32 %v2461, %v2533
      %v2535 = vpop.f32.mrf.mxu0
      %v2536 = vadd.f32 %v2463, %v2535
      %v2537 = vpop.f32.mrf.mxu0
      %v2538 = vadd.f32 %v2465, %v2537
      %v2539 = vpop.f32.mrf.mxu0
      %v2540 = vadd.f32 %v2467, %v2539
      %2541 = vmatprep.mubr.bf16.mxu0 %v860
      %2542 = vmatmul.mubr.bf16.gmra.mxu0 %v859
      %v2543 = vpop.f32.mrf.mxu0
      %v2544 = vadd.f32 %v2471, %v2543
      %v2545 = vpop.f32.mrf.mxu0
      %v2546 = vadd.f32 %v2473, %v2545
      %v2547 = vpop.f32.mrf.mxu0
      %v2548 = vadd.f32 %v2475, %v2547
      %v2549 = vpop.f32.mrf.mxu0
      %v2550 = vadd.f32 %v2477, %v2549
      %2551 = vmatprep.mubr.bf16.mxu0 %v869
      %2552 = vmatmul.mubr.bf16.gmra.mxu0 %v860
      %v2553 = vpop.f32.mrf.mxu0
      %v2554 = vadd.f32 %v2481, %v2553
      %v2555 = vpop.f32.mrf.mxu0
      %v2556 = vadd.f32 %v2483, %v2555
      %v2557 = vpop.f32.mrf.mxu0
      %v2558 = vadd.f32 %v2485, %v2557
      %v2559 = vpop.f32.mrf.mxu0
      %v2560 = vadd.f32 %v2487, %v2559
      %2561 = vmatprep.mubr.bf16.mxu0 %v875
      %2562 = vmatmul.mubr.bf16.gmra.mxu0 %v869
      %v2563 = vpop.f32.mrf.mxu0
      %v2564 = vadd.f32 %v2491, %v2563
      %v2565 = vpop.f32.mrf.mxu0
      %v2566 = vadd.f32 %v2493, %v2565
      %v2567 = vpop.f32.mrf.mxu0
      %v2568 = vadd.f32 %v2495, %v2567
      %v2569 = vpop.f32.mrf.mxu0
      %v2570 = vadd.f32 %v2497, %v2569
      %2571 = vdwg.mxu0
      %2572 = vmatprep.subr.bf16.mxu0 %v2087
      %2573 = vmatpush1.bf16.msra.mxu0 %v2086
      %2574 = vmatprep.subr.bf16.mxu0 %v2084
      %2575 = vmatpush1.bf16.msra.mxu0 %v2083
      %2576 = vmatprep.subr.bf16.mxu0 %v2081
      %2577 = vmatpush1.bf16.msra.mxu0 %v2080
      %2578 = vmatprep.subr.bf16.mxu0 %v2078
      %2579 = vmatpush1.bf16.msra.mxu0 %v2077
      %2580 = vmatprep.subr.bf16.mxu0 %v2075
      %2581 = vmatpush1.bf16.msra.mxu0 %v2074
      %2582 = vmatprep.subr.bf16.mxu0 %v2072
      %2583 = vmatpush1.bf16.msra.mxu0 %v2071
      %2584 = vmatprep.subr.bf16.mxu0 %v2069
      %2585 = vmatpush1.bf16.msra.mxu0 %v2068
      %2586 = vmatprep.subr.bf16.mxu0 %v2066
      %2587 = vmatpush1.bf16.msra.mxu0 %v2065
      %2588 = vmatprep.subr.bf16.mxu0 %v2111
      %2589 = vmatpush2.bf16.msra.mxu0 %v2110
      %2590 = vmatprep.subr.bf16.mxu0 %v2108
      %2591 = vmatpush2.bf16.msra.mxu0 %v2107
      %2592 = vmatprep.subr.bf16.mxu0 %v2105
      %2593 = vmatpush2.bf16.msra.mxu0 %v2104
      %2594 = vmatprep.subr.bf16.mxu0 %v2102
      %2595 = vmatpush2.bf16.msra.mxu0 %v2101
      %2596 = vmatprep.subr.bf16.mxu0 %v2099
      %2597 = vmatpush2.bf16.msra.mxu0 %v2098
      %2598 = vmatprep.subr.bf16.mxu0 %v2096
      %2599 = vmatpush2.bf16.msra.mxu0 %v2095
      %2600 = vmatprep.subr.bf16.mxu0 %v2093
      %2601 = vmatpush2.bf16.msra.mxu0 %v2092
      %2602 = vmatprep.subr.bf16.mxu0 %v2090
      %2603 = vmatpush2.bf16.msra.mxu0 %v2089
      %2604 = vmatprep.mubr.bf16.mxu0 %v894
      %2605 = vmatmul.mubr.bf16.gmra.mxu0 %v893
      %v2606 = vpop.f32.mrf.mxu0
      %v2607 = vadd.f32 %v2534, %v2606
      %v2608 = vpop.f32.mrf.mxu0
      %v2609 = vadd.f32 %v2536, %v2608
      %v2610 = vpop.f32.mrf.mxu0
      %v2611 = vadd.f32 %v2538, %v2610
      %v2612 = vpop.f32.mrf.mxu0
      %v2613 = vadd.f32 %v2540, %v2612
      %2614 = vmatprep.mubr.bf16.mxu0 %v895
      %2615 = vmatmul.mubr.bf16.gmra.mxu0 %v894
      %v2616 = vpop.f32.mrf.mxu0
      %v2617 = vadd.f32 %v2544, %v2616
      %v2618 = vpop.f32.mrf.mxu0
      %v2619 = vadd.f32 %v2546, %v2618
      %v2620 = vpop.f32.mrf.mxu0
      %v2621 = vadd.f32 %v2548, %v2620
      %v2622 = vpop.f32.mrf.mxu0
      %v2623 = vadd.f32 %v2550, %v2622
      %2624 = vmatprep.mubr.bf16.mxu0 %v896
      %2625 = vmatmul.mubr.bf16.gmra.mxu0 %v895
      %v2626 = vpop.f32.mrf.mxu0
      %v2627 = vadd.f32 %v2554, %v2626
      %v2628 = vpop.f32.mrf.mxu0
      %v2629 = vadd.f32 %v2556, %v2628
      %v2630 = vpop.f32.mrf.mxu0
      %v2631 = vadd.f32 %v2558, %v2630
      %v2632 = vpop.f32.mrf.mxu0
      %v2633 = vadd.f32 %v2560, %v2632
      %2634 = vmatprep.mubr.bf16.mxu0 %v905
      %2635 = vmatmul.mubr.bf16.gmra.mxu0 %v896
      %v2636 = vpop.f32.mrf.mxu0
      %v2637 = vadd.f32 %v2564, %v2636
      %v2638 = vpop.f32.mrf.mxu0
      %v2639 = vadd.f32 %v2566, %v2638
      %v2640 = vpop.f32.mrf.mxu0
      %v2641 = vadd.f32 %v2568, %v2640
      %v2642 = vpop.f32.mrf.mxu0
      %v2643 = vadd.f32 %v2570, %v2642
      %2644 = vdwg.mxu0
      %2645 = vmatprep.subr.bf16.mxu0 %v2135
      %2646 = vmatpush1.bf16.msra.mxu0 %v2134
      %2647 = vmatprep.subr.bf16.mxu0 %v2132
      %2648 = vmatpush1.bf16.msra.mxu0 %v2131
      %2649 = vmatprep.subr.bf16.mxu0 %v2129
      %2650 = vmatpush1.bf16.msra.mxu0 %v2128
      %2651 = vmatprep.subr.bf16.mxu0 %v2126
      %2652 = vmatpush1.bf16.msra.mxu0 %v2125
      %2653 = vmatprep.subr.bf16.mxu0 %v2123
      %2654 = vmatpush1.bf16.msra.mxu0 %v2122
      %2655 = vmatprep.subr.bf16.mxu0 %v2120
      %2656 = vmatpush1.bf16.msra.mxu0 %v2119
      %2657 = vmatprep.subr.bf16.mxu0 %v2117
      %2658 = vmatpush1.bf16.msra.mxu0 %v2116
      %2659 = vmatprep.subr.bf16.mxu0 %v2114
      %2660 = vmatpush1.bf16.msra.mxu0 %v2113
      %2661 = vmatprep.subr.bf16.mxu0 0
      %2662 = vmatpush2.bf16.msra.mxu0 0
      %2663 = vmatprep.subr.bf16.mxu0 0
      %2664 = vmatpush2.bf16.msra.mxu0 0
      %2665 = vmatprep.subr.bf16.mxu0 0
      %2666 = vmatpush2.bf16.msra.mxu0 0
      %2667 = vmatprep.subr.bf16.mxu0 0
      %2668 = vmatpush2.bf16.msra.mxu0 0
      %2669 = vmatprep.subr.bf16.mxu0 0
      %2670 = vmatpush2.bf16.msra.mxu0 0
      %2671 = vmatprep.subr.bf16.mxu0 0
      %2672 = vmatpush2.bf16.msra.mxu0 0
      %2673 = vmatprep.subr.bf16.mxu0 0
      %2674 = vmatpush2.bf16.msra.mxu0 0
      %2675 = vmatprep.subr.bf16.mxu0 0
      %2676 = vmatpush2.bf16.msra.mxu0 0
      %2677 = vmatprep.mubr.bf16.mxu0 0
      %2678 = vmatmul.mubr.bf16.gmra.mxu0 %v895
      %v2679 = vpop.f32.mrf.mxu0
      %v2680 = vadd.f32 %v2607, %v2679
      %v2681 = vpop.f32.mrf.mxu0
      %v2682 = vadd.f32 %v2609, %v2681
      %v2683 = vpop.f32.mrf.mxu0
      %v2684 = vadd.f32 %v2611, %v2683
      %v2685 = vpop.f32.mrf.mxu0
      %v2686 = vadd.f32 %v2613, %v2685
      %2687 = vmatprep.mubr.bf16.mxu0 0
      %2688 = vmatmul.mubr.bf16.gmra.mxu0 %v896
      %v2689 = vpop.f32.mrf.mxu0
      %v2690 = vadd.f32 %v2617, %v2689
      %v2691 = vpop.f32.mrf.mxu0
      %v2692 = vadd.f32 %v2619, %v2691
      %v2693 = vpop.f32.mrf.mxu0
      %v2694 = vadd.f32 %v2621, %v2693
      %v2695 = vpop.f32.mrf.mxu0
      %v2696 = vadd.f32 %v2623, %v2695
      %2697 = vmatprep.mubr.bf16.mxu0 0
      %2698 = vmatmul.mubr.bf16.gmra.mxu0 %v905
      %v2699 = vpop.f32.mrf.mxu0
      %v2700 = vadd.f32 %v2627, %v2699
      %v2701 = vpop.f32.mrf.mxu0
      %v2702 = vadd.f32 %v2629, %v2701
      %v2703 = vpop.f32.mrf.mxu0
      %v2704 = vadd.f32 %v2631, %v2703
      %v2705 = vpop.f32.mrf.mxu0
      %v2706 = vadd.f32 %v2633, %v2705
      %2707 = vmatprep.mubr.bf16.mxu0 0
      %2708 = vmatmul.mubr.bf16.gmra.mxu0 %v911
      %v2709 = vpop.f32.mrf.mxu0
      %v2710 = vadd.f32 %v2637, %v2709
      %v2711 = vpop.f32.mrf.mxu0
      %v2712 = vadd.f32 %v2639, %v2711
      %v2713 = vpop.f32.mrf.mxu0
      %v2714 = vadd.f32 %v2641, %v2713
      %v2715 = vpop.f32.mrf.mxu0
      %v2716 = vadd.f32 %v2643, %v2715
      %2717 = vdwg.mxu0
      %2718 = vmatprep.subr.bf16.mxu0 0
      %2719 = vmatpush1.bf16.msra.mxu0 %v1944
      %2720 = vmatprep.subr.bf16.mxu0 0
      %2721 = vmatpush1.bf16.msra.mxu0 %v1941
      %2722 = vmatprep.subr.bf16.mxu0 0
      %2723 = vmatpush1.bf16.msra.mxu0 %v1938
      %2724 = vmatprep.subr.bf16.mxu0 0
      %2725 = vmatpush1.bf16.msra.mxu0 %v1935
      %2726 = vmatprep.subr.bf16.mxu0 0
      %2727 = vmatpush1.bf16.msra.mxu0 %v1932
      %2728 = vmatprep.subr.bf16.mxu0 0
      %2729 = vmatpush1.bf16.msra.mxu0 %v1929
      %2730 = vmatprep.subr.bf16.mxu0 0
      %2731 = vmatpush1.bf16.msra.mxu0 %v1926
      %2732 = vmatprep.subr.bf16.mxu0 0
      %2733 = vmatpush1.bf16.msra.mxu0 %v1923
      %2734 = vmatprep.subr.bf16.mxu0 0
      %2735 = vmatpush2.bf16.msra.mxu0 %v1968
      %2736 = vmatprep.subr.bf16.mxu0 0
      %2737 = vmatpush2.bf16.msra.mxu0 %v1965
      %2738 = vmatprep.subr.bf16.mxu0 0
      %2739 = vmatpush2.bf16.msra.mxu0 %v1962
      %2740 = vmatprep.subr.bf16.mxu0 0
      %2741 = vmatpush2.bf16.msra.mxu0 %v1959
      %2742 = vmatprep.subr.bf16.mxu0 0
      %2743 = vmatpush2.bf16.msra.mxu0 %v1956
      %2744 = vmatprep.subr.bf16.mxu0 0
      %2745 = vmatpush2.bf16.msra.mxu0 %v1953
      %2746 = vmatprep.subr.bf16.mxu0 0
      %2747 = vmatpush2.bf16.msra.mxu0 %v1950
      %2748 = vmatprep.subr.bf16.mxu0 0
      %2749 = vmatpush2.bf16.msra.mxu0 %v1947
      %2750 = vmatprep.mubr.bf16.mxu0 %v822
      %2751 = vmatmul.mubr.bf16.gmra.mxu0 %v821
      %v2752 = vpop.f32.mrf.mxu0
      %v2753 = vadd.f32 0.0, %v2752
      %v2754 = vpop.f32.mrf.mxu0
      %v2755 = vpop.f32.mrf.mxu0
      %v2756 = vadd.f32 0.0, %v2755
      %v2757 = vpop.f32.mrf.mxu0
      %2758 = vmatprep.mubr.bf16.mxu0 %v823
      %2759 = vmatmul.mubr.bf16.gmra.mxu0 %v822
      %v2760 = vpop.f32.mrf.mxu0
      %v2761 = vadd.f32 0.0, %v2760
      %v2762 = vpop.f32.mrf.mxu0
      %v2763 = vpop.f32.mrf.mxu0
      %v2764 = vadd.f32 0.0, %v2763
      %v2765 = vpop.f32.mrf.mxu0
      %2766 = vmatprep.mubr.bf16.mxu0 %v824
      %2767 = vmatmul.mubr.bf16.gmra.mxu0 %v823
      %v2768 = vpop.f32.mrf.mxu0
      %v2769 = vadd.f32 0.0, %v2768
      %v2770 = vpop.f32.mrf.mxu0
      %v2771 = vpop.f32.mrf.mxu0
      %v2772 = vadd.f32 0.0, %v2771
      %v2773 = vpop.f32.mrf.mxu0
      %2774 = vmatprep.mubr.bf16.mxu0 %v833
      %2775 = vmatmul.mubr.bf16.gmra.mxu0 %v824
      %v2776 = vpop.f32.mrf.mxu0
      %v2777 = vadd.f32 0.0, %v2776
      %v2778 = vpop.f32.mrf.mxu0
      %v2779 = vpop.f32.mrf.mxu0
      %v2780 = vadd.f32 0.0, %v2779
      %v2781 = vpop.f32.mrf.mxu0
      %2782 = vdwg.mxu0
      %2783 = vmatprep.subr.bf16.mxu0 0
      %2784 = vmatpush1.bf16.msra.mxu0 %v1992
      %2785 = vmatprep.subr.bf16.mxu0 0
      %2786 = vmatpush1.bf16.msra.mxu0 %v1989
      %2787 = vmatprep.subr.bf16.mxu0 0
      %2788 = vmatpush1.bf16.msra.mxu0 %v1986
      %2789 = vmatprep.subr.bf16.mxu0 0
      %2790 = vmatpush1.bf16.msra.mxu0 %v1983
      %2791 = vmatprep.subr.bf16.mxu0 0
      %2792 = vmatpush1.bf16.msra.mxu0 %v1980
      %2793 = vmatprep.subr.bf16.mxu0 0
      %2794 = vmatpush1.bf16.msra.mxu0 %v1977
      %2795 = vmatprep.subr.bf16.mxu0 0
      %2796 = vmatpush1.bf16.msra.mxu0 %v1974
      %2797 = vmatprep.subr.bf16.mxu0 0
      %2798 = vmatpush1.bf16.msra.mxu0 %v1971
      %2799 = vmatprep.subr.bf16.mxu0 0
      %2800 = vmatpush2.bf16.msra.mxu0 %v2016
      %2801 = vmatprep.subr.bf16.mxu0 0
      %2802 = vmatpush2.bf16.msra.mxu0 %v2013
      %2803 = vmatprep.subr.bf16.mxu0 0
      %2804 = vmatpush2.bf16.msra.mxu0 %v2010
      %2805 = vmatprep.subr.bf16.mxu0 0
      %2806 = vmatpush2.bf16.msra.mxu0 %v2007
      %2807 = vmatprep.subr.bf16.mxu0 0
      %2808 = vmatpush2.bf16.msra.mxu0 %v2004
      %2809 = vmatprep.subr.bf16.mxu0 0
      %2810 = vmatpush2.bf16.msra.mxu0 %v2001
      %2811 = vmatprep.subr.bf16.mxu0 0
      %2812 = vmatpush2.bf16.msra.mxu0 %v1998
      %2813 = vmatprep.subr.bf16.mxu0 0
      %2814 = vmatpush2.bf16.msra.mxu0 %v1995
      %2815 = vmatprep.mubr.bf16.mxu0 %v857
      %2816 = vmatmul.mubr.bf16.gmra.mxu0 %v823
      %v2817 = vpop.f32.mrf.mxu0
      %v2818 = vadd.f32 %v2753, %v2817
      %v2819 = vpop.f32.mrf.mxu0
      %v2820 = vpop.f32.mrf.mxu0
      %v2821 = vadd.f32 %v2756, %v2820
      %v2822 = vpop.f32.mrf.mxu0
      %2823 = vmatprep.mubr.bf16.mxu0 %v858
      %2824 = vmatmul.mubr.bf16.gmra.mxu0 %v824
      %v2825 = vpop.f32.mrf.mxu0
      %v2826 = vadd.f32 %v2761, %v2825
      %v2827 = vpop.f32.mrf.mxu0
      %v2828 = vpop.f32.mrf.mxu0
      %v2829 = vadd.f32 %v2764, %v2828
      %v2830 = vpop.f32.mrf.mxu0
      %2831 = vmatprep.mubr.bf16.mxu0 %v859
      %2832 = vmatmul.mubr.bf16.gmra.mxu0 %v833
      %v2833 = vpop.f32.mrf.mxu0
      %v2834 = vadd.f32 %v2769, %v2833
      %v2835 = vpop.f32.mrf.mxu0
      %v2836 = vpop.f32.mrf.mxu0
      %v2837 = vadd.f32 %v2772, %v2836
      %v2838 = vpop.f32.mrf.mxu0
      %2839 = vmatprep.mubr.bf16.mxu0 %v860
      %2840 = vmatmul.mubr.bf16.gmra.mxu0 %v839
      %v2841 = vpop.f32.mrf.mxu0
      %v2842 = vadd.f32 %v2777, %v2841
      %v2843 = vpop.f32.mrf.mxu0
      %v2844 = vpop.f32.mrf.mxu0
      %v2845 = vadd.f32 %v2780, %v2844
      %v2846 = vpop.f32.mrf.mxu0
      %2847 = vdwg.mxu0
      %2848 = vmatprep.subr.bf16.mxu0 0
      %2849 = vmatpush1.bf16.msra.mxu0 %v2040
      %2850 = vmatprep.subr.bf16.mxu0 0
      %2851 = vmatpush1.bf16.msra.mxu0 %v2037
      %2852 = vmatprep.subr.bf16.mxu0 0
      %2853 = vmatpush1.bf16.msra.mxu0 %v2034
      %2854 = vmatprep.subr.bf16.mxu0 0
      %2855 = vmatpush1.bf16.msra.mxu0 %v2031
      %2856 = vmatprep.subr.bf16.mxu0 0
      %2857 = vmatpush1.bf16.msra.mxu0 %v2028
      %2858 = vmatprep.subr.bf16.mxu0 0
      %2859 = vmatpush1.bf16.msra.mxu0 %v2025
      %2860 = vmatprep.subr.bf16.mxu0 0
      %2861 = vmatpush1.bf16.msra.mxu0 %v2022
      %2862 = vmatprep.subr.bf16.mxu0 0
      %2863 = vmatpush1.bf16.msra.mxu0 %v2019
      %2864 = vmatprep.subr.bf16.mxu0 0
      %2865 = vmatpush2.bf16.msra.mxu0 %v2064
      %2866 = vmatprep.subr.bf16.mxu0 0
      %2867 = vmatpush2.bf16.msra.mxu0 %v2061
      %2868 = vmatprep.subr.bf16.mxu0 0
      %2869 = vmatpush2.bf16.msra.mxu0 %v2058
      %2870 = vmatprep.subr.bf16.mxu0 0
      %2871 = vmatpush2.bf16.msra.mxu0 %v2055
      %2872 = vmatprep.subr.bf16.mxu0 0
      %2873 = vmatpush2.bf16.msra.mxu0 %v2052
      %2874 = vmatprep.subr.bf16.mxu0 0
      %2875 = vmatpush2.bf16.msra.mxu0 %v2049
      %2876 = vmatprep.subr.bf16.mxu0 0
      %2877 = vmatpush2.bf16.msra.mxu0 %v2046
      %2878 = vmatprep.subr.bf16.mxu0 0
      %2879 = vmatpush2.bf16.msra.mxu0 %v2043
      %2880 = vmatprep.mubr.bf16.mxu0 %v859
      %2881 = vmatmul.mubr.bf16.gmra.mxu0 %v858
      %v2882 = vpop.f32.mrf.mxu0
      %v2883 = vadd.f32 %v2818, %v2882
      %v2884 = vpop.f32.mrf.mxu0
      %v2885 = vpop.f32.mrf.mxu0
      %v2886 = vadd.f32 %v2821, %v2885
      %v2887 = vpop.f32.mrf.mxu0
      %2888 = vmatprep.mubr.bf16.mxu0 %v860
      %2889 = vmatmul.mubr.bf16.gmra.mxu0 %v859
      %v2890 = vpop.f32.mrf.mxu0
      %v2891 = vadd.f32 %v2826, %v2890
      %v2892 = vpop.f32.mrf.mxu0
      %v2893 = vpop.f32.mrf.mxu0
      %v2894 = vadd.f32 %v2829, %v2893
      %v2895 = vpop.f32.mrf.mxu0
      %2896 = vmatprep.mubr.bf16.mxu0 %v869
      %2897 = vmatmul.mubr.bf16.gmra.mxu0 %v860
      %v2898 = vpop.f32.mrf.mxu0
      %v2899 = vadd.f32 %v2834, %v2898
      %v2900 = vpop.f32.mrf.mxu0
      %v2901 = vpop.f32.mrf.mxu0
      %v2902 = vadd.f32 %v2837, %v2901
      %v2903 = vpop.f32.mrf.mxu0
      %2904 = vmatprep.mubr.bf16.mxu0 %v875
      %2905 = vmatmul.mubr.bf16.gmra.mxu0 %v869
      %v2906 = vpop.f32.mrf.mxu0
      %v2907 = vadd.f32 %v2842, %v2906
      %v2908 = vpop.f32.mrf.mxu0
      %v2909 = vpop.f32.mrf.mxu0
      %v2910 = vadd.f32 %v2845, %v2909
      %v2911 = vpop.f32.mrf.mxu0
      %2912 = vdwg.mxu0
      %2913 = vmatprep.subr.bf16.mxu0 0
      %2914 = vmatpush1.bf16.msra.mxu0 %v2088
      %2915 = vmatprep.subr.bf16.mxu0 0
      %2916 = vmatpush1.bf16.msra.mxu0 %v2085
      %2917 = vmatprep.subr.bf16.mxu0 0
      %2918 = vmatpush1.bf16.msra.mxu0 %v2082
      %2919 = vmatprep.subr.bf16.mxu0 0
      %2920 = vmatpush1.bf16.msra.mxu0 %v2079
      %2921 = vmatprep.subr.bf16.mxu0 0
      %2922 = vmatpush1.bf16.msra.mxu0 %v2076
      %2923 = vmatprep.subr.bf16.mxu0 0
      %2924 = vmatpush1.bf16.msra.mxu0 %v2073
      %2925 = vmatprep.subr.bf16.mxu0 0
      %2926 = vmatpush1.bf16.msra.mxu0 %v2070
      %2927 = vmatprep.subr.bf16.mxu0 0
      %2928 = vmatpush1.bf16.msra.mxu0 %v2067
      %2929 = vmatprep.subr.bf16.mxu0 0
      %2930 = vmatpush2.bf16.msra.mxu0 %v2112
      %2931 = vmatprep.subr.bf16.mxu0 0
      %2932 = vmatpush2.bf16.msra.mxu0 %v2109
      %2933 = vmatprep.subr.bf16.mxu0 0
      %2934 = vmatpush2.bf16.msra.mxu0 %v2106
      %2935 = vmatprep.subr.bf16.mxu0 0
      %2936 = vmatpush2.bf16.msra.mxu0 %v2103
      %2937 = vmatprep.subr.bf16.mxu0 0
      %2938 = vmatpush2.bf16.msra.mxu0 %v2100
      %2939 = vmatprep.subr.bf16.mxu0 0
      %2940 = vmatpush2.bf16.msra.mxu0 %v2097
      %2941 = vmatprep.subr.bf16.mxu0 0
      %2942 = vmatpush2.bf16.msra.mxu0 %v2094
      %2943 = vmatprep.subr.bf16.mxu0 0
      %2944 = vmatpush2.bf16.msra.mxu0 %v2091
      %2945 = vmatprep.mubr.bf16.mxu0 %v894
      %2946 = vmatmul.mubr.bf16.gmra.mxu0 %v893
      %v2947 = vpop.f32.mrf.mxu0
      %v2948 = vadd.f32 %v2883, %v2947
      %v2949 = vpop.f32.mrf.mxu0
      %v2950 = vpop.f32.mrf.mxu0
      %v2951 = vadd.f32 %v2886, %v2950
      %v2952 = vpop.f32.mrf.mxu0
      %2953 = vmatprep.mubr.bf16.mxu0 %v895
      %2954 = vmatmul.mubr.bf16.gmra.mxu0 %v894
      %v2955 = vpop.f32.mrf.mxu0
      %v2956 = vadd.f32 %v2891, %v2955
      %v2957 = vpop.f32.mrf.mxu0
      %v2958 = vpop.f32.mrf.mxu0
      %v2959 = vadd.f32 %v2894, %v2958
      %v2960 = vpop.f32.mrf.mxu0
      %2961 = vmatprep.mubr.bf16.mxu0 %v896
      %2962 = vmatmul.mubr.bf16.gmra.mxu0 %v895
      %v2963 = vpop.f32.mrf.mxu0
      %v2964 = vadd.f32 %v2899, %v2963
      %v2965 = vpop.f32.mrf.mxu0
      %v2966 = vpop.f32.mrf.mxu0
      %v2967 = vadd.f32 %v2902, %v2966
      %v2968 = vpop.f32.mrf.mxu0
      %2969 = vmatprep.mubr.bf16.mxu0 %v905
      %2970 = vmatmul.mubr.bf16.gmra.mxu0 %v896
      %v2971 = vpop.f32.mrf.mxu0
      %v2972 = vadd.f32 %v2907, %v2971
      %v2973 = vpop.f32.mrf.mxu0
      %v2974 = vpop.f32.mrf.mxu0
      %v2975 = vadd.f32 %v2910, %v2974
      %v2976 = vpop.f32.mrf.mxu0
      %2977 = vdwg.mxu0
      %2978 = vmatprep.subr.bf16.mxu0 0
      %2979 = vmatpush1.bf16.msra.mxu0 %v2136
      %2980 = vmatprep.subr.bf16.mxu0 0
      %2981 = vmatpush1.bf16.msra.mxu0 %v2133
      %2982 = vmatprep.subr.bf16.mxu0 0
      %2983 = vmatpush1.bf16.msra.mxu0 %v2130
      %2984 = vmatprep.subr.bf16.mxu0 0
      %2985 = vmatpush1.bf16.msra.mxu0 %v2127
      %2986 = vmatprep.subr.bf16.mxu0 0
      %2987 = vmatpush1.bf16.msra.mxu0 %v2124
      %2988 = vmatprep.subr.bf16.mxu0 0
      %2989 = vmatpush1.bf16.msra.mxu0 %v2121
      %2990 = vmatprep.subr.bf16.mxu0 0
      %2991 = vmatpush1.bf16.msra.mxu0 %v2118
      %2992 = vmatprep.subr.bf16.mxu0 0
      %2993 = vmatpush1.bf16.msra.mxu0 %v2115
      %2994 = vmatprep.subr.bf16.mxu0 0
      %2995 = vmatpush2.bf16.msra.mxu0 0
      %2996 = vmatprep.subr.bf16.mxu0 0
      %2997 = vmatpush2.bf16.msra.mxu0 0
      %2998 = vmatprep.subr.bf16.mxu0 0
      %2999 = vmatpush2.bf16.msra.mxu0 0
      %3000 = vmatprep.subr.bf16.mxu0 0
      %3001 = vmatpush2.bf16.msra.mxu0 0
      %3002 = vmatprep.subr.bf16.mxu0 0
      %3003 = vmatpush2.bf16.msra.mxu0 0
      %3004 = vmatprep.subr.bf16.mxu0 0
      %3005 = vmatpush2.bf16.msra.mxu0 0
      %3006 = vmatprep.subr.bf16.mxu0 0
      %3007 = vmatpush2.bf16.msra.mxu0 0
      %3008 = vmatprep.subr.bf16.mxu0 0
      %3009 = vmatpush2.bf16.msra.mxu0 0
      %3010 = vmatprep.mubr.bf16.mxu0 0
      %3011 = vmatmul.mubr.bf16.gmra.mxu0 %v895
      %v3012 = vpop.f32.mrf.mxu0
      %v3013 = vadd.f32 %v2948, %v3012
      %v3014 = vpop.f32.mrf.mxu0
      %v3015 = vpop.f32.mrf.mxu0
      %v3016 = vadd.f32 %v2951, %v3015
      %v3017 = vpop.f32.mrf.mxu0
      %3018 = vmatprep.mubr.bf16.mxu0 0
      %3019 = vmatmul.mubr.bf16.gmra.mxu0 %v896
      %v3020 = vpop.f32.mrf.mxu0
      %v3021 = vadd.f32 %v2956, %v3020
      %v3022 = vpop.f32.mrf.mxu0
      %v3023 = vpop.f32.mrf.mxu0
      %v3024 = vadd.f32 %v2959, %v3023
      %v3025 = vpop.f32.mrf.mxu0
      %3026 = vmatprep.mubr.bf16.mxu0 0
      %3027 = vmatmul.mubr.bf16.gmra.mxu0 %v905
      %v3028 = vpop.f32.mrf.mxu0
      %v3029 = vadd.f32 %v2964, %v3028
      %v3030 = vpop.f32.mrf.mxu0
      %v3031 = vpop.f32.mrf.mxu0
      %v3032 = vadd.f32 %v2967, %v3031
      %v3033 = vpop.f32.mrf.mxu0
      %3034 = vmatprep.mubr.bf16.mxu0 0
      %3035 = vmatmul.mubr.bf16.gmra.mxu0 %v911
      %v3036 = vpop.f32.mrf.mxu0
      %v3037 = vadd.f32 %v2972, %v3036
      %v3038 = vpop.f32.mrf.mxu0
      %v3039 = vpop.f32.mrf.mxu0
      %v3040 = vadd.f32 %v2975, %v3039
      %v3041 = vpop.f32.mrf.mxu0
      %3042 = vdwg.mxu0
      %3043 = vst [vmem:[#allocation2] sm:$0xff] %v2682
      %3044 = vst [vmem:[#allocation2 + $0x8] sm:$0xff] %v3013
      %3045 = vst [vmem:[#allocation2 + $0x10] sm:$0xff] %v2686
      %3046 = vst [vmem:[#allocation2 + $0x18] sm:$0xff] %v3016
      %3047 = vst [vmem:[#allocation2 + $0x20] sm:$0xff] %v2692
      %3048 = vst [vmem:[#allocation2 + $0x28] sm:$0xff] %v3021
      %3049 = vst [vmem:[#allocation2 + $0x30] sm:$0xff] %v2696
      %3050 = vst [vmem:[#allocation2 + $0x38] sm:$0xff] %v3024
      %3051 = vst [vmem:[#allocation2 + $0x40] sm:$0xff] %v2702
      %3052 = vst [vmem:[#allocation2 + $0x48] sm:$0xff] %v3029
      %3053 = vst [vmem:[#allocation2 + $0x50] sm:$0xff] %v2706
      %3054 = vst [vmem:[#allocation2 + $0x58] sm:$0xff] %v3032
      %3055 = vst [vmem:[#allocation2 + $0x60] sm:$0xff] %v2712
      %3056 = vst [vmem:[#allocation2 + $0x68] sm:$0xff] %v3037
      %3057 = vst [vmem:[#allocation2 + $0x70] sm:$0xff] %v2716
      %3058 = vst [vmem:[#allocation2 + $0x78] sm:$0xff] %v3040
      %3059 = vst [vmem:[#allocation2 + $0x80] sm:$0xff] 0.0
      %3060 = vst [vmem:[#allocation2 + $0x88] sm:$0xff] 0.0
      %v3061 = vld [vmem:[#allocation2] sm:$0xfe]
      %v3062 = vld [vmem:[#allocation2 + $0x10] sm:$0xff]
      %v3063 = vld [vmem:[#allocation2 + $0x20] sm:$0xff]
      %v3064 = vld [vmem:[#allocation2 + $0x30] sm:$0xff]
      %v3065 = vld [vmem:[#allocation2 + $0x40] sm:$0xff]
      %v3066 = vld [vmem:[#allocation2 + $0x50] sm:$0xff]
      %v3067 = vld [vmem:[#allocation2 + $0x60] sm:$0xff]
      %v3068 = vld [vmem:[#allocation2 + $0x70] sm:$0xff]
      %v3069 = vld [vmem:[#allocation2 + $0x80] sm:$0x1]
      %vm3079 = vcmask 1046528
      %v3080 = vrot.slane %v3061, 1
      %v3081 = vrot.slane %v3062, 1
      %v3082 = vsel %vm3079, %v3080, %v3081
      %v3083 = vrot.slane %v3063, 1
      %v3084 = vsel %vm3079, %v3081, %v3083
      %v3085 = vrot.slane %v3064, 1
      %v3086 = vsel %vm3079, %v3083, %v3085
      %v3087 = vrot.slane %v3065, 1
      %v3088 = vsel %vm3079, %v3085, %v3087
      %v3089 = vrot.slane %v3066, 1
      %v3090 = vsel %vm3079, %v3087, %v3089
      %v3091 = vrot.slane %v3067, 1
      %v3092 = vsel %vm3079, %v3089, %v3091
      %v3093 = vrot.slane %v3068, 1
      %v3094 = vsel %vm3079, %v3091, %v3093
      %v3095 = vrot.slane %v3069, 1
      %v3096 = vsel %vm3079, %v3093, %v3095
      %v3105 = vadd.f32 %v2680, %v3082
      %v3106 = vadd.f32 %v2684, %v3084
      %v3107 = vadd.f32 %v2690, %v3086
      %v3108 = vadd.f32 %v2694, %v3088
      %v3109 = vadd.f32 %v2700, %v3090
      %v3110 = vadd.f32 %v2704, %v3092
      %v3111 = vadd.f32 %v2710, %v3094
      %v3112 = vadd.f32 %v2714, %v3096
      %v3113 = vld [vmem:[#allocation2 + $0x8] sm:$0xfc]
      %v3114 = vld [vmem:[#allocation2 + $0x18] sm:$0xff]
      %v3115 = vld [vmem:[#allocation2 + $0x28] sm:$0xff]
      %v3116 = vld [vmem:[#allocation2 + $0x38] sm:$0xff]
      %v3117 = vld [vmem:[#allocation2 + $0x48] sm:$0xff]
      %v3118 = vld [vmem:[#allocation2 + $0x58] sm:$0xff]
      %v3119 = vld [vmem:[#allocation2 + $0x68] sm:$0xff]
      %v3120 = vld [vmem:[#allocation2 + $0x78] sm:$0xff]
      %v3121 = vld [vmem:[#allocation2 + $0x88] sm:$0x3]
      %vm3131 = vcmask 1045504
      %v3132 = vrot.slane %v3113, 2
      %v3133 = vrot.slane %v3114, 2
      %v3134 = vsel %vm3131, %v3132, %v3133
      %v3135 = vrot.slane %v3115, 2
      %v3136 = vsel %vm3131, %v3133, %v3135
      %v3137 = vrot.slane %v3116, 2
      %v3138 = vsel %vm3131, %v3135, %v3137
      %v3139 = vrot.slane %v3117, 2
      %v3140 = vsel %vm3131, %v3137, %v3139
      %v3141 = vrot.slane %v3118, 2
      %v3142 = vsel %vm3131, %v3139, %v3141
      %v3143 = vrot.slane %v3119, 2
      %v3144 = vsel %vm3131, %v3141, %v3143
      %v3145 = vrot.slane %v3120, 2
      %v3146 = vsel %vm3131, %v3143, %v3145
      %v3147 = vrot.slane %v3121, 2
      %v3148 = vsel %vm3131, %v3145, %v3147
      %v3157 = vadd.f32 %v3105, %v3134
      %v3158 = vadd.f32 %v3106, %v3136
      %v3159 = vadd.f32 %v3107, %v3138
      %v3160 = vadd.f32 %v3108, %v3140
      %v3161 = vadd.f32 %v3109, %v3142
      %v3162 = vadd.f32 %v3110, %v3144
      %v3163 = vadd.f32 %v3111, %v3146
      %v3164 = vadd.f32 %v3112, %v3148
      %v3165 = vld [vmem:[%s7] sm:$0x1]
      %v3167 = vlaneseq
      %v3168 = vshrl.u32 %v3167, 7
      %v3169 = vsub.s32 0, %v3168
      %v3170 = vrot.slane %v3165, %v3169
      %v3172 = vadd.f32 %v3157, %v3170
      %v3173 = vadd.f32 %v3158, %v3170
      %v3174 = vadd.f32 %v3159, %v3170
      %v3175 = vadd.f32 %v3160, %v3170
      %v3176 = vadd.f32 %v3161, %v3170
      %v3177 = vadd.f32 %v3162, %v3170
      %v3178 = vadd.f32 %v3163, %v3170
      %v3179 = vadd.f32 %v3164, %v3170
      %v3180 = vmax.f32 %v3172, 0.0
      %v3181 = vmax.f32 %v3173, 0.0
      %v3182 = vmax.f32 %v3174, 0.0
      %v3183 = vmax.f32 %v3175, 0.0
      %v3184 = vmax.f32 %v3176, 0.0
      %v3185 = vmax.f32 %v3177, 0.0
      %v3186 = vmax.f32 %v3178, 0.0
      %v3187 = vmax.f32 %v3179, 0.0
      %v3188 = vpack.c.bf16 %v3181, %v3180
      %v3189 = vpack.c.bf16 %v3183, %v3182
      %v3190 = vpack.c.bf16 %v3185, %v3184
      %v3191 = vpack.c.bf16 %v3187, %v3186
      %v3192 = vld [vmem:[%s8] sm:$0xf]
      %v3193 = vld [vmem:[%s8 + $0x4] sm:$0xf]
      %v3194 = vld [vmem:[%s8 + $0x8] sm:$0xf]
      %v3195 = vld [vmem:[%s8 + $0xc] sm:$0xf]
      %v3196 = vld [vmem:[%s8 + $0x10] sm:$0xf]
      %v3197 = vld [vmem:[%s8 + $0x14] sm:$0xf]
      %v3198 = vld [vmem:[%s8 + $0x18] sm:$0xf]
      %v3199 = vld [vmem:[%s8 + $0x1c] sm:$0xf]
      %v3200 = vld [vmem:[%s8 + $0x20] sm:$0xf]
      %v3201 = vld [vmem:[%s8 + $0x24] sm:$0xf]
      %v3202 = vld [vmem:[%s8 + $0x28] sm:$0xf]
      %v3203 = vld [vmem:[%s8 + $0x2c] sm:$0xf]
      %v3204 = vld [vmem:[%s8 + $0x30] sm:$0xf]
      %v3205 = vld [vmem:[%s8 + $0x34] sm:$0xf]
      %v3206 = vld [vmem:[%s8 + $0x38] sm:$0xf]
      %v3207 = vld [vmem:[%s8 + $0x3c] sm:$0xf]
      %v3208 = vld [vmem:[%s9] sm:$0x1]
      %v3210 = vlaneseq
      %v3211 = vshrl.u32 %v3210, 7
      %v3212 = vsub.s32 0, %v3211
      %v3213 = vrot.slane %v3208, %v3212
      %v3231 = vunpack.c.l.b16 %v3192
      %v3232 = vunpack.c.l.b16 %v3193
      %v3233 = vunpack.c.l.b16 %v3194
      %v3234 = vunpack.c.l.b16 %v3195
      %v3235 = vunpack.c.l.b16 %v3196
      %v3236 = vunpack.c.l.b16 %v3197
      %v3237 = vunpack.c.l.b16 %v3198
      %v3238 = vunpack.c.l.b16 %v3199
      %v3239 = vunpack.c.l.b16 %v3200
      %v3240 = vunpack.c.l.b16 %v3201
      %v3241 = vunpack.c.l.b16 %v3202
      %v3242 = vunpack.c.l.b16 %v3203
      %v3243 = vunpack.c.l.b16 %v3204
      %v3244 = vunpack.c.l.b16 %v3205
      %v3245 = vunpack.c.l.b16 %v3206
      %v3246 = vunpack.c.l.b16 %v3207
      %v3247 = vpack.c.b16 %v3232, %v3231
      %v3248 = vpack.c.b16 %v3234, %v3233
      %v3249 = vpack.c.b16 %v3236, %v3235
      %v3250 = vpack.c.b16 %v3238, %v3237
      %v3251 = vpack.c.b16 %v3240, %v3239
      %v3252 = vpack.c.b16 %v3242, %v3241
      %v3253 = vpack.c.b16 %v3244, %v3243
      %v3254 = vpack.c.b16 %v3246, %v3245
      %3263 = vmatprep.subr.bf16.mxu0 0
      %3264 = vmatpush1.bf16.msra.mxu0 %v3254
      %3265 = vmatprep.subr.bf16.mxu0 0
      %3266 = vmatpush1.bf16.msra.mxu0 %v3253
      %3267 = vmatprep.subr.bf16.mxu0 0
      %3268 = vmatpush1.bf16.msra.mxu0 %v3252
      %3269 = vmatprep.subr.bf16.mxu0 0
      %3270 = vmatpush1.bf16.msra.mxu0 %v3251
      %3271 = vmatprep.subr.bf16.mxu0 0
      %3272 = vmatpush1.bf16.msra.mxu0 %v3250
      %3273 = vmatprep.subr.bf16.mxu0 0
      %3274 = vmatpush1.bf16.msra.mxu0 %v3249
      %3275 = vmatprep.subr.bf16.mxu0 0
      %3276 = vmatpush1.bf16.msra.mxu0 %v3248
      %3277 = vmatprep.subr.bf16.mxu0 0
      %3278 = vmatpush1.bf16.msra.mxu0 %v3247
      %3279 = vmatprep.subr.bf16.mxu0 0
      %3280 = vmatpush2.bf16.msra.mxu0 0
      %3281 = vmatprep.subr.bf16.mxu0 0
      %3282 = vmatpush2.bf16.msra.mxu0 0
      %3283 = vmatprep.subr.bf16.mxu0 0
      %3284 = vmatpush2.bf16.msra.mxu0 0
      %3285 = vmatprep.subr.bf16.mxu0 0
      %3286 = vmatpush2.bf16.msra.mxu0 0
      %3287 = vmatprep.subr.bf16.mxu0 0
      %3288 = vmatpush2.bf16.msra.mxu0 0
      %3289 = vmatprep.subr.bf16.mxu0 0
      %3290 = vmatpush2.bf16.msra.mxu0 0
      %3291 = vmatprep.subr.bf16.mxu0 0
      %3292 = vmatpush2.bf16.msra.mxu0 0
      %3293 = vmatprep.subr.bf16.mxu0 0
      %3294 = vmatpush2.bf16.msra.mxu0 0
      %3295 = vmatprep.mubr.bf16.mxu0 0
      %3296 = vmatmul.mubr.bf16.gmra.mxu0 %v3188
      %v3297 = vpop.f32.mrf.mxu0
      %v3298 = vadd.f32 %v3213, %v3297
      %v3299 = vpop.f32.mrf.mxu0
      %v3300 = vpop.f32.mrf.mxu0
      %v3301 = vadd.f32 %v3213, %v3300
      %v3302 = vpop.f32.mrf.mxu0
      %3303 = vmatprep.mubr.bf16.mxu0 0
      %3304 = vmatmul.mubr.bf16.gmra.mxu0 %v3189
      %v3305 = vpop.f32.mrf.mxu0
      %v3306 = vadd.f32 %v3213, %v3305
      %v3307 = vpop.f32.mrf.mxu0
      %v3308 = vpop.f32.mrf.mxu0
      %v3309 = vadd.f32 %v3213, %v3308
      %v3310 = vpop.f32.mrf.mxu0
      %3311 = vmatprep.mubr.bf16.mxu0 0
      %3312 = vmatmul.mubr.bf16.gmra.mxu0 %v3190
      %v3313 = vpop.f32.mrf.mxu0
      %v3314 = vadd.f32 %v3213, %v3313
      %v3315 = vpop.f32.mrf.mxu0
      %v3316 = vpop.f32.mrf.mxu0
      %v3317 = vadd.f32 %v3213, %v3316
      %v3318 = vpop.f32.mrf.mxu0
      %3319 = vmatprep.mubr.bf16.mxu0 0
      %3320 = vmatmul.mubr.bf16.gmra.mxu0 %v3191
      %v3321 = vpop.f32.mrf.mxu0
      %v3322 = vadd.f32 %v3213, %v3321
      %v3323 = vpop.f32.mrf.mxu0
      %v3324 = vpop.f32.mrf.mxu0
      %v3325 = vadd.f32 %v3213, %v3324
      %v3326 = vpop.f32.mrf.mxu0
      %3327 = vdwg.mxu0
      %vm3328 = vcmask 130048
      %3329 = vst.msk [vmem:[%s766] sm:$0xff] %vm3328, %v3298
      %3330 = vst.msk [vmem:[%s766 + $0x8] sm:$0xff] %vm3328, %v3301
      %3331 = vst.msk [vmem:[%s766 + $0x10] sm:$0xff] %vm3328, %v3306
      %3332 = vst.msk [vmem:[%s766 + $0x18] sm:$0xff] %vm3328, %v3309
      %3333 = vst.msk [vmem:[%s766 + $0x20] sm:$0xff] %vm3328, %v3314
      %3334 = vst.msk [vmem:[%s766 + $0x28] sm:$0xff] %vm3328, %v3317
      %3335 = vst.msk [vmem:[%s766 + $0x30] sm:$0xff] %vm3328, %v3322
      %3336 = vst.msk [vmem:[%s766 + $0x38] sm:$0xff] %vm3328, %v3325
      %s3337 = smul.u32 8, %s28
      %p3338 = scmp.lt.s32.totalorder %s26, 1
      %s3339 = scalar_select %p3338, %s26, 1
      %p3340 = scmp.lt.s32.totalorder %s27, 3
      %s3341 = scalar_select %p3340, %s27, 3
      %p3342 = scmp.lt.s32.totalorder %s3337, 7
      %s3343 = scalar_select %p3342, %s3337, 7
      %s3344 = smul.addr %s3341, 8
      %s3345 = sadd.s32 %s3343, %s3344
      %s3346 = smul.addr %s3339, 32
      %s3347 = sadd.s32 %s3345, %s3346
      %s3348 = smul.addr %s3347, 8
      %s3349 = scalar_lea.vmem %s10, %s3348
      // Predicated region
      $region61: #{heatmap_head.1} parent=59 // pred_check
        %p3350 = pneg %p346
      $region62: #{heatmap_head.1} parent=59 // pred_check_branch
        %3352 = sbr.rel (%p3350) target = $region64
      $region63: #{heatmap_head.1} parent=59 // pred_region
        %s3353 = smul.u32 8, %s28
      $region64: #{heatmap_head.1} parent=59 // pred_fallthru
        _
    $region60: #{heatmap_head.1} parent=5 // pred_fallthru
      _
    %p3354 = scmp.le.s32.totalorder 2, %s16
    // Predicated region
    $region65: #{heatmap_head.1} parent=5 // pred_check
      %p3355 = pneg %p3354
    $region66: #{heatmap_head.1} parent=5 // pred_check_branch
      %3357 = sbr.rel (%p3355) target = $region68
    $region67: #{heatmap_head.1} parent=5 // pred_region
      %s3358 = ssub.s32 %s16, 2
      // Predicated region
      $region69: #{heatmap_head.1} parent=67 // pred_check
        %p3359 = pneg %p352
      $region70: #{heatmap_head.1} parent=67 // pred_check_branch
        %3361 = sbr.rel (%p3359) target = $region72
      $region71: #{heatmap_head.1} parent=67 // pred_region
        %s3362 = smul.u32 8, %s31
        %p3363 = scmp.lt.s32.totalorder %s29, 1
        %s3364 = scalar_select %p3363, %s29, 1
        %p3365 = scmp.lt.s32.totalorder %s30, 3
        %s3366 = scalar_select %p3365, %s30, 3
        %p3367 = scmp.lt.s32.totalorder %s3362, 7
        %s3368 = scalar_select %p3367, %s3362, 7
        %s3369 = smul.addr %s3366, 8
        %s3370 = sadd.s32 %s3368, %s3369
        %s3371 = smul.addr %s3364, 32
        %s3372 = sadd.s32 %s3370, %s3371
        %s3373 = smul.addr %s3372, 8
        %s3374 = scalar_lea.vmem %s10, %s3373
      $region72: #{heatmap_head.1} parent=67 // pred_fallthru
        _
    $region68: #{heatmap_head.1} parent=5 // pred_fallthru
      _
  $region6: #{heatmap_head.1} parent=0 // loop_footer
    %s20 = sadd.s32 1, %s16
  $region7: #{heatmap_head.1} parent=0 // loop_footer_branch
    %15 = sbr.rel target = $region3
  $region8: #{heatmap_head.1} parent=0 // loop_exit
    _

</llo_original>
